<compile_context>
chip_gen: v6e
topology: v6e:2x2x1
jax: 0.10.0
libtpu: 0.0.40
codegen_flags: <defaults>
</compile_context>

<pallas_src>
import functools
import math

import jax
import jax.numpy as jnp
from jax import lax
from jax.experimental import pallas as pl
from jax.experimental.pallas import tpu as pltpu


def _round_up(x, m):
    return (x + m - 1) // m * m


@functools.lru_cache(maxsize=None)
def _vmem_capacity():
    try:
        return int(pltpu.get_tpu_info().vmem_capacity_bytes)
    except Exception:
        return 64 * 1024 * 1024          # conservative default (v7x per-TC)


def _vmem_limit():
    return min(int(_vmem_capacity() * 0.8), 110 * 1024 * 1024)


def _caster(cast):
    if cast:
        return lambda t: t.astype(jnp.bfloat16).astype(jnp.float32)
    return lambda t: t


# --------------------------------------------------------------------------
# Tiled GEMM kernel: out = act((sum(A_i) @ B) * scale + bias)
# --------------------------------------------------------------------------
def _gemm_kernel(*refs, num_a, relu):
    a_refs = refs[:num_a]
    b_ref, scale_ref, bias_ref, o_ref, acc_ref = refs[num_a:]

    @pl.when(pl.program_id(1) == 0)
    def _():
        acc_ref[...] = jnp.zeros(acc_ref.shape, acc_ref.dtype)

    a = a_refs[0][...]
    for r in a_refs[1:]:          # fused residual add, native bf16 VALU add
        a = a + r[...]
    acc_ref[...] += jnp.dot(a, b_ref[...], preferred_element_type=jnp.float32)

    @pl.when(pl.program_id(1) == pl.num_programs(1) - 1)
    def _():
        out = acc_ref[...] * scale_ref[...] + bias_ref[...]
        if relu:
            out = jnp.maximum(out, 0.0)
        o_ref[...] = out.astype(o_ref.dtype)


def _pick_tm(M, tk, Np, num_a, out_bytes, budget, max_tm):
    cap = _round_up(M, 8)
    smallest = None
    for tm in (2048, 1024, 512, 256, 128):
        if tm > max_tm or tm > cap:
            continue
        use = (num_a * 2 * tm * tk * 2      # A tiles (bf16, double-buffered)
               + 2 * tk * Np * 2            # B tile  (bf16, double-buffered)
               + tm * Np * 4                # f32 accumulator
               + 2 * tm * Np * out_bytes    # output tile (double-buffered)
               + 4 * Np * 4)                # scale / bias
        if use <= budget:
            return tm
        smallest = tm
    return smallest if smallest is not None else cap


def mm_scale_bias(a_list, b, scale, bias, relu=False, out_dtype=jnp.float32):
    """act((sum(a_list) @ b) * scale + bias); scale/bias broadcast over rows."""
    M, K = a_list[0].shape
    N = b.shape[1]

    Np = _round_up(N, 128)                       # lane-dense output columns
    Kp = _round_up(K, 128)                       # MXU-aligned K
    tk = next(c for c in (512, 384, 256, 128) if Kp % c == 0)
    num_a = len(a_list)
    out_bytes = jnp.dtype(out_dtype).itemsize
    limit = _vmem_limit()
    max_tm = 2048 if _vmem_capacity() >= 96 * 1024 * 1024 else 1024
    tm = _pick_tm(M, tk, Np, num_a, out_bytes, int(limit * 0.7), max_tm)
    Mp = _round_up(M, tm)

    # inputs arrive as bf16 already (cast once, before im2col) -> astype no-op
    a_pads = [jnp.pad(a.astype(jnp.bfloat16), ((0, Mp - M), (0, Kp - K)))
              for a in a_list]
    b_pad = jnp.pad(b.astype(jnp.bfloat16), ((0, Kp - K), (0, Np - N)))
    scale_pad = jnp.pad(scale.astype(jnp.float32).reshape(1, N),
                        ((0, 0), (0, Np - N)))
    bias_pad = jnp.pad(bias.astype(jnp.float32).reshape(1, N),
                       ((0, 0), (0, Np - N)))

    out = pl.pallas_call(
        functools.partial(_gemm_kernel, num_a=num_a, relu=relu),
        out_shape=jax.ShapeDtypeStruct((Mp, Np), out_dtype),
        grid=(Mp // tm, Kp // tk),
        in_specs=[pl.BlockSpec((tm, tk), lambda i, k: (i, k))
                  for _ in range(num_a)] + [
            pl.BlockSpec((tk, Np), lambda i, k: (k, 0)),
            pl.BlockSpec((1, Np), lambda i, k: (0, 0)),
            pl.BlockSpec((1, Np), lambda i, k: (0, 0)),
        ],
        out_specs=pl.BlockSpec((tm, Np), lambda i, k: (i, 0)),
        scratch_shapes=[pltpu.VMEM((tm, Np), jnp.float32)],
        compiler_params=pltpu.CompilerParams(
            dimension_semantics=("parallel", "arbitrary"),
            vmem_limit_bytes=limit),
    )(*a_pads, b_pad, scale_pad, bias_pad)
    # TODO(synk): chain padded (Mp, Np) buffers producer->consumer to avoid
    # this slice + the consumer's re-pad copy between GEMM stages.
    return out[:M, :N]


def _mm_ref(a_list, b, scale, bias, relu=False, out_dtype=jnp.float32, *, cast):
    cvt = _caster(cast)
    if len(a_list) == 1:
        a = cvt(a_list[0])
    else:
        a = cvt(sum(cvt(t) for t in a_list))
    out = a @ cvt(b) * scale.reshape(1, -1) + bias.reshape(1, -1)
    if relu:
        out = jnp.maximum(out, 0.0)
    return out.astype(out_dtype)


# --------------------------------------------------------------------------
# PAM: flash-style position attention (channels-last, K pre-transposed)
# --------------------------------------------------------------------------
def _seq_tile(n, cap):
    if n <= cap:
        return _round_up(n, 8)               # single full-extent tile
    cands = [c for c in (cap, 512, 384, 256, 128) if c <= cap]
    return min(cands, key=lambda t: (_round_up(n, t), -t))


def _pam_kernel(gamma_ref, q_ref, kt_ref, v_ref, x_ref, o_ref,
                m_ref, l_ref, acc_ref, *, tk, n_valid, n_total):
    ki = pl.program_id(2)

    @pl.when(ki == 0)
    def _():
        m_ref[...] = jnp.full(m_ref.shape, -jnp.inf, m_ref.dtype)
        l_ref[...] = jnp.zeros(l_ref.shape, l_ref.dtype)
        acc_ref[...] = jnp.zeros(acc_ref.shape, acc_ref.dtype)

    q = q_ref[0]                                                  # (tq, C8)
    kt = kt_ref[0]                                                # (C8, tk)
    s = jnp.dot(q, kt, preferred_element_type=jnp.float32)        # (tq, tk)
    if n_valid < n_total:                                         # mask pad keys
        col = ki * tk + lax.broadcasted_iota(jnp.int32, s.shape, 1)
        s = jnp.where(col < n_valid, s, -jnp.inf)

    m_prev = m_ref[...]
    m_new = jnp.maximum(m_prev, jnp.max(s, axis=-1, keepdims=True))
    alpha = jnp.exp(m_prev - m_new)
    p = jnp.exp(s - m_new)
    l_ref[...] = alpha * l_ref[...] + jnp.sum(p, axis=-1, keepdims=True)
    acc_ref[...] = alpha * acc_ref[...] + jnp.dot(
        p.astype(jnp.bfloat16), v_ref[0], preferred_element_type=jnp.float32)
    m_ref[...] = m_new

    @pl.when(ki == pl.num_programs(2) - 1)
    def _():
        inv_l = pl.reciprocal(l_ref[...], approx=True)
        o_ref[0] = (gamma_ref[0, 0] * acc_ref[...] * inv_l
                    + x_ref[0]).astype(o_ref.dtype)


def pam_attention(q, kt, v, x, gamma, out_dtype):
    """q: (B,N,C8), kt: (B,C8,N), v/x: (B,N,C) -> (B,N,C) in out_dtype."""
    B, N, C8 = q.shape
    C = v.shape[-1]
    t = _seq_tile(N, 512)
    Np = _round_up(N, t)
    pad_n = ((0, 0), (0, Np - N), (0, 0))
    qb = jnp.pad(q.astype(jnp.bfloat16), pad_n)
    ktb = jnp.pad(kt.astype(jnp.bfloat16), ((0, 0), (0, 0), (0, Np - N)))
    vb = jnp.pad(v.astype(jnp.bfloat16), pad_n)
    xb = jnp.pad(x.astype(jnp.bfloat16), pad_n)
    gamma_arr = jnp.asarray(gamma, jnp.float32).reshape(1, 1)

    out = pl.pallas_call(
        functools.partial(_pam_kernel, tk=t, n_valid=N, n_total=Np),
        out_shape=jax.ShapeDtypeStruct((B, Np, C), out_dtype),
        grid=(B, Np // t, Np // t),
        in_specs=[
            pl.BlockSpec((1, 1), lambda b, qi, ki: (0, 0),
                         memory_space=pltpu.MemorySpace.SMEM),
            pl.BlockSpec((1, t, C8), lambda b, qi, ki: (b, qi, 0)),
            pl.BlockSpec((1, C8, t), lambda b, qi, ki: (b, 0, ki)),
            pl.BlockSpec((1, t, C), lambda b, qi, ki: (b, ki, 0)),
            pl.BlockSpec((1, t, C), lambda b, qi, ki: (b, qi, 0)),
        ],
        out_specs=pl.BlockSpec((1, t, C), lambda b, qi, ki: (b, qi, 0)),
        scratch_shapes=[pltpu.VMEM((t, 1), jnp.float32),
                        pltpu.VMEM((t, 1), jnp.float32),
                        pltpu.VMEM((t, C), jnp.float32)],
        compiler_params=pltpu.CompilerParams(
            dimension_semantics=("parallel", "parallel", "arbitrary"),
            vmem_limit_bytes=min(_vmem_limit(), 64 * 1024 * 1024)),
    )(gamma_arr, qb, ktb, vb, xb)
    return out[:, :N, :]


# --------------------------------------------------------------------------
# CAM: channel attention, tiled over N (two passes)
# --------------------------------------------------------------------------
def _cam_energy_kernel(x_ref, e_ref, acc_ref):
    ni = pl.program_id(1)

    @pl.when(ni == 0)
    def _():
        acc_ref[...] = jnp.zeros(acc_ref.shape, acc_ref.dtype)

    xb = x_ref[0]                                                 # (tn, C) bf16
    # TODO(synk): an lhs-transposed dot_general would avoid this per-tile
    # XLU transpose; keeping the proven transpose+matmul lowering path.
    x_cn = jnp.transpose(xb.astype(jnp.float32)).astype(jnp.bfloat16)  # (C, tn)
    acc_ref[...] += jnp.dot(x_cn, xb, preferred_element_type=jnp.float32)

    @pl.when(ni == pl.num_programs(1) - 1)
    def _():
        e_ref[0] = acc_ref[...]


def _cam_apply_kernel(gamma_ref, e_ref, x_ref, o_ref, attn_ref):
    ni = pl.program_id(1)

    @pl.when(ni == 0)
    def _():
        # softmax(rowmax(E) - E) == softmax(-E)  (shift invariance)
        e = -e_ref[0]
        e = e - jnp.max(e, axis=-1, keepdims=True)
        p = jnp.exp(e)
        attn_ref[...] = (p / jnp.sum(p, axis=-1, keepdims=True)
                         ).astype(attn_ref.dtype)

    xb = x_ref[0]                                                 # (tn, C) bf16
    out = lax.dot_general(xb, attn_ref[...],                      # x @ attn^T
                          (((1,), (1,)), ((), ())),
                          preferred_element_type=jnp.float32)
    o_ref[0] = (gamma_ref[0, 0] * out + xb).astype(o_ref.dtype)


def cam_attention(x, gamma, out_dtype):
    """x: (B, N, C) -> gamma * (x @ softmax(-x^T x)^T) + x, tiled over N."""
    B, N, C = x.shape
    tn = _seq_tile(N, 1024)
    Np = _round_up(N, tn)
    xp = jnp.pad(x.astype(jnp.bfloat16), ((0, 0), (0, Np - N), (0, 0)))
    gamma_arr = jnp.asarray(gamma, jnp.float32).reshape(1, 1)
    limit = min(_vmem_limit(), 64 * 1024 * 1024)

    energy = pl.pallas_call(
        _cam_energy_kernel,
        out_shape=jax.ShapeDtypeStruct((B, C, C), jnp.float32),
        grid=(B, Np // tn),
        in_specs=[pl.BlockSpec((1, tn, C), lambda b, ni: (b, ni, 0))],
        out_specs=pl.BlockSpec((1, C, C), lambda b, ni: (b, 0, 0)),
        scratch_shapes=[pltpu.VMEM((C, C), jnp.float32)],
        compiler_params=pltpu.CompilerParams(
            dimension_semantics=("parallel", "arbitrary"),
            vmem_limit_bytes=limit),
    )(xp)

    out = pl.pallas_call(
        _cam_apply_kernel,
        out_shape=jax.ShapeDtypeStruct((B, Np, C), out_dtype),
        grid=(B, Np // tn),
        in_specs=[
            pl.BlockSpec((1, 1), lambda b, ni: (0, 0),
                         memory_space=pltpu.MemorySpace.SMEM),
            pl.BlockSpec((1, C, C), lambda b, ni: (b, 0, 0)),
            pl.BlockSpec((1, tn, C), lambda b, ni: (b, ni, 0)),
        ],
        out_specs=pl.BlockSpec((1, tn, C), lambda b, ni: (b, ni, 0)),
        scratch_shapes=[pltpu.VMEM((C, C), jnp.bfloat16)],
        compiler_params=pltpu.CompilerParams(
            dimension_semantics=("parallel", "arbitrary"),
            vmem_limit_bytes=limit),
    )(gamma_arr, energy, xp)
    return out[:, :N, :]


# --------------------------------------------------------------------------
# JAX glue: channels-last im2col + module wrappers
# --------------------------------------------------------------------------
def _im2col_3x3x3(x_cl):
    """(B, D, H, W, C) -> (B*D*H*W, 27*C), 'same' padding, channels-last."""
    # TODO(synk): an in-kernel tap-accumulating conv would remove this 27x
    # HBM round-trip entirely, but needs element-offset BlockSpecs that break
    # the (8,128) divisibility at these spatial extents; kept bf16 instead.
    B, D, H, W, C = x_cl.shape
    xp = jnp.pad(x_cl, ((0, 0), (1, 1), (1, 1), (1, 1), (0, 0)))
    taps = [xp[:, kd:kd + D, kh:kh + H, kw:kw + W, :]
            for kd in range(3) for kh in range(3) for kw in range(3)]
    cols = jnp.stack(taps, axis=4)                # (B, D, H, W, 27, C)
    return cols.reshape(B * D * H * W, 27 * C)


def _conv3_wmat(w):
    """(Cout, Cin, 3, 3, 3) -> (27*Cin, Cout) matching im2col column order."""
    Cout, Cin = w.shape[:2]
    return w.transpose(2, 3, 4, 1, 0).reshape(27 * Cin, Cout)


def pam_module(x_nc, p, *, mm, use_pallas, cast, out_dtype):
    B, N, C = x_nc.shape
    C8 = p['wq'].shape[0]
    # fused q/k/v 1x1 projection: x read once, lane-dense output
    w_qkv = jnp.concatenate([p['wq'].reshape(C8, C).T,
                             p['wk'].reshape(C8, C).T,
                             p['wv'].reshape(C, C).T], axis=1)
    b_qkv = jnp.concatenate([p['bq'], p['bk'], p['bv']])
    qkv = mm([x_nc.reshape(B * N, C)], w_qkv,
             jnp.ones_like(b_qkv), b_qkv, relu=False,
             out_dtype=out_dtype).reshape(B, N, 2 * C8 + C)
    q, k, v = qkv[..., :C8], qkv[..., C8:2 * C8], qkv[..., 2 * C8:]
    if use_pallas:
        kt = jnp.swapaxes(k, 1, 2)        # (B, C8, N): lane-dense, plain A@B
        return pam_attention(q, kt, v, x_nc, p['gamma'], out_dtype)
    cvt = _caster(cast)
    energy = jnp.einsum('bqc,bkc->bqk', cvt(q), cvt(k))
    attn = jax.nn.softmax(energy, axis=-1)
    out = jnp.einsum('bqk,bkc->bqc', cvt(attn), cvt(v))
    return (p['gamma'] * out + x_nc).astype(out_dtype)


def cam_module(x_nc, gamma, *, use_pallas, cast, out_dtype):
    if use_pallas:
        return cam_attention(x_nc, gamma, out_dtype)
    cvt = _caster(cast)
    xc = cvt(x_nc)
    energy = jnp.einsum('bnc,bnd->bcd', xc, xc)
    attn = jax.nn.softmax(-energy, axis=-1)
    out = jnp.einsum('bcd,bnd->bnc', cvt(attn), xc)
    return (gamma * out + x_nc).astype(out_dtype)


def dap_block(x, p, *, use_pallas=True, cast_bf16=True):
    B, C, D, H, W = x.shape
    N = D * H * W
    mm = mm_scale_bias if use_pallas else functools.partial(_mm_ref, cast=cast_bf16)
    inter_dt = jnp.bfloat16 if cast_bf16 else jnp.float32
    eps = 1e-5

    def bn_fold(bn):
        g, b, m, v = bn
        s = g / jnp.sqrt(v + eps)
        return s, b - m * s

    # NCDHW -> channels-last; cast once so the 27x im2col tensor and every
    # intermediate stay half-width in HBM (only the block output is f32).
    x_cl = x.transpose(0, 2, 3, 4, 1).astype(inter_dt)

    # fused conv5a + conv5c (3x3x3 + BN + ReLU): shared im2col, one GEMM, 2C lanes
    s5a, b5a = bn_fold(p['bn5a'])
    s5c, b5c = bn_fold(p['bn5c'])
    w_ac = jnp.concatenate([_conv3_wmat(p['w5a']), _conv3_wmat(p['w5c'])], axis=1)
    feats = mm([_im2col_3x3x3(x_cl)], w_ac,
               jnp.concatenate([s5a, s5c]), jnp.concatenate([b5a, b5c]),
               relu=True, out_dtype=inter_dt)
    feat1 = feats[:, :C].reshape(B, N, C)             # PAM branch
    feat2 = feats[:, C:].reshape(B, N, C)             # CAM branch

    # PAM branch: position attention + conv51
    sa = pam_module(feat1, p['pam'], mm=mm, use_pallas=use_pallas,
                    cast=cast_bf16, out_dtype=inter_dt)
    s51, b51 = bn_fold(p['bn51'])
    sa_conv = mm([_im2col_3x3x3(sa.reshape(B, D, H, W, C))],
                 _conv3_wmat(p['w51']), s51, b51, relu=True, out_dtype=inter_dt)

    # CAM branch: channel attention + conv52
    sc = cam_module(feat2, p['cam_gamma'], use_pallas=use_pallas,
                    cast=cast_bf16, out_dtype=inter_dt)
    s52, b52 = bn_fold(p['bn52'])
    sc_conv = mm([_im2col_3x3x3(sc.reshape(B, D, H, W, C))],
                 _conv3_wmat(p['w52']), s52, b52, relu=True, out_dtype=inter_dt)

    # residual add fused into the final 1x1 conv GEMM (f32 block output)
    # TODO(synk): Dropout3d(0.1) treated as identity (inference semantics).
    out = mm([sa_conv, sc_conv], p['w8'].reshape(C, C).T,
             jnp.ones((C,), jnp.float32), p['b8'], relu=False,
             out_dtype=jnp.float32)
    return out.reshape(B, D, H, W, C).transpose(0, 4, 1, 2, 3)


# --------------------------------------------------------------------------
# Deterministic parameter init (shapes follow dapBlock.__init__)
# --------------------------------------------------------------------------
def init_params(key, C):
    ks = jax.random.split(key, 12)

    def conv_w(k, cout, cin, ksz):
        fan_in = cin * ksz ** 3
        return (jax.random.normal(k, (cout, cin, ksz, ksz, ksz), jnp.float32)
                / math.sqrt(fan_in))

    def bn(c):   # (gamma, beta, running_mean, running_var) — PyTorch defaults
        return (jnp.ones((c,), jnp.float32), jnp.zeros((c,), jnp.float32),
                jnp.zeros((c,), jnp.float32), jnp.ones((c,), jnp.float32))

    C8 = C // 8
    return {
        'w5a': conv_w(ks[0], C, C, 3), 'bn5a': bn(C),
        'w5c': conv_w(ks[1], C, C, 3), 'bn5c': bn(C),
        'w51': conv_w(ks[2], C, C, 3), 'bn51': bn(C),
        'w52': conv_w(ks[3], C, C, 3), 'bn52': bn(C),
        'w8': conv_w(ks[4], C, C, 1),
        'b8': 0.1 * jax.random.normal(ks[5], (C,), jnp.float32),
        'pam': {
            'wq': conv_w(ks[6], C8, C, 1),
            'bq': 0.1 * jax.random.normal(ks[7], (C8,), jnp.float32),
            'wk': conv_w(ks[8], C8, C, 1),
            'bk': 0.1 * jax.random.normal(ks[9], (C8,), jnp.float32),
            'wv': conv_w(ks[10], C, C, 1),
            'bv': 0.1 * jax.random.normal(ks[11], (C,), jnp.float32),
            # PyTorch inits gamma to 0; use 0.5 so the attention path is exercised.
            'gamma': jnp.float32(0.5),
        },
        'cam_gamma': jnp.float32(0.5),
    }


if __name__ == "__main__":
    key = jax.random.PRNGKey(0)
    kx, kp = jax.random.split(key)
    B, C, D, H, W = 2, 16, 4, 4, 4           # N = D*H*W = 64, C//8 = 2
    x = jax.random.normal(kx, (B, C, D, H, W), jnp.float32)
    params = init_params(kp, C)

    run_pallas = jax.jit(functools.partial(dap_block, use_pallas=True))
    run_ref_bf16 = jax.jit(functools.partial(dap_block, use_pallas=False,
                                             cast_bf16=True))
    run_ref_f32 = jax.jit(functools.partial(dap_block, use_pallas=False,
                                            cast_bf16=False))

    out = jax.block_until_ready(run_pallas(x, params))
    ref_bf16 = jax.block_until_ready(run_ref_bf16(x, params))
    ref_f32 = jax.block_until_ready(run_ref_f32(x, params))

    assert out.shape == (B, C, D, H, W)
    assert bool(jnp.all(jnp.isfinite(out)))
    err_kernel = float(jnp.max(jnp.abs(out - ref_bf16)))   # vs precision-matched ref
    err_f32 = float(jnp.max(jnp.abs(out - ref_f32)))       # vs full-f32 ref
    assert err_kernel < 2e-2, f"mismatch vs bf16-matched JAX reference: {err_kernel}"
    assert err_f32 < 2.5e-1, f"mismatch vs f32 JAX reference: {err_f32}"
    print("KERNEL_OK")
</pallas_src>

<mosaic_0001>
module attributes {stable_mosaic.version = 11 : i64} {
  func.func @_gemm_kernel(%arg0: i32, %arg1: i32, %arg2: memref<128x512xbf16, #tpu.memory_space<vmem>>, %arg3: memref<512x128xbf16, #tpu.memory_space<vmem>>, %arg4: memref<1x128xf32, #tpu.memory_space<vmem>>, %arg5: memref<1x128xf32, #tpu.memory_space<vmem>>, %arg6: memref<128x128xbf16, #tpu.memory_space<vmem>>, %arg7: memref<128x128xf32, #tpu.memory_space<vmem>>) attributes {dimension_semantics = [#tpu.dimension_semantics<parallel>, #tpu.dimension_semantics<arbitrary>], iteration_bounds = array<i64: 1, 1>, scalar_prefetch = 0 : i64, scratch_operands = 1 : i64, tpu.core_type = #tpu.core_type<tc>, window_params = [{transform_indices = @transform_0, window_bounds = array<i64: 128, 512>}, {transform_indices = @transform_1, window_bounds = array<i64: 512, 128>}, {pipeline_mode = #tpu.pipeline_mode<synchronous>, transform_indices = @transform_2, window_bounds = array<i64: 1, 128>}, {pipeline_mode = #tpu.pipeline_mode<synchronous>, transform_indices = @transform_3, window_bounds = array<i64: 1, 128>}, {transform_indices = @transform_4, window_bounds = array<i64: 128, 128>}]} {
    %c0_i32 = arith.constant 0 : i32
    %0 = arith.cmpi eq, %arg1, %c0_i32 : i32
    %1 = arith.extui %0 : i1 to i32
    %c0_i32_0 = arith.constant 0 : i32
    %2 = arith.cmpi ne, %1, %c0_i32_0 : i32
    scf.if %2 {
      %cst_10 = arith.constant 0.000000e+00 : f32
      %12 = vector.broadcast %cst_10 : f32 to vector<128x128xf32>
      %c0_11 = arith.constant 0 : index
      %c0_12 = arith.constant 0 : index
      %13 = vector.load %arg7[%c0_11, %c0_12] : memref<128x128xf32, #tpu.memory_space<vmem>>, vector<128x128xf32>
      tpu.vector_store %arg7[%c0_11, %c0_12], %12 {strides = array<i32>} : memref<128x128xf32, #tpu.memory_space<vmem>>, vector<128x128xf32>,
    } else {
    }
    %c0 = arith.constant 0 : index
    %c0_1 = arith.constant 0 : index
    %3 = vector.load %arg2[%c0, %c0_1] : memref<128x512xbf16, #tpu.memory_space<vmem>>, vector<128x512xbf16>
    %c0_2 = arith.constant 0 : index
    %c0_3 = arith.constant 0 : index
    %4 = vector.load %arg7[%c0_2, %c0_3] : memref<128x128xf32, #tpu.memory_space<vmem>>, vector<128x128xf32>
    %c0_4 = arith.constant 0 : index
    %c0_5 = arith.constant 0 : index
    %5 = vector.load %arg3[%c0_4, %c0_5] : memref<512x128xbf16, #tpu.memory_space<vmem>>, vector<512x128xbf16>
    %cst = arith.constant dense<0.000000e+00> : vector<128x128xf32>
    %6 = tpu.matmul %3, %5, %cst {dimension_numbers = #tpu.dot_dimension_numbers<[1], [0], [0], [1], [0, 0, 1, 1], [], []>} : vector<128x512xbf16>, vector<512x128xbf16>, vector<128x128xf32> -> vector<128x128xf32>
    %7 = arith.addf %4, %6 : vector<128x128xf32>
    %c0_6 = arith.constant 0 : index
    %c0_7 = arith.constant 0 : index
    %8 = vector.load %arg7[%c0_6, %c0_7] : memref<128x128xf32, #tpu.memory_space<vmem>>, vector<128x128xf32>
    tpu.vector_store %arg7[%c0_6, %c0_7], %7 {strides = array<i32>} : memref<128x128xf32, #tpu.memory_space<vmem>>, vector<128x128xf32>,
    %c0_i32_8 = arith.constant 0 : i32
    %9 = arith.cmpi eq, %arg1, %c0_i32_8 : i32
    %10 = arith.extui %9 : i1 to i32
    %c0_i32_9 = arith.constant 0 : i32
    %11 = arith.cmpi ne, %10, %c0_i32_9 : i32
    scf.if %11 {
      %c0_10 = arith.constant 0 : index
      %c0_11 = arith.constant 0 : index
      %12 = vector.load %arg7[%c0_10, %c0_11] : memref<128x128xf32, #tpu.memory_space<vmem>>, vector<128x128xf32>
      %c0_12 = arith.constant 0 : index
      %c0_13 = arith.constant 0 : index
      %13 = vector.load %arg4[%c0_12, %c0_13] : memref<1x128xf32, #tpu.memory_space<vmem>>, vector<1x128xf32>
      %14 = vector.broadcast %13 : vector<1x128xf32> to vector<128x128xf32>
      %15 = arith.mulf %12, %14 : vector<128x128xf32>
      %c0_14 = arith.constant 0 : index
      %c0_15 = arith.constant 0 : index
      %16 = vector.load %arg5[%c0_14, %c0_15] : memref<1x128xf32, #tpu.memory_space<vmem>>, vector<1x128xf32>
      %17 = vector.broadcast %16 : vector<1x128xf32> to vector<128x128xf32>
      %18 = arith.addf %15, %17 : vector<128x128xf32>
      %cst_16 = arith.constant 0.000000e+00 : f32
      %19 = vector.broadcast %cst_16 : f32 to vector<128x128xf32>
      %20 = arith.maximumf %18, %19 : vector<128x128xf32>
      %21 = arith.truncf %20 : vector<128x128xf32> to vector<128x128xbf16>
      %c0_17 = arith.constant 0 : index
      %c0_18 = arith.constant 0 : index
      %22 = vector.load %arg6[%c0_17, %c0_18] : memref<128x128xbf16, #tpu.memory_space<vmem>>, vector<128x128xbf16>
      tpu.vector_store %arg6[%c0_17, %c0_18], %21 {strides = array<i32>} : memref<128x128xbf16, #tpu.memory_space<vmem>>, vector<128x128xbf16>,
    } else {
    }
    return
  }
  func.func @transform_0(%arg0: i32, %arg1: i32) -> (i32, i32) {
    %c0_i32 = arith.constant 0 : i32
    return %arg0, %arg1 : i32, i32
  }
  func.func @transform_1(%arg0: i32, %arg1: i32) -> (i32, i32) {
    %c0_i32 = arith.constant 0 : i32
    %c0_i32_0 = arith.constant 0 : i32
    return %arg1, %c0_i32 : i32, i32
  }
  func.func @transform_2(%arg0: i32, %arg1: i32) -> (i32, i32) {
    %c0_i32 = arith.constant 0 : i32
    %c0_i32_0 = arith.constant 0 : i32
    %c0_i32_1 = arith.constant 0 : i32
    return %c0_i32, %c0_i32_0 : i32, i32
  }
  func.func @transform_3(%arg0: i32, %arg1: i32) -> (i32, i32) {
    %c0_i32 = arith.constant 0 : i32
    %c0_i32_0 = arith.constant 0 : i32
    %c0_i32_1 = arith.constant 0 : i32
    return %c0_i32, %c0_i32_0 : i32, i32
  }
  func.func @transform_4(%arg0: i32, %arg1: i32) -> (i32, i32) {
    %c0_i32 = arith.constant 0 : i32
    %c0_i32_0 = arith.constant 0 : i32
    return %arg0, %c0_i32 : i32, i32
  }
}

module attributes {stable_mosaic.version = 11 : i64} {
  func.func @_cam_energy_kernel(%arg0: i32, %arg1: i32, %arg2: memref<1x64x16xbf16, #tpu.memory_space<vmem>>, %arg3: memref<1x16x16xf32, #tpu.memory_space<vmem>>, %arg4: memref<16x16xf32, #tpu.memory_space<vmem>>) attributes {dimension_semantics = [#tpu.dimension_semantics<parallel>, #tpu.dimension_semantics<arbitrary>], iteration_bounds = array<i64: 2, 1>, scalar_prefetch = 0 : i64, scratch_operands = 1 : i64, tpu.core_type = #tpu.core_type<tc>, window_params = [{transform_indices = @transform_0, window_bounds = array<i64: 1, 64, 16>}, {transform_indices = @transform_1, window_bounds = array<i64: 1, 16, 16>}]} {
    %c0_i32 = arith.constant 0 : i32
    %0 = arith.cmpi eq, %arg1, %c0_i32 : i32
    %1 = arith.extui %0 : i1 to i32
    %c0_i32_0 = arith.constant 0 : i32
    %2 = arith.cmpi ne, %1, %c0_i32_0 : i32
    scf.if %2 {
      %cst_9 = arith.constant 0.000000e+00 : f32
      %15 = vector.broadcast %cst_9 : f32 to vector<16x16xf32>
      %c0_10 = arith.constant 0 : index
      %c0_11 = arith.constant 0 : index
      %16 = vector.load %arg4[%c0_10, %c0_11] : memref<16x16xf32, #tpu.memory_space<vmem>>, vector<16x16xf32>
      tpu.vector_store %arg4[%c0_10, %c0_11], %15 {strides = array<i32>} : memref<16x16xf32, #tpu.memory_space<vmem>>, vector<16x16xf32>,
    } else {
    }
    %c0 = arith.constant 0 : index
    %c0_1 = arith.constant 0 : index
    %c0_2 = arith.constant 0 : index
    %3 = vector.load %arg2[%c0, %c0_1, %c0_2] : memref<1x64x16xbf16, #tpu.memory_space<vmem>>, vector<1x64x16xbf16>
    %4 = vector.shape_cast %3 : vector<1x64x16xbf16> to vector<64x16xbf16>
    %5 = arith.extf %4 : vector<64x16xbf16> to vector<64x16xf32>
    %6 = tpu.transpose %5, [1, 0] : vector<64x16xf32> -> vector<16x64xf32>
    %7 = arith.truncf %6 : vector<16x64xf32> to vector<16x64xbf16>
    %c0_3 = arith.constant 0 : index
    %c0_4 = arith.constant 0 : index
    %8 = vector.load %arg4[%c0_3, %c0_4] : memref<16x16xf32, #tpu.memory_space<vmem>>, vector<16x16xf32>
    %cst = arith.constant dense<0.000000e+00> : vector<16x16xf32>
    %9 = tpu.matmul %7, %4, %cst {dimension_numbers = #tpu.dot_dimension_numbers<[1], [0], [0], [1], [0, 0, 1, 1], [], []>} : vector<16x64xbf16>, vector<64x16xbf16>, vector<16x16xf32> -> vector<16x16xf32>
    %10 = arith.addf %8, %9 : vector<16x16xf32>
    %c0_5 = arith.constant 0 : index
    %c0_6 = arith.constant 0 : index
    %11 = vector.load %arg4[%c0_5, %c0_6] : memref<16x16xf32, #tpu.memory_space<vmem>>, vector<16x16xf32>
    tpu.vector_store %arg4[%c0_5, %c0_6], %10 {strides = array<i32>} : memref<16x16xf32, #tpu.memory_space<vmem>>, vector<16x16xf32>,
    %c0_i32_7 = arith.constant 0 : i32
    %12 = arith.cmpi eq, %arg1, %c0_i32_7 : i32
    %13 = arith.extui %12 : i1 to i32
    %c0_i32_8 = arith.constant 0 : i32
    %14 = arith.cmpi ne, %13, %c0_i32_8 : i32
    scf.if %14 {
      %c0_9 = arith.constant 0 : index
      %c0_10 = arith.constant 0 : index
      %15 = vector.load %arg4[%c0_9, %c0_10] : memref<16x16xf32, #tpu.memory_space<vmem>>, vector<16x16xf32>
      %c0_11 = arith.constant 0 : index
      %c0_12 = arith.constant 0 : index
      %c0_13 = arith.constant 0 : index
      %16 = vector.load %arg3[%c0_11, %c0_12, %c0_13] : memref<1x16x16xf32, #tpu.memory_space<vmem>>, vector<1x16x16xf32>
      %17 = vector.shape_cast %16 : vector<1x16x16xf32> to vector<16x16xf32>
      %18 = vector.shape_cast %15 : vector<16x16xf32> to vector<1x16x16xf32>
      tpu.vector_store %arg3[%c0_11, %c0_12, %c0_13], %18 {strides = array<i32>} : memref<1x16x16xf32, #tpu.memory_space<vmem>>, vector<1x16x16xf32>,
    } else {
    }
    return
  }
  func.func @transform_0(%arg0: i32, %arg1: i32) -> (i32, i32, i32) {
    %c0_i32 = arith.constant 0 : i32
    %c0_i32_0 = arith.constant 0 : i32
    return %arg0, %arg1, %c0_i32 : i32, i32, i32
  }
  func.func @transform_1(%arg0: i32, %arg1: i32) -> (i32, i32, i32) {
    %c0_i32 = arith.constant 0 : i32
    %c0_i32_0 = arith.constant 0 : i32
    %c0_i32_1 = arith.constant 0 : i32
    return %arg0, %c0_i32, %c0_i32_0 : i32, i32, i32
  }
}

module attributes {stable_mosaic.version = 11 : i64} {
  func.func @_cam_apply_kernel(%arg0: i32, %arg1: i32, %arg2: memref<1x1xf32, #tpu.memory_space<smem>>, %arg3: memref<1x16x16xf32, #tpu.memory_space<vmem>>, %arg4: memref<1x64x16xbf16, #tpu.memory_space<vmem>>, %arg5: memref<1x64x16xbf16, #tpu.memory_space<vmem>>, %arg6: memref<16x16xbf16, #tpu.memory_space<vmem>>) attributes {dimension_semantics = [#tpu.dimension_semantics<parallel>, #tpu.dimension_semantics<arbitrary>], iteration_bounds = array<i64: 2, 1>, scalar_prefetch = 0 : i64, scratch_operands = 1 : i64, tpu.core_type = #tpu.core_type<tc>, window_params = [{transform_indices = @transform_0, window_bounds = array<i64: 1, 1>}, {transform_indices = @transform_1, window_bounds = array<i64: 1, 16, 16>}, {transform_indices = @transform_2, window_bounds = array<i64: 1, 64, 16>}, {transform_indices = @transform_3, window_bounds = array<i64: 1, 64, 16>}]} {
    %c0_i32 = arith.constant 0 : i32
    %0 = arith.cmpi eq, %arg1, %c0_i32 : i32
    %1 = arith.extui %0 : i1 to i32
    %c0_i32_0 = arith.constant 0 : i32
    %2 = arith.cmpi ne, %1, %c0_i32_0 : i32
    scf.if %2 {
      %c0_10 = arith.constant 0 : index
      %c0_11 = arith.constant 0 : index
      %c0_12 = arith.constant 0 : index
      %16 = vector.load %arg3[%c0_10, %c0_11, %c0_12] : memref<1x16x16xf32, #tpu.memory_space<vmem>>, vector<1x16x16xf32>
      %17 = vector.shape_cast %16 : vector<1x16x16xf32> to vector<16x16xf32>
      %cst_13 = arith.constant 0.000000e+00 : f32
      %18 = vector.broadcast %cst_13 : f32 to vector<16x16xf32>
      %19 = arith.subf %18, %17 : vector<16x16xf32>
      %cst_14 = arith.constant dense<0xFF800000> : vector<16xf32>
      %20 = vector.multi_reduction <maximumf>, %19, %cst_14 [1] : vector<16x16xf32> to vector<16xf32>
      %21 = vector.shape_cast %20 : vector<16xf32> to vector<16x1xf32>
      %22 = vector.broadcast %21 : vector<16x1xf32> to vector<16x16xf32>
      %23 = arith.subf %19, %22 : vector<16x16xf32>
      %24 = math.exp %23 : vector<16x16xf32>
      %cst_15 = arith.constant dense<0.000000e+00> : vector<16xf32>
      %25 = vector.multi_reduction <add>, %24, %cst_15 [1] : vector<16x16xf32> to vector<16xf32>
      %26 = vector.shape_cast %25 : vector<16xf32> to vector<16x1xf32>
      %27 = vector.broadcast %26 : vector<16x1xf32> to vector<16x16xf32>
      %28 = arith.divf %24, %27 : vector<16x16xf32>
      %29 = arith.truncf %28 : vector<16x16xf32> to vector<16x16xbf16>
      %c0_16 = arith.constant 0 : index
      %c0_17 = arith.constant 0 : index
      %30 = vector.load %arg6[%c0_16, %c0_17] : memref<16x16xbf16, #tpu.memory_space<vmem>>, vector<16x16xbf16>
      tpu.vector_store %arg6[%c0_16, %c0_17], %29 {strides = array<i32>} : memref<16x16xbf16, #tpu.memory_space<vmem>>, vector<16x16xbf16>,
    } else {
    }
    %c0 = arith.constant 0 : index
    %c0_1 = arith.constant 0 : index
    %c0_2 = arith.constant 0 : index
    %3 = vector.load %arg4[%c0, %c0_1, %c0_2] : memref<1x64x16xbf16, #tpu.memory_space<vmem>>, vector<1x64x16xbf16>
    %4 = vector.shape_cast %3 : vector<1x64x16xbf16> to vector<64x16xbf16>
    %c0_3 = arith.constant 0 : index
    %c0_4 = arith.constant 0 : index
    %5 = vector.load %arg6[%c0_3, %c0_4] : memref<16x16xbf16, #tpu.memory_space<vmem>>, vector<16x16xbf16>
    %cst = arith.constant dense<0.000000e+00> : vector<64x16xf32>
    %6 = tpu.matmul %4, %5, %cst {dimension_numbers = #tpu.dot_dimension_numbers<[1], [1], [0], [0], [0, 0, 1, 0], [], []>} : vector<64x16xbf16>, vector<16x16xbf16>, vector<64x16xf32> -> vector<64x16xf32>
    %c0_5 = arith.constant 0 : index
    %c0_6 = arith.constant 0 : index
    %7 = memref.load %arg2[%c0_5, %c0_6] : memref<1x1xf32, #tpu.memory_space<smem>>
    %8 = vector.broadcast %7 : f32 to vector<64x16xf32>
    %9 = arith.mulf %8, %6 : vector<64x16xf32>
    %10 = arith.extf %4 : vector<64x16xbf16> to vector<64x16xf32>
    %11 = arith.addf %9, %10 : vector<64x16xf32>
    %12 = arith.truncf %11 : vector<64x16xf32> to vector<64x16xbf16>
    %c0_7 = arith.constant 0 : index
    %c0_8 = arith.constant 0 : index
    %c0_9 = arith.constant 0 : index
    %13 = vector.load %arg5[%c0_7, %c0_8, %c0_9] : memref<1x64x16xbf16, #tpu.memory_space<vmem>>, vector<1x64x16xbf16>
    %14 = vector.shape_cast %13 : vector<1x64x16xbf16> to vector<64x16xbf16>
    %15 = vector.shape_cast %12 : vector<64x16xbf16> to vector<1x64x16xbf16>
    tpu.vector_store %arg5[%c0_7, %c0_8, %c0_9], %15 {strides = array<i32>} : memref<1x64x16xbf16, #tpu.memory_space<vmem>>, vector<1x64x16xbf16>,
    return
  }
  func.func @transform_0(%arg0: i32, %arg1: i32) -> (i32, i32) {
    %c0_i32 = arith.constant 0 : i32
    %c0_i32_0 = arith.constant 0 : i32
    %c0_i32_1 = arith.constant 0 : i32
    return %c0_i32, %c0_i32_0 : i32, i32
  }
  func.func @transform_1(%arg0: i32, %arg1: i32) -> (i32, i32, i32) {
    %c0_i32 = arith.constant 0 : i32
    %c0_i32_0 = arith.constant 0 : i32
    %c0_i32_1 = arith.constant 0 : i32
    return %arg0, %c0_i32, %c0_i32_0 : i32, i32, i32
  }
  func.func @transform_2(%arg0: i32, %arg1: i32) -> (i32, i32, i32) {
    %c0_i32 = arith.constant 0 : i32
    %c0_i32_0 = arith.constant 0 : i32
    return %arg0, %arg1, %c0_i32 : i32, i32, i32
  }
  func.func @transform_3(%arg0: i32, %arg1: i32) -> (i32, i32, i32) {
    %c0_i32 = arith.constant 0 : i32
    %c0_i32_0 = arith.constant 0 : i32
    return %arg0, %arg1, %c0_i32 : i32, i32, i32
  }
}

module attributes {stable_mosaic.version = 11 : i64} {
  func.func @_gemm_kernel(%arg0: i32, %arg1: i32, %arg2: memref<128x128xbf16, #tpu.memory_space<vmem>>, %arg3: memref<128x128xbf16, #tpu.memory_space<vmem>>, %arg4: memref<1x128xf32, #tpu.memory_space<vmem>>, %arg5: memref<1x128xf32, #tpu.memory_space<vmem>>, %arg6: memref<128x128xbf16, #tpu.memory_space<vmem>>, %arg7: memref<128x128xf32, #tpu.memory_space<vmem>>) attributes {dimension_semantics = [#tpu.dimension_semantics<parallel>, #tpu.dimension_semantics<arbitrary>], iteration_bounds = array<i64: 1, 1>, scalar_prefetch = 0 : i64, scratch_operands = 1 : i64, tpu.core_type = #tpu.core_type<tc>, window_params = [{transform_indices = @transform_0, window_bounds = array<i64: 128, 128>}, {transform_indices = @transform_1, window_bounds = array<i64: 128, 128>}, {pipeline_mode = #tpu.pipeline_mode<synchronous>, transform_indices = @transform_2, window_bounds = array<i64: 1, 128>}, {pipeline_mode = #tpu.pipeline_mode<synchronous>, transform_indices = @transform_3, window_bounds = array<i64: 1, 128>}, {transform_indices = @transform_4, window_bounds = array<i64: 128, 128>}]} {
    %c0_i32 = arith.constant 0 : i32
    %0 = arith.cmpi eq, %arg1, %c0_i32 : i32
    %1 = arith.extui %0 : i1 to i32
    %c0_i32_0 = arith.constant 0 : i32
    %2 = arith.cmpi ne, %1, %c0_i32_0 : i32
    scf.if %2 {
      %cst_10 = arith.constant 0.000000e+00 : f32
      %12 = vector.broadcast %cst_10 : f32 to vector<128x128xf32>
      %c0_11 = arith.constant 0 : index
      %c0_12 = arith.constant 0 : index
      %13 = vector.load %arg7[%c0_11, %c0_12] : memref<128x128xf32, #tpu.memory_space<vmem>>, vector<128x128xf32>
      tpu.vector_store %arg7[%c0_11, %c0_12], %12 {strides = array<i32>} : memref<128x128xf32, #tpu.memory_space<vmem>>, vector<128x128xf32>,
    } else {
    }
    %c0 = arith.constant 0 : index
    %c0_1 = arith.constant 0 : index
    %3 = vector.load %arg2[%c0, %c0_1] : memref<128x128xbf16, #tpu.memory_space<vmem>>, vector<128x128xbf16>
    %c0_2 = arith.constant 0 : index
    %c0_3 = arith.constant 0 : index
    %4 = vector.load %arg7[%c0_2, %c0_3] : memref<128x128xf32, #tpu.memory_space<vmem>>, vector<128x128xf32>
    %c0_4 = arith.constant 0 : index
    %c0_5 = arith.constant 0 : index
    %5 = vector.load %arg3[%c0_4, %c0_5] : memref<128x128xbf16, #tpu.memory_space<vmem>>, vector<128x128xbf16>
    %cst = arith.constant dense<0.000000e+00> : vector<128x128xf32>
    %6 = tpu.matmul %3, %5, %cst {dimension_numbers = #tpu.dot_dimension_numbers<[1], [0], [0], [1], [0, 0, 1, 1], [], []>} : vector<128x128xbf16>, vector<128x128xbf16>, vector<128x128xf32> -> vector<128x128xf32>
    %7 = arith.addf %4, %6 : vector<128x128xf32>
    %c0_6 = arith.constant 0 : index
    %c0_7 = arith.constant 0 : index
    %8 = vector.load %arg7[%c0_6, %c0_7] : memref<128x128xf32, #tpu.memory_space<vmem>>, vector<128x128xf32>
    tpu.vector_store %arg7[%c0_6, %c0_7], %7 {strides = array<i32>} : memref<128x128xf32, #tpu.memory_space<vmem>>, vector<128x128xf32>,
    %c0_i32_8 = arith.constant 0 : i32
    %9 = arith.cmpi eq, %arg1, %c0_i32_8 : i32
    %10 = arith.extui %9 : i1 to i32
    %c0_i32_9 = arith.constant 0 : i32
    %11 = arith.cmpi ne, %10, %c0_i32_9 : i32
    scf.if %11 {
      %c0_10 = arith.constant 0 : index
      %c0_11 = arith.constant 0 : index
      %12 = vector.load %arg7[%c0_10, %c0_11] : memref<128x128xf32, #tpu.memory_space<vmem>>, vector<128x128xf32>
      %c0_12 = arith.constant 0 : index
      %c0_13 = arith.constant 0 : index
      %13 = vector.load %arg4[%c0_12, %c0_13] : memref<1x128xf32, #tpu.memory_space<vmem>>, vector<1x128xf32>
      %14 = vector.broadcast %13 : vector<1x128xf32> to vector<128x128xf32>
      %15 = arith.mulf %12, %14 : vector<128x128xf32>
      %c0_14 = arith.constant 0 : index
      %c0_15 = arith.constant 0 : index
      %16 = vector.load %arg5[%c0_14, %c0_15] : memref<1x128xf32, #tpu.memory_space<vmem>>, vector<1x128xf32>
      %17 = vector.broadcast %16 : vector<1x128xf32> to vector<128x128xf32>
      %18 = arith.addf %15, %17 : vector<128x128xf32>
      %19 = arith.truncf %18 : vector<128x128xf32> to vector<128x128xbf16>
      %c0_16 = arith.constant 0 : index
      %c0_17 = arith.constant 0 : index
      %20 = vector.load %arg6[%c0_16, %c0_17] : memref<128x128xbf16, #tpu.memory_space<vmem>>, vector<128x128xbf16>
      tpu.vector_store %arg6[%c0_16, %c0_17], %19 {strides = array<i32>} : memref<128x128xbf16, #tpu.memory_space<vmem>>, vector<128x128xbf16>,
    } else {
    }
    return
  }
  func.func @transform_0(%arg0: i32, %arg1: i32) -> (i32, i32) {
    %c0_i32 = arith.constant 0 : i32
    return %arg0, %arg1 : i32, i32
  }
  func.func @transform_1(%arg0: i32, %arg1: i32) -> (i32, i32) {
    %c0_i32 = arith.constant 0 : i32
    %c0_i32_0 = arith.constant 0 : i32
    return %arg1, %c0_i32 : i32, i32
  }
  func.func @transform_2(%arg0: i32, %arg1: i32) -> (i32, i32) {
    %c0_i32 = arith.constant 0 : i32
    %c0_i32_0 = arith.constant 0 : i32
    %c0_i32_1 = arith.constant 0 : i32
    return %c0_i32, %c0_i32_0 : i32, i32
  }
  func.func @transform_3(%arg0: i32, %arg1: i32) -> (i32, i32) {
    %c0_i32 = arith.constant 0 : i32
    %c0_i32_0 = arith.constant 0 : i32
    %c0_i32_1 = arith.constant 0 : i32
    return %c0_i32, %c0_i32_0 : i32, i32
  }
  func.func @transform_4(%arg0: i32, %arg1: i32) -> (i32, i32) {
    %c0_i32 = arith.constant 0 : i32
    %c0_i32_0 = arith.constant 0 : i32
    return %arg0, %c0_i32 : i32, i32
  }
}

module attributes {stable_mosaic.version = 11 : i64} {
  func.func @_pam_kernel(%arg0: i32, %arg1: i32, %arg2: i32, %arg3: memref<1x1xf32, #tpu.memory_space<smem>>, %arg4: memref<1x64x2xbf16, #tpu.memory_space<vmem>>, %arg5: memref<1x2x64xbf16, #tpu.memory_space<vmem>>, %arg6: memref<1x64x16xbf16, #tpu.memory_space<vmem>>, %arg7: memref<1x64x16xbf16, #tpu.memory_space<vmem>>, %arg8: memref<1x64x16xbf16, #tpu.memory_space<vmem>>, %arg9: memref<64x1xf32, #tpu.memory_space<vmem>>, %arg10: memref<64x1xf32, #tpu.memory_space<vmem>>, %arg11: memref<64x16xf32, #tpu.memory_space<vmem>>) attributes {dimension_semantics = [#tpu.dimension_semantics<parallel>, #tpu.dimension_semantics<parallel>, #tpu.dimension_semantics<arbitrary>], iteration_bounds = array<i64: 2, 1, 1>, scalar_prefetch = 0 : i64, scratch_operands = 3 : i64, tpu.core_type = #tpu.core_type<tc>, window_params = [{transform_indices = @transform_0, window_bounds = array<i64: 1, 1>}, {transform_indices = @transform_1, window_bounds = array<i64: 1, 64, 2>}, {transform_indices = @transform_2, window_bounds = array<i64: 1, 2, 64>}, {transform_indices = @transform_3, window_bounds = array<i64: 1, 64, 16>}, {transform_indices = @transform_4, window_bounds = array<i64: 1, 64, 16>}, {transform_indices = @transform_5, window_bounds = array<i64: 1, 64, 16>}]} {
    %c0_i32 = arith.constant 0 : i32
    %0 = arith.cmpi eq, %arg2, %c0_i32 : i32
    %1 = arith.extui %0 : i1 to i32
    %c0_i32_0 = arith.constant 0 : i32
    %2 = arith.cmpi ne, %1, %c0_i32_0 : i32
    scf.if %2 {
      %cst_26 = arith.constant 0xFF800000 : f32
      %36 = vector.broadcast %cst_26 : f32 to vector<64x1xf32>
      %c0_27 = arith.constant 0 : index
      %c0_28 = arith.constant 0 : index
      %37 = vector.load %arg9[%c0_27, %c0_28] : memref<64x1xf32, #tpu.memory_space<vmem>>, vector<64x1xf32>
      tpu.vector_store %arg9[%c0_27, %c0_28], %36 {strides = array<i32>} : memref<64x1xf32, #tpu.memory_space<vmem>>, vector<64x1xf32>,
      %cst_29 = arith.constant 0.000000e+00 : f32
      %38 = vector.broadcast %cst_29 : f32 to vector<64x1xf32>
      %c0_30 = arith.constant 0 : index
      %c0_31 = arith.constant 0 : index
      %39 = vector.load %arg10[%c0_30, %c0_31] : memref<64x1xf32, #tpu.memory_space<vmem>>, vector<64x1xf32>
      tpu.vector_store %arg10[%c0_30, %c0_31], %38 {strides = array<i32>} : memref<64x1xf32, #tpu.memory_space<vmem>>, vector<64x1xf32>,
      %cst_32 = arith.constant 0.000000e+00 : f32
      %40 = vector.broadcast %cst_32 : f32 to vector<64x16xf32>
      %c0_33 = arith.constant 0 : index
      %c0_34 = arith.constant 0 : index
      %41 = vector.load %arg11[%c0_33, %c0_34] : memref<64x16xf32, #tpu.memory_space<vmem>>, vector<64x16xf32>
      tpu.vector_store %arg11[%c0_33, %c0_34], %40 {strides = array<i32>} : memref<64x16xf32, #tpu.memory_space<vmem>>, vector<64x16xf32>,
    } else {
    }
    %c0 = arith.constant 0 : index
    %c0_1 = arith.constant 0 : index
    %c0_2 = arith.constant 0 : index
    %3 = vector.load %arg4[%c0, %c0_1, %c0_2] : memref<1x64x2xbf16, #tpu.memory_space<vmem>>, vector<1x64x2xbf16>
    %4 = vector.shape_cast %3 : vector<1x64x2xbf16> to vector<64x2xbf16>
    %c0_3 = arith.constant 0 : index
    %c0_4 = arith.constant 0 : index
    %c0_5 = arith.constant 0 : index
    %5 = vector.load %arg5[%c0_3, %c0_4, %c0_5] : memref<1x2x64xbf16, #tpu.memory_space<vmem>>, vector<1x2x64xbf16>
    %6 = vector.shape_cast %5 : vector<1x2x64xbf16> to vector<2x64xbf16>
    %cst = arith.constant dense<0.000000e+00> : vector<64x64xf32>
    %7 = tpu.matmul %4, %6, %cst {dimension_numbers = #tpu.dot_dimension_numbers<[1], [0], [0], [1], [0, 0, 1, 1], [], []>} : vector<64x2xbf16>, vector<2x64xbf16>, vector<64x64xf32> -> vector<64x64xf32>
    %c0_6 = arith.constant 0 : index
    %c0_7 = arith.constant 0 : index
    %8 = vector.load %arg9[%c0_6, %c0_7] : memref<64x1xf32, #tpu.memory_space<vmem>>, vector<64x1xf32>
    %cst_8 = arith.constant dense<0xFF800000> : vector<64xf32>
    %9 = vector.multi_reduction <maximumf>, %7, %cst_8 [1] : vector<64x64xf32> to vector<64xf32>
    %10 = vector.shape_cast %9 : vector<64xf32> to vector<64x1xf32>
    %11 = arith.maximumf %8, %10 : vector<64x1xf32>
    %12 = arith.subf %8, %11 : vector<64x1xf32>
    %13 = math.exp %12 : vector<64x1xf32>
    %14 = vector.broadcast %11 : vector<64x1xf32> to vector<64x64xf32>
    %15 = arith.subf %7, %14 : vector<64x64xf32>
    %16 = math.exp %15 : vector<64x64xf32>
    %c0_9 = arith.constant 0 : index
    %c0_10 = arith.constant 0 : index
    %17 = vector.load %arg10[%c0_9, %c0_10] : memref<64x1xf32, #tpu.memory_space<vmem>>, vector<64x1xf32>
    %18 = arith.mulf %13, %17 : vector<64x1xf32>
    %cst_11 = arith.constant dense<0.000000e+00> : vector<64xf32>
    %19 = vector.multi_reduction <add>, %16, %cst_11 [1] : vector<64x64xf32> to vector<64xf32>
    %20 = vector.shape_cast %19 : vector<64xf32> to vector<64x1xf32>
    %21 = arith.addf %18, %20 : vector<64x1xf32>
    %c0_12 = arith.constant 0 : index
    %c0_13 = arith.constant 0 : index
    %22 = vector.load %arg10[%c0_12, %c0_13] : memref<64x1xf32, #tpu.memory_space<vmem>>, vector<64x1xf32>
    tpu.vector_store %arg10[%c0_12, %c0_13], %21 {strides = array<i32>} : memref<64x1xf32, #tpu.memory_space<vmem>>, vector<64x1xf32>,
    %c0_14 = arith.constant 0 : index
    %c0_15 = arith.constant 0 : index
    %23 = vector.load %arg11[%c0_14, %c0_15] : memref<64x16xf32, #tpu.memory_space<vmem>>, vector<64x16xf32>
    %24 = vector.broadcast %13 : vector<64x1xf32> to vector<64x16xf32>
    %25 = arith.mulf %24, %23 : vector<64x16xf32>
    %26 = arith.truncf %16 : vector<64x64xf32> to vector<64x64xbf16>
    %c0_16 = arith.constant 0 : index
    %c0_17 = arith.constant 0 : index
    %c0_18 = arith.constant 0 : index
    %27 = vector.load %arg6[%c0_16, %c0_17, %c0_18] : memref<1x64x16xbf16, #tpu.memory_space<vmem>>, vector<1x64x16xbf16>
    %28 = vector.shape_cast %27 : vector<1x64x16xbf16> to vector<64x16xbf16>
    %cst_19 = arith.constant dense<0.000000e+00> : vector<64x16xf32>
    %29 = tpu.matmul %26, %28, %cst_19 {dimension_numbers = #tpu.dot_dimension_numbers<[1], [0], [0], [1], [0, 0, 1, 1], [], []>} : vector<64x64xbf16>, vector<64x16xbf16>, vector<64x16xf32> -> vector<64x16xf32>
    %30 = arith.addf %25, %29 : vector<64x16xf32>
    %c0_20 = arith.constant 0 : index
    %c0_21 = arith.constant 0 : index
    %31 = vector.load %arg11[%c0_20, %c0_21] : memref<64x16xf32, #tpu.memory_space<vmem>>, vector<64x16xf32>
    tpu.vector_store %arg11[%c0_20, %c0_21], %30 {strides = array<i32>} : memref<64x16xf32, #tpu.memory_space<vmem>>, vector<64x16xf32>,
    %c0_22 = arith.constant 0 : index
    %c0_23 = arith.constant 0 : index
    %32 = vector.load %arg9[%c0_22, %c0_23] : memref<64x1xf32, #tpu.memory_space<vmem>>, vector<64x1xf32>
    tpu.vector_store %arg9[%c0_22, %c0_23], %11 {strides = array<i32>} : memref<64x1xf32, #tpu.memory_space<vmem>>, vector<64x1xf32>,
    %c0_i32_24 = arith.constant 0 : i32
    %33 = arith.cmpi eq, %arg2, %c0_i32_24 : i32
    %34 = arith.extui %33 : i1 to i32
    %c0_i32_25 = arith.constant 0 : i32
    %35 = arith.cmpi ne, %34, %c0_i32_25 : i32
    scf.if %35 {
      %c0_26 = arith.constant 0 : index
      %c0_27 = arith.constant 0 : index
      %36 = vector.load %arg10[%c0_26, %c0_27] : memref<64x1xf32, #tpu.memory_space<vmem>>, vector<64x1xf32>
      %37 = tpu.reciprocal %36 {approx = true} : vector<64x1xf32> -> vector<64x1xf32>
      %c0_28 = arith.constant 0 : index
      %c0_29 = arith.constant 0 : index
      %38 = memref.load %arg3[%c0_28, %c0_29] : memref<1x1xf32, #tpu.memory_space<smem>>
      %c0_30 = arith.constant 0 : index
      %c0_31 = arith.constant 0 : index
      %39 = vector.load %arg11[%c0_30, %c0_31] : memref<64x16xf32, #tpu.memory_space<vmem>>, vector<64x16xf32>
      %40 = vector.broadcast %38 : f32 to vector<64x16xf32>
      %41 = arith.mulf %40, %39 : vector<64x16xf32>
      %42 = vector.broadcast %37 : vector<64x1xf32> to vector<64x16xf32>
      %43 = arith.mulf %41, %42 : vector<64x16xf32>
      %c0_32 = arith.constant 0 : index
      %c0_33 = arith.constant 0 : index
      %c0_34 = arith.constant 0 : index
      %44 = vector.load %arg7[%c0_32, %c0_33, %c0_34] : memref<1x64x16xbf16, #tpu.memory_space<vmem>>, vector<1x64x16xbf16>
      %45 = vector.shape_cast %44 : vector<1x64x16xbf16> to vector<64x16xbf16>
      %46 = arith.extf %45 : vector<64x16xbf16> to vector<64x16xf32>
      %47 = arith.addf %43, %46 : vector<64x16xf32>
      %48 = arith.truncf %47 : vector<64x16xf32> to vector<64x16xbf16>
      %c0_35 = arith.constant 0 : index
      %c0_36 = arith.constant 0 : index
      %c0_37 = arith.constant 0 : index
      %49 = vector.load %arg8[%c0_35, %c0_36, %c0_37] : memref<1x64x16xbf16, #tpu.memory_space<vmem>>, vector<1x64x16xbf16>
      %50 = vector.shape_cast %49 : vector<1x64x16xbf16> to vector<64x16xbf16>
      %51 = vector.shape_cast %48 : vector<64x16xbf16> to vector<1x64x16xbf16>
      tpu.vector_store %arg8[%c0_35, %c0_36, %c0_37], %51 {strides = array<i32>} : memref<1x64x16xbf16, #tpu.memory_space<vmem>>, vector<1x64x16xbf16>,
    } else {
    }
    return
  }
  func.func @transform_0(%arg0: i32, %arg1: i32, %arg2: i32) -> (i32, i32) {
    %c0_i32 = arith.constant 0 : i32
    %c0_i32_0 = arith.constant 0 : i32
    %c0_i32_1 = arith.constant 0 : i32
    return %c0_i32, %c0_i32_0 : i32, i32
  }
  func.func @transform_1(%arg0: i32, %arg1: i32, %arg2: i32) -> (i32, i32, i32) {
    %c0_i32 = arith.constant 0 : i32
    %c0_i32_0 = arith.constant 0 : i32
    return %arg0, %arg1, %c0_i32 : i32, i32, i32
  }
  func.func @transform_2(%arg0: i32, %arg1: i32, %arg2: i32) -> (i32, i32, i32) {
    %c0_i32 = arith.constant 0 : i32
    %c0_i32_0 = arith.constant 0 : i32
    return %arg0, %c0_i32, %arg2 : i32, i32, i32
  }
  func.func @transform_3(%arg0: i32, %arg1: i32, %arg2: i32) -> (i32, i32, i32) {
    %c0_i32 = arith.constant 0 : i32
    %c0_i32_0 = arith.constant 0 : i32
    return %arg0, %arg2, %c0_i32 : i32, i32, i32
  }
  func.func @transform_4(%arg0: i32, %arg1: i32, %arg2: i32) -> (i32, i32, i32) {
    %c0_i32 = arith.constant 0 : i32
    %c0_i32_0 = arith.constant 0 : i32
    return %arg0, %arg1, %c0_i32 : i32, i32, i32
  }
  func.func @transform_5(%arg0: i32, %arg1: i32, %arg2: i32) -> (i32, i32, i32) {
    %c0_i32 = arith.constant 0 : i32
    %c0_i32_0 = arith.constant 0 : i32
    return %arg0, %arg1, %c0_i32 : i32, i32, i32
  }
}

module attributes {stable_mosaic.version = 11 : i64} {
  func.func @_gemm_kernel(%arg0: i32, %arg1: i32, %arg2: memref<128x128xbf16, #tpu.memory_space<vmem>>, %arg3: memref<128x128xbf16, #tpu.memory_space<vmem>>, %arg4: memref<128x128xbf16, #tpu.memory_space<vmem>>, %arg5: memref<1x128xf32, #tpu.memory_space<vmem>>, %arg6: memref<1x128xf32, #tpu.memory_space<vmem>>, %arg7: memref<128x128xf32, #tpu.memory_space<vmem>>, %arg8: memref<128x128xf32, #tpu.memory_space<vmem>>) attributes {dimension_semantics = [#tpu.dimension_semantics<parallel>, #tpu.dimension_semantics<arbitrary>], iteration_bounds = array<i64: 1, 1>, scalar_prefetch = 0 : i64, scratch_operands = 1 : i64, tpu.core_type = #tpu.core_type<tc>, window_params = [{transform_indices = @transform_0, window_bounds = array<i64: 128, 128>}, {transform_indices = @transform_1, window_bounds = array<i64: 128, 128>}, {transform_indices = @transform_2, window_bounds = array<i64: 128, 128>}, {pipeline_mode = #tpu.pipeline_mode<synchronous>, transform_indices = @transform_3, window_bounds = array<i64: 1, 128>}, {pipeline_mode = #tpu.pipeline_mode<synchronous>, transform_indices = @transform_4, window_bounds = array<i64: 1, 128>}, {transform_indices = @transform_5, window_bounds = array<i64: 128, 128>}]} {
    %c0_i32 = arith.constant 0 : i32
    %0 = arith.cmpi eq, %arg1, %c0_i32 : i32
    %1 = arith.extui %0 : i1 to i32
    %c0_i32_0 = arith.constant 0 : i32
    %2 = arith.cmpi ne, %1, %c0_i32_0 : i32
    scf.if %2 {
      %cst_12 = arith.constant 0.000000e+00 : f32
      %14 = vector.broadcast %cst_12 : f32 to vector<128x128xf32>
      %c0_13 = arith.constant 0 : index
      %c0_14 = arith.constant 0 : index
      %15 = vector.load %arg8[%c0_13, %c0_14] : memref<128x128xf32, #tpu.memory_space<vmem>>, vector<128x128xf32>
      tpu.vector_store %arg8[%c0_13, %c0_14], %14 {strides = array<i32>} : memref<128x128xf32, #tpu.memory_space<vmem>>, vector<128x128xf32>,
    } else {
    }
    %c0 = arith.constant 0 : index
    %c0_1 = arith.constant 0 : index
    %3 = vector.load %arg2[%c0, %c0_1] : memref<128x128xbf16, #tpu.memory_space<vmem>>, vector<128x128xbf16>
    %c0_2 = arith.constant 0 : index
    %c0_3 = arith.constant 0 : index
    %4 = vector.load %arg3[%c0_2, %c0_3] : memref<128x128xbf16, #tpu.memory_space<vmem>>, vector<128x128xbf16>
    %5 = arith.addf %3, %4 : vector<128x128xbf16>
    %c0_4 = arith.constant 0 : index
    %c0_5 = arith.constant 0 : index
    %6 = vector.load %arg8[%c0_4, %c0_5] : memref<128x128xf32, #tpu.memory_space<vmem>>, vector<128x128xf32>
    %c0_6 = arith.constant 0 : index
    %c0_7 = arith.constant 0 : index
    %7 = vector.load %arg4[%c0_6, %c0_7] : memref<128x128xbf16, #tpu.memory_space<vmem>>, vector<128x128xbf16>
    %cst = arith.constant dense<0.000000e+00> : vector<128x128xf32>
    %8 = tpu.matmul %5, %7, %cst {dimension_numbers = #tpu.dot_dimension_numbers<[1], [0], [0], [1], [0, 0, 1, 1], [], []>} : vector<128x128xbf16>, vector<128x128xbf16>, vector<128x128xf32> -> vector<128x128xf32>
    %9 = arith.addf %6, %8 : vector<128x128xf32>
    %c0_8 = arith.constant 0 : index
    %c0_9 = arith.constant 0 : index
    %10 = vector.load %arg8[%c0_8, %c0_9] : memref<128x128xf32, #tpu.memory_space<vmem>>, vector<128x128xf32>
    tpu.vector_store %arg8[%c0_8, %c0_9], %9 {strides = array<i32>} : memref<128x128xf32, #tpu.memory_space<vmem>>, vector<128x128xf32>,
    %c0_i32_10 = arith.constant 0 : i32
    %11 = arith.cmpi eq, %arg1, %c0_i32_10 : i32
    %12 = arith.extui %11 : i1 to i32
    %c0_i32_11 = arith.constant 0 : i32
    %13 = arith.cmpi ne, %12, %c0_i32_11 : i32
    scf.if %13 {
      %c0_12 = arith.constant 0 : index
      %c0_13 = arith.constant 0 : index
      %14 = vector.load %arg8[%c0_12, %c0_13] : memref<128x128xf32, #tpu.memory_space<vmem>>, vector<128x128xf32>
      %c0_14 = arith.constant 0 : index
      %c0_15 = arith.constant 0 : index
      %15 = vector.load %arg5[%c0_14, %c0_15] : memref<1x128xf32, #tpu.memory_space<vmem>>, vector<1x128xf32>
      %16 = vector.broadcast %15 : vector<1x128xf32> to vector<128x128xf32>
      %17 = arith.mulf %14, %16 : vector<128x128xf32>
      %c0_16 = arith.constant 0 : index
      %c0_17 = arith.constant 0 : index
      %18 = vector.load %arg6[%c0_16, %c0_17] : memref<1x128xf32, #tpu.memory_space<vmem>>, vector<1x128xf32>
      %19 = vector.broadcast %18 : vector<1x128xf32> to vector<128x128xf32>
      %20 = arith.addf %17, %19 : vector<128x128xf32>
      %c0_18 = arith.constant 0 : index
      %c0_19 = arith.constant 0 : index
      %21 = vector.load %arg7[%c0_18, %c0_19] : memref<128x128xf32, #tpu.memory_space<vmem>>, vector<128x128xf32>
      tpu.vector_store %arg7[%c0_18, %c0_19], %20 {strides = array<i32>} : memref<128x128xf32, #tpu.memory_space<vmem>>, vector<128x128xf32>,
    } else {
    }
    return
  }
  func.func @transform_0(%arg0: i32, %arg1: i32) -> (i32, i32) {
    %c0_i32 = arith.constant 0 : i32
    return %arg0, %arg1 : i32, i32
  }
  func.func @transform_1(%arg0: i32, %arg1: i32) -> (i32, i32) {
    %c0_i32 = arith.constant 0 : i32
    return %arg0, %arg1 : i32, i32
  }
  func.func @transform_2(%arg0: i32, %arg1: i32) -> (i32, i32) {
    %c0_i32 = arith.constant 0 : i32
    %c0_i32_0 = arith.constant 0 : i32
    return %arg1, %c0_i32 : i32, i32
  }
  func.func @transform_3(%arg0: i32, %arg1: i32) -> (i32, i32) {
    %c0_i32 = arith.constant 0 : i32
    %c0_i32_0 = arith.constant 0 : i32
    %c0_i32_1 = arith.constant 0 : i32
    return %c0_i32, %c0_i32_0 : i32, i32
  }
  func.func @transform_4(%arg0: i32, %arg1: i32) -> (i32, i32) {
    %c0_i32 = arith.constant 0 : i32
    %c0_i32_0 = arith.constant 0 : i32
    %c0_i32_1 = arith.constant 0 : i32
    return %c0_i32, %c0_i32_0 : i32, i32
  }
  func.func @transform_5(%arg0: i32, %arg1: i32) -> (i32, i32) {
    %c0_i32 = arith.constant 0 : i32
    %c0_i32_0 = arith.constant 0 : i32
    return %arg0, %c0_i32 : i32, i32
  }
}

</mosaic_0001>

<llo_original>
// kernel: dap_block.12
$region0: #{dap_block.12}
  #allocation0 [shape = 'u32[]', space=smem, size = 0x4, offset = 0x4, fixed_abs, tag = 'smem constant byte address 0x4 - core index']
  #allocation1 [shape = 'u32[144,128]{1,0:T(1,128)}', space=vmem, size = 0x12000, scoped, tag = 'internal scratch']
  #allocation2 [shape = 'f32[16,16]{1,0:T(8,128)}', space=vmem, size = 0x2000, scoped, tag = 'scratch operand']
  %s0 = inlined_call_operand.vmem [shape: bf16[2,64,16], index: 0, kind: input, shape index: {}]
  %s1 = inlined_call_operand.vmem [shape: f32[2,16,16], index: 1, kind: output, shape index: {}]
  %s2 = sld [smem:[#allocation0]]
  $region45: #{dap_block.12} parent=0
    _
  %s4 = ssub.s32 1, %s2
  %s5 = scalar_select 0, %s4, %s2
  loop: start=0, step=1, limit=4
  $region2: #{dap_block.12} parent=0 // loop_pre_header
    _
  $region3: #{dap_block.12} parent=0 // loop_header
    %s7 = sphi 0, %s11
    %p8 = scmp.ge.s32.totalorder %s7, 4
    %s14 = sphi 0, %s26
    %s15 = sphi 0, %s22
    %s16 = sphi 0, %s14
    %s17 = sphi 0, %s15
    %s18 = sphi 0, %s16
    %s19 = sphi 0, %s17
    %s31 = sphi 0, %s33
    %s34 = sphi 0, %s31
    %s35 = sphi 0, %s34
    %s51 = sphi 0, %s35
    %s57 = sphi 0, %s59
    %s60 = sphi 0, %s57
    %s61 = sphi 0, %s60
    %s77 = sphi 0, %s61
  $region4: #{dap_block.12} parent=0 // loop_header_branch
    %10 = sbr.rel (%p8) target = $region8
  $region5: #{dap_block.12} parent=0 // loop_body
    %s12 = ssub.s32 %s7, 1
    %s13 = ssub.s32 %s7, 2
    %s20 = sadd.s32 1, %s15
    %p21 = scmp.ge.s32.totalorder %s20, 1
    %s22 = scalar_select %p21, 0, %s20
    %s23 = sadd.s32 1, %s14
    %s24 = scalar_select %p21, %s23, %s14
    %p25 = scmp.ge.s32.totalorder %s24, 2
    %s26 = scalar_select %p25, 0, %s24
    %s27 = ssub.s32 %s14, %s26
    %s28 = ssub.s32 %s15, %s22
    %s29 = sor.u32 %s27, %s28
    %p30 = scmp.eq.s32.totalorder %s29, 0
    %s32 = sadd.s32 %s31, 1
    %s33 = scalar_select %p30, %s31, %s32
    %p36 = pneg %p30
    %p37 = scmp.eq.s32.totalorder %s7, 1
    %p38 = por %p36, %p37
    %p39 = scmp.ne.s32.totalorder %s31, %s34
    %p40 = scmp.eq.s32.totalorder %s7, 0
    %p41 = por %p39, %p40
    %p42 = scmp.ne.s32.totalorder %s31, %s34
    %p43 = scmp.eq.s32.totalorder %s12, 1
    %p44 = por %p42, %p43
    %p45 = scmp.ne.s32.totalorder %s34, %s35
    %p46 = scmp.eq.s32.totalorder %s12, 0
    %p47 = por %p45, %p46
    %p48 = scmp.ne.s32.totalorder %s34, %s35
    %p49 = scmp.eq.s32.totalorder %s13, 1
    %p50 = por %p48, %p49
    %p52 = scmp.ne.s32.totalorder %s35, %s51
    %p53 = scmp.eq.s32.totalorder %s13, 0
    %p54 = por %p52, %p53
    %s55 = ssub.s32 %s14, %s26
    %p56 = scmp.eq.s32.totalorder %s55, 0
    %s58 = sadd.s32 %s57, 1
    %s59 = scalar_select %p56, %s57, %s58
    %p62 = pneg %p56
    %p63 = scmp.eq.s32.totalorder %s7, 1
    %p64 = por %p62, %p63
    %p65 = scmp.ne.s32.totalorder %s57, %s60
    %p66 = scmp.eq.s32.totalorder %s7, 0
    %p67 = por %p65, %p66
    %p68 = scmp.ne.s32.totalorder %s57, %s60
    %p69 = scmp.eq.s32.totalorder %s12, 1
    %p70 = por %p68, %p69
    %p71 = scmp.ne.s32.totalorder %s60, %s61
    %p72 = scmp.eq.s32.totalorder %s12, 0
    %p73 = por %p71, %p72
    %p74 = scmp.ne.s32.totalorder %s60, %s61
    %p75 = scmp.eq.s32.totalorder %s13, 1
    %p76 = por %p74, %p75
    %p78 = scmp.ne.s32.totalorder %s61, %s77
    %p79 = scmp.eq.s32.totalorder %s13, 0
    %p80 = por %p78, %p79
    %p81 = scmp.le.s32.totalorder 1, %s7
    %p82 = scmp.lt.s32.totalorder %s7, 3
    %p83 = pnand %p81, %p82
    %p84 = pneg %p83
    // Predicated region
    $region9: #{dap_block.12} parent=5 // pred_check
      _
    $region10: #{dap_block.12} parent=5 // pred_check_branch
      %86 = sbr.rel (%p83) target = $region12
    $region11: #{dap_block.12} parent=5 // pred_region
      %s87 = ssub.s32 %s7, 1
    $region12: #{dap_block.12} parent=5 // pred_fallthru
      _
    %p88 = scmp.lt.s32.totalorder %s7, 2
    // Predicated region
    $region13: #{dap_block.12} parent=5 // pred_check
      %p89 = pneg %p88
    $region14: #{dap_block.12} parent=5 // pred_check_branch
      %91 = sbr.rel (%p89) target = $region16
    $region15: #{dap_block.12} parent=5 // pred_region
      // Predicated region
      $region17: #{dap_block.12} parent=15 // pred_check
        %p92 = pneg %p41
      $region18: #{dap_block.12} parent=15 // pred_check_branch
        %94 = sbr.rel (%p92) target = $region20
      $region19: #{dap_block.12} parent=15 // pred_region
        %s95 = smul.u32 8, %s15
        %p96 = scmp.lt.s32.totalorder %s14, 1
        %s97 = scalar_select %p96, %s14, 1
        %p98 = scmp.lt.s32.totalorder %s95, 7
        %s99 = scalar_select %p98, %s95, 7
        %s100 = smul.addr %s97, 8
        %s101 = sadd.s32 %s99, %s100
        %s102 = smul.addr %s101, 4
        %s103 = scalar_lea.vmem %s0, %s102
        %s104 = smul.u32 8, %s15
      $region20: #{dap_block.12} parent=15 // pred_fallthru
        _
    $region16: #{dap_block.12} parent=5 // pred_fallthru
      _
    %p105 = scmp.le.s32.totalorder 1, %s7
    %p106 = scmp.lt.s32.totalorder %s7, 3
    %p107 = pnand %p105, %p106
    %p108 = pneg %p107
    // Predicated region
    $region21: #{dap_block.12} parent=5 // pred_check
      _
    $region22: #{dap_block.12} parent=5 // pred_check_branch
      %110 = sbr.rel (%p107) target = $region24
    $region23: #{dap_block.12} parent=5 // pred_region
      %s111 = ssub.s32 %s7, 1
      %s112 = smul.u32 8, %s17
      %p113 = scmp.lt.s32.totalorder %s16, 1
      %s114 = scalar_select %p113, %s16, 1
      %p115 = scmp.lt.s32.totalorder %s112, 7
      %s116 = scalar_select %p115, %s112, 7
      %s117 = smul.addr %s114, 8
      %s118 = sadd.s32 %s116, %s117
      %s119 = smul.addr %s118, 4
      %s120 = scalar_lea.vmem %s0, %s119
      %p121 = pneg %p47
      %p122 = pneg %p44
      %p123 = pneg %p73
      %p124 = pneg %p70
      %p125 = scmp.lt.s32.totalorder %s16, 1
      %s126 = scalar_select %p125, %s16, 1
      %s127 = smul.addr %s126, 2
      %s128 = smul.addr %s127, 8
      %s129 = scalar_lea.vmem %s1, %s128
      %s130 = smul.u32 8, %s17
      %p131 = scmp.lt.s32.totalorder %s16, 1
      %s132 = scalar_select %p131, %s16, 1
      %p133 = scmp.lt.s32.totalorder %s130, 7
      %s134 = scalar_select %p133, %s130, 7
      %s135 = smul.addr %s132, 8
      %s136 = sadd.s32 %s134, %s135
      %s137 = smul.addr %s136, 4
      %s138 = scalar_lea.vmem %s0, %s137
      %s139 = smul.u32 8, %s17
      %p140 = scmp.lt.s32.totalorder %s16, 1
      %s141 = scalar_select %p140, %s16, 1
      %s142 = smul.addr %s141, 2
      %s143 = smul.addr %s142, 8
      %s144 = scalar_lea.vmem %s1, %s143
      %p146 = scmp.eq.s32.totalorder %s17, 0
      // Predicated region
      $region25: #{dap_block.12} parent=23 // pred_check
        %p147 = pneg %p146
      $region26: #{dap_block.12} parent=23 // pred_check_branch
        %149 = sbr.rel (%p147) target = $region28
      $region27: #{dap_block.12} parent=23 // pred_region
        %vm150 = vcmask 130048
        %151 = vst.msk [vmem:[#allocation2] sm:$0xff] %vm150, 0.0
        %152 = vst.msk [vmem:[#allocation2 + $0x8] sm:$0xff] %vm150, 0.0
      $region28: #{dap_block.12} parent=23 // pred_fallthru
        _
      %v153 = vld [vmem:[%s138] sm:$0xf]
      %v154 = vld [vmem:[%s138 + $0x4] sm:$0xf]
      %v155 = vld [vmem:[%s138 + $0x8] sm:$0xf]
      %v156 = vld [vmem:[%s138 + $0xc] sm:$0xf]
      %v157 = vld [vmem:[%s138 + $0x10] sm:$0xf]
      %v158 = vld [vmem:[%s138 + $0x14] sm:$0xf]
      %v159 = vld [vmem:[%s138 + $0x18] sm:$0xf]
      %v160 = vld [vmem:[%s138 + $0x1c] sm:$0xf]
      %v161 = vunpack.c.l.bf16 %v153
      %v162 = vunpack.c.l.bf16 %v154
      %v163 = vunpack.c.l.bf16 %v155
      %v164 = vunpack.c.l.bf16 %v156
      %v165 = vunpack.c.l.bf16 %v157
      %v166 = vunpack.c.l.bf16 %v158
      %v167 = vunpack.c.l.bf16 %v159
      %v168 = vunpack.c.l.bf16 %v160
      %169 = vxpose.xlu0.b32.start [1/16] %v161, 128
      %170 = vxpose.xlu0.b32.cont [2/16] %v162, 128
      %171 = vxpose.xlu0.b32.cont [3/16] %v163, 128
      %172 = vxpose.xlu0.b32.cont [4/16] %v164, 128
      %173 = vxpose.xlu0.b32.cont [5/16] %v165, 128
      %174 = vxpose.xlu0.b32.cont [6/16] %v166, 128
      %175 = vxpose.xlu0.b32.cont [7/16] %v167, 128
      %176 = vxpose.xlu0.b32.cont [8/16] %v168, 128
      %177 = vxpose.xlu0.b32.cont [9/16] 0.0, 128
      %178 = vxpose.xlu0.b32.cont [10/16] 0.0, 128
      %179 = vxpose.xlu0.b32.cont [11/16] 0.0, 128
      %180 = vxpose.xlu0.b32.cont [12/16] 0.0, 128
      %181 = vxpose.xlu0.b32.cont [13/16] 0.0, 128
      %182 = vxpose.xlu0.b32.cont [14/16] 0.0, 128
      %183 = vxpose.xlu0.b32.cont [15/16] 0.0, 128
      %184 = vxpose.xlu0.b32.end [16/16] 0.0, 128
      %v185 = vpop.trf.xlu0
      %v186 = vpop.trf.xlu0
      %v187 = vpop.trf.xlu0
      %v188 = vpop.trf.xlu0
      %v189 = vpop.trf.xlu0
      %v190 = vpop.trf.xlu0
      %v191 = vpop.trf.xlu0
      %v192 = vpop.trf.xlu0
      %v193 = vpop.trf.xlu0
      %v194 = vpop.trf.xlu0
      %v195 = vpop.trf.xlu0
      %v196 = vpop.trf.xlu0
      %v197 = vpop.trf.xlu0
      %v198 = vpop.trf.xlu0
      %v199 = vpop.trf.xlu0
      %v200 = vpop.trf.xlu0
      %v201 = vpack.c.bf16 %v186, %v185
      %v202 = vld [vmem:[#allocation2] sm:$0xff]
      %v203 = vld [vmem:[#allocation2 + $0x8] sm:$0xff]
      %v212 = vunpack.c.l.b16 %v153
      %v213 = vunpack.c.l.b16 %v154
      %v214 = vunpack.c.l.b16 %v155
      %v215 = vunpack.c.l.b16 %v156
      %v216 = vunpack.c.l.b16 %v157
      %v217 = vunpack.c.l.b16 %v158
      %v218 = vunpack.c.l.b16 %v159
      %v219 = vunpack.c.l.b16 %v160
      %v220 = vpack.c.b16 %v213, %v212
      %v221 = vpack.c.b16 %v215, %v214
      %v222 = vpack.c.b16 %v217, %v216
      %v223 = vpack.c.b16 %v219, %v218
      %vm228 = vcmask 523264
      %v230 = vsel %vm228, %v201, 0
      %232 = vmatprep.subr.bf16.mxu0 0
      %233 = vmatpush1.bf16.msra.mxu0 0
      %234 = vmatprep.subr.bf16.mxu0 0
      %235 = vmatpush1.bf16.msra.mxu0 0
      %236 = vmatprep.subr.bf16.mxu0 0
      %237 = vmatpush1.bf16.msra.mxu0 0
      %238 = vmatprep.subr.bf16.mxu0 0
      %239 = vmatpush1.bf16.msra.mxu0 0
      %240 = vmatprep.subr.bf16.mxu0 0
      %241 = vmatpush1.bf16.msra.mxu0 %v223
      %242 = vmatprep.subr.bf16.mxu0 0
      %243 = vmatpush1.bf16.msra.mxu0 %v222
      %244 = vmatprep.subr.bf16.mxu0 0
      %245 = vmatpush1.bf16.msra.mxu0 %v221
      %246 = vmatprep.subr.bf16.mxu0 0
      %247 = vmatpush1.bf16.msra.mxu0 %v220
      %248 = vmatprep.subr.bf16.mxu0 0
      %249 = vmatpush2.bf16.msra.mxu0 0
      %250 = vmatprep.subr.bf16.mxu0 0
      %251 = vmatpush2.bf16.msra.mxu0 0
      %252 = vmatprep.subr.bf16.mxu0 0
      %253 = vmatpush2.bf16.msra.mxu0 0
      %254 = vmatprep.subr.bf16.mxu0 0
      %255 = vmatpush2.bf16.msra.mxu0 0
      %256 = vmatprep.subr.bf16.mxu0 0
      %257 = vmatpush2.bf16.msra.mxu0 0
      %258 = vmatprep.subr.bf16.mxu0 0
      %259 = vmatpush2.bf16.msra.mxu0 0
      %260 = vmatprep.subr.bf16.mxu0 0
      %261 = vmatpush2.bf16.msra.mxu0 0
      %262 = vmatprep.subr.bf16.mxu0 0
      %263 = vmatpush2.bf16.msra.mxu0 0
      %264 = vmatprep.mubr.bf16.mxu0 0
      %265 = vmatmul.mubr.bf16.gmra.mxu0 %v230
      %v266 = vpop.f32.mrf.mxu0
      %v267 = vadd.f32 0.0, %v266
      %v268 = vpop.f32.mrf.mxu0
      %v269 = vpop.f32.mrf.mxu0
      %v270 = vadd.f32 0.0, %v269
      %v271 = vpop.f32.mrf.mxu0
      %272 = vdwg.mxu0
      %v273 = vadd.f32 %v202, %v267
      %v274 = vadd.f32 %v203, %v270
      %vm275 = vcmask 130048
      %276 = vst.msk [vmem:[#allocation2] sm:$0xff] %vm275, %v273
      %277 = vst.msk [vmem:[#allocation2 + $0x8] sm:$0xff] %vm275, %v274
      // Predicated region
      $region29: #{dap_block.12} parent=23 // pred_check
        %p278 = pneg %p146
      $region30: #{dap_block.12} parent=23 // pred_check_branch
        %280 = sbr.rel (%p278) target = $region32
      $region31: #{dap_block.12} parent=23 // pred_region
        %v281 = vld [vmem:[#allocation2] sm:$0xff]
        %v282 = vld [vmem:[#allocation2 + $0x8] sm:$0xff]
        %283 = vst.msk [vmem:[%s144] sm:$0xff] %vm275, %v281
        %284 = vst.msk [vmem:[%s144 + $0x8] sm:$0xff] %vm275, %v282
      $region32: #{dap_block.12} parent=23 // pred_fallthru
        _
      %p285 = scmp.lt.s32.totalorder %s16, 1
      %s286 = scalar_select %p285, %s16, 1
      %s287 = smul.addr %s286, 2
      %s288 = smul.addr %s287, 8
      %s289 = scalar_lea.vmem %s1, %s288
      // Predicated region
      $region33: #{dap_block.12} parent=23 // pred_check
        %p290 = pneg %p70
      $region34: #{dap_block.12} parent=23 // pred_check_branch
        %292 = sbr.rel (%p290) target = $region36
      $region35: #{dap_block.12} parent=23 // pred_region
        _
      $region36: #{dap_block.12} parent=23 // pred_fallthru
        _
    $region24: #{dap_block.12} parent=5 // pred_fallthru
      _
    %p293 = scmp.le.s32.totalorder 2, %s7
    // Predicated region
    $region37: #{dap_block.12} parent=5 // pred_check
      %p294 = pneg %p293
    $region38: #{dap_block.12} parent=5 // pred_check_branch
      %296 = sbr.rel (%p294) target = $region40
    $region39: #{dap_block.12} parent=5 // pred_region
      %s297 = ssub.s32 %s7, 2
      // Predicated region
      $region41: #{dap_block.12} parent=39 // pred_check
        %p298 = pneg %p76
      $region42: #{dap_block.12} parent=39 // pred_check_branch
        %300 = sbr.rel (%p298) target = $region44
      $region43: #{dap_block.12} parent=39 // pred_region
        %p301 = scmp.lt.s32.totalorder %s18, 1
        %s302 = scalar_select %p301, %s18, 1
        %s303 = smul.addr %s302, 2
        %s304 = smul.addr %s303, 8
        %s305 = scalar_lea.vmem %s1, %s304
      $region44: #{dap_block.12} parent=39 // pred_fallthru
        _
    $region40: #{dap_block.12} parent=5 // pred_fallthru
      _
  $region6: #{dap_block.12} parent=0 // loop_footer
    %s11 = sadd.s32 1, %s7
  $region7: #{dap_block.12} parent=0 // loop_footer_branch
    %6 = sbr.rel target = $region3
  $region8: #{dap_block.12} parent=0 // loop_exit
    _

// kernel: dap_block.8
$region0: #{dap_block.8}
  #allocation0 [shape = 'u32[]', space=smem, size = 0x4, offset = 0x4, fixed_abs, tag = 'smem constant byte address 0x4 - core index']
  #allocation1 [shape = 'u32[144,128]{1,0:T(1,128)}', space=vmem, size = 0x12000, scoped, tag = 'internal scratch']
  #allocation2 [shape = 'f32[128,128]{1,0:T(8,128)}', space=vmem, size = 0x10000, scoped, tag = 'scratch operand']
  %s0 = inlined_call_operand.vmem [shape: bf16[128,512], index: 0, kind: input, shape index: {}]
  %s1 = inlined_call_operand.vmem [shape: bf16[512,128], index: 1, kind: input, shape index: {}]
  %s2 = inlined_call_operand.vmem [shape: f32[1,128], index: 2, kind: input, shape index: {}]
  %s3 = inlined_call_operand.vmem [shape: f32[1,128], index: 3, kind: input, shape index: {}]
  %s4 = inlined_call_operand.vmem [shape: bf16[128,128], index: 4, kind: output, shape index: {}]
  %s5 = sld [smem:[#allocation0]]
  $region34: #{dap_block.8} parent=0
    _
  %s7 = ssub.s32 1, %s5
  %s8 = scalar_select 0, %s7, %s5
  // Predicated region
  $region2: #{dap_block.8} parent=0 // pred_check
    _
  $region3: #{dap_block.8} parent=0 // pred_check_branch
    %10 = sbr.rel (0) target = $region5
  $region4: #{dap_block.8} parent=0 // pred_region
    _
  $region5: #{dap_block.8} parent=0 // pred_fallthru
    _
  // Predicated region
  $region6: #{dap_block.8} parent=0 // pred_check
    _
  $region7: #{dap_block.8} parent=0 // pred_check_branch
    %12 = sbr.rel (0) target = $region9
  $region8: #{dap_block.8} parent=0 // pred_region
    _
  $region9: #{dap_block.8} parent=0 // pred_fallthru
    _
  // Predicated region
  $region10: #{dap_block.8} parent=0 // pred_check
    _
  $region11: #{dap_block.8} parent=0 // pred_check_branch
    %14 = sbr.rel (0) target = $region13
  $region12: #{dap_block.8} parent=0 // pred_region
    _
  $region13: #{dap_block.8} parent=0 // pred_fallthru
    _
  // Predicated region
  $region14: #{dap_block.8} parent=0 // pred_check
    _
  $region15: #{dap_block.8} parent=0 // pred_check_branch
    %16 = sbr.rel (0) target = $region17
  $region16: #{dap_block.8} parent=0 // pred_region
    _
  $region17: #{dap_block.8} parent=0 // pred_fallthru
    _
  %p18 = scmp.eq.s32.totalorder 0, 0
  // Predicated region
  $region18: #{dap_block.8} parent=0 // pred_check
    %p19 = pneg %p18
  $region19: #{dap_block.8} parent=0 // pred_check_branch
    %21 = sbr.rel (%p19) target = $region21
  $region20: #{dap_block.8} parent=0 // pred_region
    %22 = vst [vmem:[#allocation2] sm:$0xff] 0.0
    %23 = vst [vmem:[#allocation2 + $0x8] sm:$0xff] 0.0
    %24 = vst [vmem:[#allocation2 + $0x10] sm:$0xff] 0.0
    %25 = vst [vmem:[#allocation2 + $0x18] sm:$0xff] 0.0
    %26 = vst [vmem:[#allocation2 + $0x20] sm:$0xff] 0.0
    %27 = vst [vmem:[#allocation2 + $0x28] sm:$0xff] 0.0
    %28 = vst [vmem:[#allocation2 + $0x30] sm:$0xff] 0.0
    %29 = vst [vmem:[#allocation2 + $0x38] sm:$0xff] 0.0
    %30 = vst [vmem:[#allocation2 + $0x40] sm:$0xff] 0.0
    %31 = vst [vmem:[#allocation2 + $0x48] sm:$0xff] 0.0
    %32 = vst [vmem:[#allocation2 + $0x50] sm:$0xff] 0.0
    %33 = vst [vmem:[#allocation2 + $0x58] sm:$0xff] 0.0
    %34 = vst [vmem:[#allocation2 + $0x60] sm:$0xff] 0.0
    %35 = vst [vmem:[#allocation2 + $0x68] sm:$0xff] 0.0
    %36 = vst [vmem:[#allocation2 + $0x70] sm:$0xff] 0.0
    %37 = vst [vmem:[#allocation2 + $0x78] sm:$0xff] 0.0
  $region21: #{dap_block.8} parent=0 // pred_fallthru
    _
  %v38 = vld [vmem:[%s0] sm:$0xff]
  %v39 = vld [vmem:[%s0 + $0x8] sm:$0xff]
  %v40 = vld [vmem:[%s0 + $0x10] sm:$0xff]
  %v41 = vld [vmem:[%s0 + $0x18] sm:$0xff]
  %v42 = vld [vmem:[%s0 + $0x20] sm:$0xff]
  %v43 = vld [vmem:[%s0 + $0x28] sm:$0xff]
  %v44 = vld [vmem:[%s0 + $0x30] sm:$0xff]
  %v45 = vld [vmem:[%s0 + $0x38] sm:$0xff]
  %v46 = vld [vmem:[%s0 + $0x40] sm:$0xff]
  %v47 = vld [vmem:[%s0 + $0x48] sm:$0xff]
  %v48 = vld [vmem:[%s0 + $0x50] sm:$0xff]
  %v49 = vld [vmem:[%s0 + $0x58] sm:$0xff]
  %v50 = vld [vmem:[%s0 + $0x60] sm:$0xff]
  %v51 = vld [vmem:[%s0 + $0x68] sm:$0xff]
  %v52 = vld [vmem:[%s0 + $0x70] sm:$0xff]
  %v53 = vld [vmem:[%s0 + $0x78] sm:$0xff]
  %v54 = vld [vmem:[%s0 + $0x80] sm:$0xff]
  %v55 = vld [vmem:[%s0 + $0x88] sm:$0xff]
  %v56 = vld [vmem:[%s0 + $0x90] sm:$0xff]
  %v57 = vld [vmem:[%s0 + $0x98] sm:$0xff]
  %v58 = vld [vmem:[%s0 + $0xa0] sm:$0xff]
  %v59 = vld [vmem:[%s0 + $0xa8] sm:$0xff]
  %v60 = vld [vmem:[%s0 + $0xb0] sm:$0xff]
  %v61 = vld [vmem:[%s0 + $0xb8] sm:$0xff]
  %v62 = vld [vmem:[%s0 + $0xc0] sm:$0xff]
  %v63 = vld [vmem:[%s0 + $0xc8] sm:$0xff]
  %v64 = vld [vmem:[%s0 + $0xd0] sm:$0xff]
  %v65 = vld [vmem:[%s0 + $0xd8] sm:$0xff]
  %v66 = vld [vmem:[%s0 + $0xe0] sm:$0xff]
  %v67 = vld [vmem:[%s0 + $0xe8] sm:$0xff]
  %v68 = vld [vmem:[%s0 + $0xf0] sm:$0xff]
  %v69 = vld [vmem:[%s0 + $0xf8] sm:$0xff]
  %v70 = vld [vmem:[#allocation2] sm:$0xff]
  %v71 = vld [vmem:[#allocation2 + $0x8] sm:$0xff]
  %v72 = vld [vmem:[#allocation2 + $0x10] sm:$0xff]
  %v73 = vld [vmem:[#allocation2 + $0x18] sm:$0xff]
  %v74 = vld [vmem:[#allocation2 + $0x20] sm:$0xff]
  %v75 = vld [vmem:[#allocation2 + $0x28] sm:$0xff]
  %v76 = vld [vmem:[#allocation2 + $0x30] sm:$0xff]
  %v77 = vld [vmem:[#allocation2 + $0x38] sm:$0xff]
  %v78 = vld [vmem:[#allocation2 + $0x40] sm:$0xff]
  %v79 = vld [vmem:[#allocation2 + $0x48] sm:$0xff]
  %v80 = vld [vmem:[#allocation2 + $0x50] sm:$0xff]
  %v81 = vld [vmem:[#allocation2 + $0x58] sm:$0xff]
  %v82 = vld [vmem:[#allocation2 + $0x60] sm:$0xff]
  %v83 = vld [vmem:[#allocation2 + $0x68] sm:$0xff]
  %v84 = vld [vmem:[#allocation2 + $0x70] sm:$0xff]
  %v85 = vld [vmem:[#allocation2 + $0x78] sm:$0xff]
  %v86 = vld [vmem:[%s1] sm:$0xf]
  %v87 = vld [vmem:[%s1 + $0x4] sm:$0xf]
  %v88 = vld [vmem:[%s1 + $0x8] sm:$0xf]
  %v89 = vld [vmem:[%s1 + $0xc] sm:$0xf]
  %v90 = vld [vmem:[%s1 + $0x10] sm:$0xf]
  %v91 = vld [vmem:[%s1 + $0x14] sm:$0xf]
  %v92 = vld [vmem:[%s1 + $0x18] sm:$0xf]
  %v93 = vld [vmem:[%s1 + $0x1c] sm:$0xf]
  %v94 = vld [vmem:[%s1 + $0x20] sm:$0xf]
  %v95 = vld [vmem:[%s1 + $0x24] sm:$0xf]
  %v96 = vld [vmem:[%s1 + $0x28] sm:$0xf]
  %v97 = vld [vmem:[%s1 + $0x2c] sm:$0xf]
  %v98 = vld [vmem:[%s1 + $0x30] sm:$0xf]
  %v99 = vld [vmem:[%s1 + $0x34] sm:$0xf]
  %v100 = vld [vmem:[%s1 + $0x38] sm:$0xf]
  %v101 = vld [vmem:[%s1 + $0x3c] sm:$0xf]
  %v102 = vld [vmem:[%s1 + $0x40] sm:$0xf]
  %v103 = vld [vmem:[%s1 + $0x44] sm:$0xf]
  %v104 = vld [vmem:[%s1 + $0x48] sm:$0xf]
  %v105 = vld [vmem:[%s1 + $0x4c] sm:$0xf]
  %v106 = vld [vmem:[%s1 + $0x50] sm:$0xf]
  %v107 = vld [vmem:[%s1 + $0x54] sm:$0xf]
  %v108 = vld [vmem:[%s1 + $0x58] sm:$0xf]
  %v109 = vld [vmem:[%s1 + $0x5c] sm:$0xf]
  %v110 = vld [vmem:[%s1 + $0x60] sm:$0xf]
  %v111 = vld [vmem:[%s1 + $0x64] sm:$0xf]
  %v112 = vld [vmem:[%s1 + $0x68] sm:$0xf]
  %v113 = vld [vmem:[%s1 + $0x6c] sm:$0xf]
  %v114 = vld [vmem:[%s1 + $0x70] sm:$0xf]
  %v115 = vld [vmem:[%s1 + $0x74] sm:$0xf]
  %v116 = vld [vmem:[%s1 + $0x78] sm:$0xf]
  %v117 = vld [vmem:[%s1 + $0x7c] sm:$0xf]
  %v118 = vld [vmem:[%s1 + $0x80] sm:$0xf]
  %v119 = vld [vmem:[%s1 + $0x84] sm:$0xf]
  %v120 = vld [vmem:[%s1 + $0x88] sm:$0xf]
  %v121 = vld [vmem:[%s1 + $0x8c] sm:$0xf]
  %v122 = vld [vmem:[%s1 + $0x90] sm:$0xf]
  %v123 = vld [vmem:[%s1 + $0x94] sm:$0xf]
  %v124 = vld [vmem:[%s1 + $0x98] sm:$0xf]
  %v125 = vld [vmem:[%s1 + $0x9c] sm:$0xf]
  %v126 = vld [vmem:[%s1 + $0xa0] sm:$0xf]
  %v127 = vld [vmem:[%s1 + $0xa4] sm:$0xf]
  %v128 = vld [vmem:[%s1 + $0xa8] sm:$0xf]
  %v129 = vld [vmem:[%s1 + $0xac] sm:$0xf]
  %v130 = vld [vmem:[%s1 + $0xb0] sm:$0xf]
  %v131 = vld [vmem:[%s1 + $0xb4] sm:$0xf]
  %v132 = vld [vmem:[%s1 + $0xb8] sm:$0xf]
  %v133 = vld [vmem:[%s1 + $0xbc] sm:$0xf]
  %v134 = vld [vmem:[%s1 + $0xc0] sm:$0xf]
  %v135 = vld [vmem:[%s1 + $0xc4] sm:$0xf]
  %v136 = vld [vmem:[%s1 + $0xc8] sm:$0xf]
  %v137 = vld [vmem:[%s1 + $0xcc] sm:$0xf]
  %v138 = vld [vmem:[%s1 + $0xd0] sm:$0xf]
  %v139 = vld [vmem:[%s1 + $0xd4] sm:$0xf]
  %v140 = vld [vmem:[%s1 + $0xd8] sm:$0xf]
  %v141 = vld [vmem:[%s1 + $0xdc] sm:$0xf]
  %v142 = vld [vmem:[%s1 + $0xe0] sm:$0xf]
  %v143 = vld [vmem:[%s1 + $0xe4] sm:$0xf]
  %v144 = vld [vmem:[%s1 + $0xe8] sm:$0xf]
  %v145 = vld [vmem:[%s1 + $0xec] sm:$0xf]
  %v146 = vld [vmem:[%s1 + $0xf0] sm:$0xf]
  %v147 = vld [vmem:[%s1 + $0xf4] sm:$0xf]
  %v148 = vld [vmem:[%s1 + $0xf8] sm:$0xf]
  %v149 = vld [vmem:[%s1 + $0xfc] sm:$0xf]
  %v182 = vunpack.c.l.b16 %v38
  %v183 = vunpack.c.h.b16 %v38
  %v184 = vunpack.c.l.b16 %v39
  %v185 = vunpack.c.h.b16 %v39
  %v186 = vunpack.c.l.b16 %v40
  %v187 = vunpack.c.h.b16 %v40
  %v188 = vunpack.c.l.b16 %v41
  %v189 = vunpack.c.h.b16 %v41
  %v190 = vunpack.c.l.b16 %v42
  %v191 = vunpack.c.h.b16 %v42
  %v192 = vunpack.c.l.b16 %v43
  %v193 = vunpack.c.h.b16 %v43
  %v194 = vunpack.c.l.b16 %v44
  %v195 = vunpack.c.h.b16 %v44
  %v196 = vunpack.c.l.b16 %v45
  %v197 = vunpack.c.h.b16 %v45
  %v198 = vunpack.c.l.b16 %v46
  %v199 = vunpack.c.h.b16 %v46
  %v200 = vunpack.c.l.b16 %v47
  %v201 = vunpack.c.h.b16 %v47
  %v202 = vunpack.c.l.b16 %v48
  %v203 = vunpack.c.h.b16 %v48
  %v204 = vunpack.c.l.b16 %v49
  %v205 = vunpack.c.h.b16 %v49
  %v206 = vunpack.c.l.b16 %v50
  %v207 = vunpack.c.h.b16 %v50
  %v208 = vunpack.c.l.b16 %v51
  %v209 = vunpack.c.h.b16 %v51
  %v210 = vunpack.c.l.b16 %v52
  %v211 = vunpack.c.h.b16 %v52
  %v212 = vunpack.c.l.b16 %v53
  %v213 = vunpack.c.h.b16 %v53
  %v214 = vunpack.c.l.b16 %v54
  %v215 = vunpack.c.h.b16 %v54
  %v216 = vunpack.c.l.b16 %v55
  %v217 = vunpack.c.h.b16 %v55
  %v218 = vunpack.c.l.b16 %v56
  %v219 = vunpack.c.h.b16 %v56
  %v220 = vunpack.c.l.b16 %v57
  %v221 = vunpack.c.h.b16 %v57
  %v222 = vunpack.c.l.b16 %v58
  %v223 = vunpack.c.h.b16 %v58
  %v224 = vunpack.c.l.b16 %v59
  %v225 = vunpack.c.h.b16 %v59
  %v226 = vunpack.c.l.b16 %v60
  %v227 = vunpack.c.h.b16 %v60
  %v228 = vunpack.c.l.b16 %v61
  %v229 = vunpack.c.h.b16 %v61
  %v230 = vunpack.c.l.b16 %v62
  %v231 = vunpack.c.h.b16 %v62
  %v232 = vunpack.c.l.b16 %v63
  %v233 = vunpack.c.h.b16 %v63
  %v234 = vunpack.c.l.b16 %v64
  %v235 = vunpack.c.h.b16 %v64
  %v236 = vunpack.c.l.b16 %v65
  %v237 = vunpack.c.h.b16 %v65
  %v238 = vunpack.c.l.b16 %v66
  %v239 = vunpack.c.h.b16 %v66
  %v240 = vunpack.c.l.b16 %v67
  %v241 = vunpack.c.h.b16 %v67
  %v242 = vunpack.c.l.b16 %v68
  %v243 = vunpack.c.h.b16 %v68
  %v244 = vunpack.c.l.b16 %v69
  %v245 = vunpack.c.h.b16 %v69
  %v246 = vpack.c.b16 %v186, %v182
  %v247 = vpack.c.b16 %v187, %v183
  %v248 = vpack.c.b16 %v188, %v184
  %v249 = vpack.c.b16 %v189, %v185
  %v250 = vpack.c.b16 %v194, %v190
  %v251 = vpack.c.b16 %v195, %v191
  %v252 = vpack.c.b16 %v196, %v192
  %v253 = vpack.c.b16 %v197, %v193
  %v254 = vpack.c.b16 %v202, %v198
  %v255 = vpack.c.b16 %v203, %v199
  %v256 = vpack.c.b16 %v204, %v200
  %v257 = vpack.c.b16 %v205, %v201
  %v258 = vpack.c.b16 %v210, %v206
  %v259 = vpack.c.b16 %v211, %v207
  %v260 = vpack.c.b16 %v212, %v208
  %v261 = vpack.c.b16 %v213, %v209
  %v262 = vpack.c.b16 %v218, %v214
  %v263 = vpack.c.b16 %v219, %v215
  %v264 = vpack.c.b16 %v220, %v216
  %v265 = vpack.c.b16 %v221, %v217
  %v266 = vpack.c.b16 %v226, %v222
  %v267 = vpack.c.b16 %v227, %v223
  %v268 = vpack.c.b16 %v228, %v224
  %v269 = vpack.c.b16 %v229, %v225
  %v270 = vpack.c.b16 %v234, %v230
  %v271 = vpack.c.b16 %v235, %v231
  %v272 = vpack.c.b16 %v236, %v232
  %v273 = vpack.c.b16 %v237, %v233
  %v274 = vpack.c.b16 %v242, %v238
  %v275 = vpack.c.b16 %v243, %v239
  %v276 = vpack.c.b16 %v244, %v240
  %v277 = vpack.c.b16 %v245, %v241
  %v374 = vunpack.c.l.b16 %v86
  %v375 = vunpack.c.l.b16 %v87
  %v376 = vunpack.c.l.b16 %v88
  %v377 = vunpack.c.l.b16 %v89
  %v378 = vunpack.c.l.b16 %v90
  %v379 = vunpack.c.l.b16 %v91
  %v380 = vunpack.c.l.b16 %v92
  %v381 = vunpack.c.l.b16 %v93
  %v382 = vunpack.c.l.b16 %v94
  %v383 = vunpack.c.l.b16 %v95
  %v384 = vunpack.c.l.b16 %v96
  %v385 = vunpack.c.l.b16 %v97
  %v386 = vunpack.c.l.b16 %v98
  %v387 = vunpack.c.l.b16 %v99
  %v388 = vunpack.c.l.b16 %v100
  %v389 = vunpack.c.l.b16 %v101
  %v390 = vunpack.c.l.b16 %v102
  %v391 = vunpack.c.l.b16 %v103
  %v392 = vunpack.c.l.b16 %v104
  %v393 = vunpack.c.l.b16 %v105
  %v394 = vunpack.c.l.b16 %v106
  %v395 = vunpack.c.l.b16 %v107
  %v396 = vunpack.c.l.b16 %v108
  %v397 = vunpack.c.l.b16 %v109
  %v398 = vunpack.c.l.b16 %v110
  %v399 = vunpack.c.l.b16 %v111
  %v400 = vunpack.c.l.b16 %v112
  %v401 = vunpack.c.l.b16 %v113
  %v402 = vunpack.c.l.b16 %v114
  %v403 = vunpack.c.l.b16 %v115
  %v404 = vunpack.c.l.b16 %v116
  %v405 = vunpack.c.l.b16 %v117
  %v406 = vunpack.c.l.b16 %v118
  %v407 = vunpack.c.l.b16 %v119
  %v408 = vunpack.c.l.b16 %v120
  %v409 = vunpack.c.l.b16 %v121
  %v410 = vunpack.c.l.b16 %v122
  %v411 = vunpack.c.l.b16 %v123
  %v412 = vunpack.c.l.b16 %v124
  %v413 = vunpack.c.l.b16 %v125
  %v414 = vunpack.c.l.b16 %v126
  %v415 = vunpack.c.l.b16 %v127
  %v416 = vunpack.c.l.b16 %v128
  %v417 = vunpack.c.l.b16 %v129
  %v418 = vunpack.c.l.b16 %v130
  %v419 = vunpack.c.l.b16 %v131
  %v420 = vunpack.c.l.b16 %v132
  %v421 = vunpack.c.l.b16 %v133
  %v422 = vunpack.c.l.b16 %v134
  %v423 = vunpack.c.l.b16 %v135
  %v424 = vunpack.c.l.b16 %v136
  %v425 = vunpack.c.l.b16 %v137
  %v426 = vunpack.c.l.b16 %v138
  %v427 = vunpack.c.l.b16 %v139
  %v428 = vunpack.c.l.b16 %v140
  %v429 = vunpack.c.l.b16 %v141
  %v430 = vunpack.c.l.b16 %v142
  %v431 = vunpack.c.l.b16 %v143
  %v432 = vunpack.c.l.b16 %v144
  %v433 = vunpack.c.l.b16 %v145
  %v434 = vunpack.c.l.b16 %v146
  %v435 = vunpack.c.l.b16 %v147
  %v436 = vunpack.c.l.b16 %v148
  %v437 = vunpack.c.l.b16 %v149
  %v438 = vpack.c.b16 %v375, %v374
  %v439 = vpack.c.b16 %v377, %v376
  %v440 = vpack.c.b16 %v379, %v378
  %v441 = vpack.c.b16 %v381, %v380
  %v442 = vpack.c.b16 %v383, %v382
  %v443 = vpack.c.b16 %v385, %v384
  %v444 = vpack.c.b16 %v387, %v386
  %v445 = vpack.c.b16 %v389, %v388
  %v446 = vpack.c.b16 %v391, %v390
  %v447 = vpack.c.b16 %v393, %v392
  %v448 = vpack.c.b16 %v395, %v394
  %v449 = vpack.c.b16 %v397, %v396
  %v450 = vpack.c.b16 %v399, %v398
  %v451 = vpack.c.b16 %v401, %v400
  %v452 = vpack.c.b16 %v403, %v402
  %v453 = vpack.c.b16 %v405, %v404
  %v454 = vpack.c.b16 %v407, %v406
  %v455 = vpack.c.b16 %v409, %v408
  %v456 = vpack.c.b16 %v411, %v410
  %v457 = vpack.c.b16 %v413, %v412
  %v458 = vpack.c.b16 %v415, %v414
  %v459 = vpack.c.b16 %v417, %v416
  %v460 = vpack.c.b16 %v419, %v418
  %v461 = vpack.c.b16 %v421, %v420
  %v462 = vpack.c.b16 %v423, %v422
  %v463 = vpack.c.b16 %v425, %v424
  %v464 = vpack.c.b16 %v427, %v426
  %v465 = vpack.c.b16 %v429, %v428
  %v466 = vpack.c.b16 %v431, %v430
  %v467 = vpack.c.b16 %v433, %v432
  %v468 = vpack.c.b16 %v435, %v434
  %v469 = vpack.c.b16 %v437, %v436
  %502 = vmatprep.subr.bf16.mxu0 0
  %503 = vmatpush1.bf16.msra.mxu0 %v445
  %504 = vmatprep.subr.bf16.mxu0 0
  %505 = vmatpush1.bf16.msra.mxu0 %v444
  %506 = vmatprep.subr.bf16.mxu0 0
  %507 = vmatpush1.bf16.msra.mxu0 %v443
  %508 = vmatprep.subr.bf16.mxu0 0
  %509 = vmatpush1.bf16.msra.mxu0 %v442
  %510 = vmatprep.subr.bf16.mxu0 0
  %511 = vmatpush1.bf16.msra.mxu0 %v441
  %512 = vmatprep.subr.bf16.mxu0 0
  %513 = vmatpush1.bf16.msra.mxu0 %v440
  %514 = vmatprep.subr.bf16.mxu0 0
  %515 = vmatpush1.bf16.msra.mxu0 %v439
  %516 = vmatprep.subr.bf16.mxu0 0
  %517 = vmatpush1.bf16.msra.mxu0 %v438
  %518 = vmatprep.subr.bf16.mxu0 0
  %519 = vmatpush2.bf16.msra.mxu0 %v453
  %520 = vmatprep.subr.bf16.mxu0 0
  %521 = vmatpush2.bf16.msra.mxu0 %v452
  %522 = vmatprep.subr.bf16.mxu0 0
  %523 = vmatpush2.bf16.msra.mxu0 %v451
  %524 = vmatprep.subr.bf16.mxu0 0
  %525 = vmatpush2.bf16.msra.mxu0 %v450
  %526 = vmatprep.subr.bf16.mxu0 0
  %527 = vmatpush2.bf16.msra.mxu0 %v449
  %528 = vmatprep.subr.bf16.mxu0 0
  %529 = vmatpush2.bf16.msra.mxu0 %v448
  %530 = vmatprep.subr.bf16.mxu0 0
  %531 = vmatpush2.bf16.msra.mxu0 %v447
  %532 = vmatprep.subr.bf16.mxu0 0
  %533 = vmatpush2.bf16.msra.mxu0 %v446
  %534 = vmatprep.mubr.bf16.mxu0 %v247
  %535 = vmatmul.mubr.bf16.gmra.mxu0 %v246
  %v536 = vpop.f32.mrf.mxu0
  %v537 = vadd.f32 0.0, %v536
  %v538 = vpop.f32.mrf.mxu0
  %v539 = vpop.f32.mrf.mxu0
  %v540 = vadd.f32 0.0, %v539
  %v541 = vpop.f32.mrf.mxu0
  %542 = vmatprep.mubr.bf16.mxu0 %v251
  %543 = vmatmul.mubr.bf16.gmra.mxu0 %v250
  %v544 = vpop.f32.mrf.mxu0
  %v545 = vadd.f32 0.0, %v544
  %v546 = vpop.f32.mrf.mxu0
  %v547 = vpop.f32.mrf.mxu0
  %v548 = vadd.f32 0.0, %v547
  %v549 = vpop.f32.mrf.mxu0
  %550 = vmatprep.mubr.bf16.mxu0 %v255
  %551 = vmatmul.mubr.bf16.gmra.mxu0 %v254
  %v552 = vpop.f32.mrf.mxu0
  %v553 = vadd.f32 0.0, %v552
  %v554 = vpop.f32.mrf.mxu0
  %v555 = vpop.f32.mrf.mxu0
  %v556 = vadd.f32 0.0, %v555
  %v557 = vpop.f32.mrf.mxu0
  %558 = vmatprep.mubr.bf16.mxu0 %v259
  %559 = vmatmul.mubr.bf16.gmra.mxu0 %v258
  %v560 = vpop.f32.mrf.mxu0
  %v561 = vadd.f32 0.0, %v560
  %v562 = vpop.f32.mrf.mxu0
  %v563 = vpop.f32.mrf.mxu0
  %v564 = vadd.f32 0.0, %v563
  %v565 = vpop.f32.mrf.mxu0
  %566 = vmatprep.mubr.bf16.mxu0 %v263
  %567 = vmatmul.mubr.bf16.gmra.mxu0 %v262
  %v568 = vpop.f32.mrf.mxu0
  %v569 = vadd.f32 0.0, %v568
  %v570 = vpop.f32.mrf.mxu0
  %v571 = vpop.f32.mrf.mxu0
  %v572 = vadd.f32 0.0, %v571
  %v573 = vpop.f32.mrf.mxu0
  %574 = vmatprep.mubr.bf16.mxu0 %v267
  %575 = vmatmul.mubr.bf16.gmra.mxu0 %v266
  %v576 = vpop.f32.mrf.mxu0
  %v577 = vadd.f32 0.0, %v576
  %v578 = vpop.f32.mrf.mxu0
  %v579 = vpop.f32.mrf.mxu0
  %v580 = vadd.f32 0.0, %v579
  %v581 = vpop.f32.mrf.mxu0
  %582 = vmatprep.mubr.bf16.mxu0 %v271
  %583 = vmatmul.mubr.bf16.gmra.mxu0 %v270
  %v584 = vpop.f32.mrf.mxu0
  %v585 = vadd.f32 0.0, %v584
  %v586 = vpop.f32.mrf.mxu0
  %v587 = vpop.f32.mrf.mxu0
  %v588 = vadd.f32 0.0, %v587
  %v589 = vpop.f32.mrf.mxu0
  %590 = vmatprep.mubr.bf16.mxu0 %v275
  %591 = vmatmul.mubr.bf16.gmra.mxu0 %v274
  %v592 = vpop.f32.mrf.mxu0
  %v593 = vadd.f32 0.0, %v592
  %v594 = vpop.f32.mrf.mxu0
  %v595 = vpop.f32.mrf.mxu0
  %v596 = vadd.f32 0.0, %v595
  %v597 = vpop.f32.mrf.mxu0
  %598 = vdwg.mxu0
  %599 = vmatprep.subr.bf16.mxu0 0
  %600 = vmatpush1.bf16.msra.mxu0 %v461
  %601 = vmatprep.subr.bf16.mxu0 0
  %602 = vmatpush1.bf16.msra.mxu0 %v460
  %603 = vmatprep.subr.bf16.mxu0 0
  %604 = vmatpush1.bf16.msra.mxu0 %v459
  %605 = vmatprep.subr.bf16.mxu0 0
  %606 = vmatpush1.bf16.msra.mxu0 %v458
  %607 = vmatprep.subr.bf16.mxu0 0
  %608 = vmatpush1.bf16.msra.mxu0 %v457
  %609 = vmatprep.subr.bf16.mxu0 0
  %610 = vmatpush1.bf16.msra.mxu0 %v456
  %611 = vmatprep.subr.bf16.mxu0 0
  %612 = vmatpush1.bf16.msra.mxu0 %v455
  %613 = vmatprep.subr.bf16.mxu0 0
  %614 = vmatpush1.bf16.msra.mxu0 %v454
  %615 = vmatprep.subr.bf16.mxu0 0
  %616 = vmatpush2.bf16.msra.mxu0 %v469
  %617 = vmatprep.subr.bf16.mxu0 0
  %618 = vmatpush2.bf16.msra.mxu0 %v468
  %619 = vmatprep.subr.bf16.mxu0 0
  %620 = vmatpush2.bf16.msra.mxu0 %v467
  %621 = vmatprep.subr.bf16.mxu0 0
  %622 = vmatpush2.bf16.msra.mxu0 %v466
  %623 = vmatprep.subr.bf16.mxu0 0
  %624 = vmatpush2.bf16.msra.mxu0 %v465
  %625 = vmatprep.subr.bf16.mxu0 0
  %626 = vmatpush2.bf16.msra.mxu0 %v464
  %627 = vmatprep.subr.bf16.mxu0 0
  %628 = vmatpush2.bf16.msra.mxu0 %v463
  %629 = vmatprep.subr.bf16.mxu0 0
  %630 = vmatpush2.bf16.msra.mxu0 %v462
  %631 = vmatprep.mubr.bf16.mxu0 %v249
  %632 = vmatmul.mubr.bf16.gmra.mxu0 %v248
  %v633 = vpop.f32.mrf.mxu0
  %v634 = vadd.f32 %v537, %v633
  %v635 = vpop.f32.mrf.mxu0
  %v636 = vpop.f32.mrf.mxu0
  %v637 = vadd.f32 %v540, %v636
  %v638 = vpop.f32.mrf.mxu0
  %639 = vmatprep.mubr.bf16.mxu0 %v253
  %640 = vmatmul.mubr.bf16.gmra.mxu0 %v252
  %v641 = vpop.f32.mrf.mxu0
  %v642 = vadd.f32 %v545, %v641
  %v643 = vpop.f32.mrf.mxu0
  %v644 = vpop.f32.mrf.mxu0
  %v645 = vadd.f32 %v548, %v644
  %v646 = vpop.f32.mrf.mxu0
  %647 = vmatprep.mubr.bf16.mxu0 %v257
  %648 = vmatmul.mubr.bf16.gmra.mxu0 %v256
  %v649 = vpop.f32.mrf.mxu0
  %v650 = vadd.f32 %v553, %v649
  %v651 = vpop.f32.mrf.mxu0
  %v652 = vpop.f32.mrf.mxu0
  %v653 = vadd.f32 %v556, %v652
  %v654 = vpop.f32.mrf.mxu0
  %655 = vmatprep.mubr.bf16.mxu0 %v261
  %656 = vmatmul.mubr.bf16.gmra.mxu0 %v260
  %v657 = vpop.f32.mrf.mxu0
  %v658 = vadd.f32 %v561, %v657
  %v659 = vpop.f32.mrf.mxu0
  %v660 = vpop.f32.mrf.mxu0
  %v661 = vadd.f32 %v564, %v660
  %v662 = vpop.f32.mrf.mxu0
  %663 = vmatprep.mubr.bf16.mxu0 %v265
  %664 = vmatmul.mubr.bf16.gmra.mxu0 %v264
  %v665 = vpop.f32.mrf.mxu0
  %v666 = vadd.f32 %v569, %v665
  %v667 = vpop.f32.mrf.mxu0
  %v668 = vpop.f32.mrf.mxu0
  %v669 = vadd.f32 %v572, %v668
  %v670 = vpop.f32.mrf.mxu0
  %671 = vmatprep.mubr.bf16.mxu0 %v269
  %672 = vmatmul.mubr.bf16.gmra.mxu0 %v268
  %v673 = vpop.f32.mrf.mxu0
  %v674 = vadd.f32 %v577, %v673
  %v675 = vpop.f32.mrf.mxu0
  %v676 = vpop.f32.mrf.mxu0
  %v677 = vadd.f32 %v580, %v676
  %v678 = vpop.f32.mrf.mxu0
  %679 = vmatprep.mubr.bf16.mxu0 %v273
  %680 = vmatmul.mubr.bf16.gmra.mxu0 %v272
  %v681 = vpop.f32.mrf.mxu0
  %v682 = vadd.f32 %v585, %v681
  %v683 = vpop.f32.mrf.mxu0
  %v684 = vpop.f32.mrf.mxu0
  %v685 = vadd.f32 %v588, %v684
  %v686 = vpop.f32.mrf.mxu0
  %687 = vmatprep.mubr.bf16.mxu0 %v277
  %688 = vmatmul.mubr.bf16.gmra.mxu0 %v276
  %v689 = vpop.f32.mrf.mxu0
  %v690 = vadd.f32 %v593, %v689
  %v691 = vpop.f32.mrf.mxu0
  %v692 = vpop.f32.mrf.mxu0
  %v693 = vadd.f32 %v596, %v692
  %v694 = vpop.f32.mrf.mxu0
  %695 = vdwg.mxu0
  %v696 = vadd.f32 %v70, %v634
  %v697 = vadd.f32 %v71, %v637
  %v698 = vadd.f32 %v72, %v642
  %v699 = vadd.f32 %v73, %v645
  %v700 = vadd.f32 %v74, %v650
  %v701 = vadd.f32 %v75, %v653
  %v702 = vadd.f32 %v76, %v658
  %v703 = vadd.f32 %v77, %v661
  %v704 = vadd.f32 %v78, %v666
  %v705 = vadd.f32 %v79, %v669
  %v706 = vadd.f32 %v80, %v674
  %v707 = vadd.f32 %v81, %v677
  %v708 = vadd.f32 %v82, %v682
  %v709 = vadd.f32 %v83, %v685
  %v710 = vadd.f32 %v84, %v690
  %v711 = vadd.f32 %v85, %v693
  %712 = vst [vmem:[#allocation2] sm:$0xff] %v696
  %713 = vst [vmem:[#allocation2 + $0x8] sm:$0xff] %v697
  %714 = vst [vmem:[#allocation2 + $0x10] sm:$0xff] %v698
  %715 = vst [vmem:[#allocation2 + $0x18] sm:$0xff] %v699
  %716 = vst [vmem:[#allocation2 + $0x20] sm:$0xff] %v700
  %717 = vst [vmem:[#allocation2 + $0x28] sm:$0xff] %v701
  %718 = vst [vmem:[#allocation2 + $0x30] sm:$0xff] %v702
  %719 = vst [vmem:[#allocation2 + $0x38] sm:$0xff] %v703
  %720 = vst [vmem:[#allocation2 + $0x40] sm:$0xff] %v704
  %721 = vst [vmem:[#allocation2 + $0x48] sm:$0xff] %v705
  %722 = vst [vmem:[#allocation2 + $0x50] sm:$0xff] %v706
  %723 = vst [vmem:[#allocation2 + $0x58] sm:$0xff] %v707
  %724 = vst [vmem:[#allocation2 + $0x60] sm:$0xff] %v708
  %725 = vst [vmem:[#allocation2 + $0x68] sm:$0xff] %v709
  %726 = vst [vmem:[#allocation2 + $0x70] sm:$0xff] %v710
  %727 = vst [vmem:[#allocation2 + $0x78] sm:$0xff] %v711
  // Predicated region
  $region22: #{dap_block.8} parent=0 // pred_check
    %p728 = pneg %p18
  $region23: #{dap_block.8} parent=0 // pred_check_branch
    %730 = sbr.rel (%p728) target = $region25
  $region24: #{dap_block.8} parent=0 // pred_region
    %v731 = vld [vmem:[#allocation2] sm:$0xff]
    %v732 = vld [vmem:[#allocation2 + $0x8] sm:$0xff]
    %v733 = vld [vmem:[#allocation2 + $0x10] sm:$0xff]
    %v734 = vld [vmem:[#allocation2 + $0x18] sm:$0xff]
    %v735 = vld [vmem:[#allocation2 + $0x20] sm:$0xff]
    %v736 = vld [vmem:[#allocation2 + $0x28] sm:$0xff]
    %v737 = vld [vmem:[#allocation2 + $0x30] sm:$0xff]
    %v738 = vld [vmem:[#allocation2 + $0x38] sm:$0xff]
    %v739 = vld [vmem:[#allocation2 + $0x40] sm:$0xff]
    %v740 = vld [vmem:[#allocation2 + $0x48] sm:$0xff]
    %v741 = vld [vmem:[#allocation2 + $0x50] sm:$0xff]
    %v742 = vld [vmem:[#allocation2 + $0x58] sm:$0xff]
    %v743 = vld [vmem:[#allocation2 + $0x60] sm:$0xff]
    %v744 = vld [vmem:[#allocation2 + $0x68] sm:$0xff]
    %v745 = vld [vmem:[#allocation2 + $0x70] sm:$0xff]
    %v746 = vld [vmem:[#allocation2 + $0x78] sm:$0xff]
    %v747 = vld [vmem:[%s2] sm:$0x1]
    %v749 = vlaneseq
    %v750 = vshrl.u32 %v749, 7
    %v751 = vsub.s32 0, %v750
    %v752 = vrot.slane %v747, %v751
    %v754 = vmul.f32 %v731, %v752
    %v755 = vmul.f32 %v732, %v752
    %v756 = vmul.f32 %v733, %v752
    %v757 = vmul.f32 %v734, %v752
    %v758 = vmul.f32 %v735, %v752
    %v759 = vmul.f32 %v736, %v752
    %v760 = vmul.f32 %v737, %v752
    %v761 = vmul.f32 %v738, %v752
    %v762 = vmul.f32 %v739, %v752
    %v763 = vmul.f32 %v740, %v752
    %v764 = vmul.f32 %v741, %v752
    %v765 = vmul.f32 %v742, %v752
    %v766 = vmul.f32 %v743, %v752
    %v767 = vmul.f32 %v744, %v752
    %v768 = vmul.f32 %v745, %v752
    %v769 = vmul.f32 %v746, %v752
    %v770 = vld [vmem:[%s3] sm:$0x1]
    %v772 = vlaneseq
    %v773 = vshrl.u32 %v772, 7
    %v774 = vsub.s32 0, %v773
    %v775 = vrot.slane %v770, %v774
    %v777 = vadd.f32 %v754, %v775
    %v778 = vadd.f32 %v755, %v775
    %v779 = vadd.f32 %v756, %v775
    %v780 = vadd.f32 %v757, %v775
    %v781 = vadd.f32 %v758, %v775
    %v782 = vadd.f32 %v759, %v775
    %v783 = vadd.f32 %v760, %v775
    %v784 = vadd.f32 %v761, %v775
    %v785 = vadd.f32 %v762, %v775
    %v786 = vadd.f32 %v763, %v775
    %v787 = vadd.f32 %v764, %v775
    %v788 = vadd.f32 %v765, %v775
    %v789 = vadd.f32 %v766, %v775
    %v790 = vadd.f32 %v767, %v775
    %v791 = vadd.f32 %v768, %v775
    %v792 = vadd.f32 %v769, %v775
    %v793 = vmax.f32 %v777, 0.0
    %v794 = vmax.f32 %v778, 0.0
    %v795 = vmax.f32 %v779, 0.0
    %v796 = vmax.f32 %v780, 0.0
    %v797 = vmax.f32 %v781, 0.0
    %v798 = vmax.f32 %v782, 0.0
    %v799 = vmax.f32 %v783, 0.0
    %v800 = vmax.f32 %v784, 0.0
    %v801 = vmax.f32 %v785, 0.0
    %v802 = vmax.f32 %v786, 0.0
    %v803 = vmax.f32 %v787, 0.0
    %v804 = vmax.f32 %v788, 0.0
    %v805 = vmax.f32 %v789, 0.0
    %v806 = vmax.f32 %v790, 0.0
    %v807 = vmax.f32 %v791, 0.0
    %v808 = vmax.f32 %v792, 0.0
    %v809 = vpack.c.bf16 %v794, %v793
    %v810 = vpack.c.bf16 %v796, %v795
    %v811 = vpack.c.bf16 %v798, %v797
    %v812 = vpack.c.bf16 %v800, %v799
    %v813 = vpack.c.bf16 %v802, %v801
    %v814 = vpack.c.bf16 %v804, %v803
    %v815 = vpack.c.bf16 %v806, %v805
    %v816 = vpack.c.bf16 %v808, %v807
    %v825 = vunpack.c.l.b16 %v809
    %v826 = vunpack.c.h.b16 %v809
    %v827 = vunpack.c.l.b16 %v810
    %v828 = vunpack.c.h.b16 %v810
    %v829 = vunpack.c.l.b16 %v811
    %v830 = vunpack.c.h.b16 %v811
    %v831 = vunpack.c.l.b16 %v812
    %v832 = vunpack.c.h.b16 %v812
    %v833 = vunpack.c.l.b16 %v813
    %v834 = vunpack.c.h.b16 %v813
    %v835 = vunpack.c.l.b16 %v814
    %v836 = vunpack.c.h.b16 %v814
    %v837 = vunpack.c.l.b16 %v815
    %v838 = vunpack.c.h.b16 %v815
    %v839 = vunpack.c.l.b16 %v816
    %v840 = vunpack.c.h.b16 %v816
    %v841 = vpack.c.b16 %v825, %v825
    %v842 = vpack.c.b16 %v826, %v826
    %v843 = vpack.c.b16 %v827, %v827
    %v844 = vpack.c.b16 %v828, %v828
    %v845 = vpack.c.b16 %v829, %v829
    %v846 = vpack.c.b16 %v830, %v830
    %v847 = vpack.c.b16 %v831, %v831
    %v848 = vpack.c.b16 %v832, %v832
    %v849 = vpack.c.b16 %v833, %v833
    %v850 = vpack.c.b16 %v834, %v834
    %v851 = vpack.c.b16 %v835, %v835
    %v852 = vpack.c.b16 %v836, %v836
    %v853 = vpack.c.b16 %v837, %v837
    %v854 = vpack.c.b16 %v838, %v838
    %v855 = vpack.c.b16 %v839, %v839
    %v856 = vpack.c.b16 %v840, %v840
    %873 = vst [vmem:[%s4] sm:$0xf] %v841
    %874 = vst [vmem:[%s4 + $0x4] sm:$0xf] %v842
    %875 = vst [vmem:[%s4 + $0x8] sm:$0xf] %v843
    %876 = vst [vmem:[%s4 + $0xc] sm:$0xf] %v844
    %877 = vst [vmem:[%s4 + $0x10] sm:$0xf] %v845
    %878 = vst [vmem:[%s4 + $0x14] sm:$0xf] %v846
    %879 = vst [vmem:[%s4 + $0x18] sm:$0xf] %v847
    %880 = vst [vmem:[%s4 + $0x1c] sm:$0xf] %v848
    %881 = vst [vmem:[%s4 + $0x20] sm:$0xf] %v849
    %882 = vst [vmem:[%s4 + $0x24] sm:$0xf] %v850
    %883 = vst [vmem:[%s4 + $0x28] sm:$0xf] %v851
    %884 = vst [vmem:[%s4 + $0x2c] sm:$0xf] %v852
    %885 = vst [vmem:[%s4 + $0x30] sm:$0xf] %v853
    %886 = vst [vmem:[%s4 + $0x34] sm:$0xf] %v854
    %887 = vst [vmem:[%s4 + $0x38] sm:$0xf] %v855
    %888 = vst [vmem:[%s4 + $0x3c] sm:$0xf] %v856
  $region25: #{dap_block.8} parent=0 // pred_fallthru
    _
  // Predicated region
  $region26: #{dap_block.8} parent=0 // pred_check
    _
  $region27: #{dap_block.8} parent=0 // pred_check_branch
    %890 = sbr.rel (0) target = $region29
  $region28: #{dap_block.8} parent=0 // pred_region
    _
  $region29: #{dap_block.8} parent=0 // pred_fallthru
    _
  // Predicated region
  $region30: #{dap_block.8} parent=0 // pred_check
    _
  $region31: #{dap_block.8} parent=0 // pred_check_branch
    %892 = sbr.rel (0) target = $region33
  $region32: #{dap_block.8} parent=0 // pred_region
    _
  $region33: #{dap_block.8} parent=0 // pred_fallthru
    _

// kernel: dap_block.13
$region0: #{dap_block.13}
  #allocation0 [shape = 'u32[]', space=smem, size = 0x4, offset = 0x4, fixed_abs, tag = 'smem constant byte address 0x4 - core index']
  #allocation1 [shape = 'u32[144,128]{1,0:T(1,128)}', space=vmem, size = 0x12000, scoped, tag = 'internal scratch']
  #allocation2 [shape = 'bf16[16,16]{1,0:T(8,128)(2,1)}', space=vmem, size = 0x1000, scoped, tag = 'scratch operand']
  #allocation3 [shape = 'f32[1,1]{1,0:T(1,128)S(6)}', space=smem, size = 0x200, scoped, tag = 'scoped memory for dap_block.13']
  %s0 = inlined_call_operand.<no memory space> [shape: f32[1,1], index: 0, kind: input, shape index: {}]
  %s1 = inlined_call_operand.vmem [shape: f32[2,16,16], index: 1, kind: input, shape index: {}]
  %s2 = inlined_call_operand.vmem [shape: bf16[2,64,16], index: 2, kind: input, shape index: {}]
  %s3 = inlined_call_operand.vmem [shape: bf16[2,64,16], index: 3, kind: output, shape index: {}]
  %s4 = sld [smem:[#allocation0]]
  $region49: #{dap_block.13} parent=0
    _
  %s6 = ssub.s32 1, %s4
  %s7 = scalar_select 0, %s6, %s4
  %8 = sst [smem:[#allocation3]] %s0
  loop: start=0, step=1, limit=4
  $region2: #{dap_block.13} parent=0 // loop_pre_header
    _
  $region3: #{dap_block.13} parent=0 // loop_header
    %s10 = sphi 0, %s14
    %p11 = scmp.ge.s32.totalorder %s10, 4
    %s17 = sphi 0, %s29
    %s18 = sphi 0, %s25
    %s19 = sphi 0, %s17
    %s20 = sphi 0, %s18
    %s21 = sphi 0, %s19
    %s22 = sphi 0, %s20
    %s30 = sphi 0, %s30
    %s32 = sphi 0, %s30
    %s33 = sphi 0, %s32
    %s47 = sphi 0, %s33
    %s53 = sphi 0, %s55
    %s56 = sphi 0, %s53
    %s57 = sphi 0, %s56
    %s73 = sphi 0, %s57
    %s81 = sphi 0, %s83
    %s84 = sphi 0, %s81
    %s85 = sphi 0, %s84
    %s101 = sphi 0, %s85
    %s109 = sphi 0, %s111
    %s112 = sphi 0, %s109
    %s113 = sphi 0, %s112
    %s129 = sphi 0, %s113
  $region4: #{dap_block.13} parent=0 // loop_header_branch
    %13 = sbr.rel (%p11) target = $region8
  $region5: #{dap_block.13} parent=0 // loop_body
    %s15 = ssub.s32 %s10, 1
    %s16 = ssub.s32 %s10, 2
    %s23 = sadd.s32 1, %s18
    %p24 = scmp.ge.s32.totalorder %s23, 1
    %s25 = scalar_select %p24, 0, %s23
    %s26 = sadd.s32 1, %s17
    %s27 = scalar_select %p24, %s26, %s17
    %p28 = scmp.ge.s32.totalorder %s27, 2
    %s29 = scalar_select %p28, 0, %s27
    %s31 = sadd.s32 %s30, 1
    %p34 = scmp.eq.s32.totalorder %s10, 1
    %p35 = scmp.ne.s32.totalorder %s30, %s32
    %p36 = scmp.eq.s32.totalorder %s10, 0
    %p37 = por %p35, %p36
    %p38 = scmp.ne.s32.totalorder %s30, %s32
    %p39 = scmp.eq.s32.totalorder %s15, 1
    %p40 = por %p38, %p39
    %p41 = scmp.ne.s32.totalorder %s32, %s33
    %p42 = scmp.eq.s32.totalorder %s15, 0
    %p43 = por %p41, %p42
    %p44 = scmp.ne.s32.totalorder %s32, %s33
    %p45 = scmp.eq.s32.totalorder %s16, 1
    %p46 = por %p44, %p45
    %p48 = scmp.ne.s32.totalorder %s33, %s47
    %p49 = scmp.eq.s32.totalorder %s16, 0
    %p50 = por %p48, %p49
    %s51 = ssub.s32 %s17, %s29
    %p52 = scmp.eq.s32.totalorder %s51, 0
    %s54 = sadd.s32 %s53, 1
    %s55 = scalar_select %p52, %s53, %s54
    %p58 = pneg %p52
    %p59 = scmp.eq.s32.totalorder %s10, 1
    %p60 = por %p58, %p59
    %p61 = scmp.ne.s32.totalorder %s53, %s56
    %p62 = scmp.eq.s32.totalorder %s10, 0
    %p63 = por %p61, %p62
    %p64 = scmp.ne.s32.totalorder %s53, %s56
    %p65 = scmp.eq.s32.totalorder %s15, 1
    %p66 = por %p64, %p65
    %p67 = scmp.ne.s32.totalorder %s56, %s57
    %p68 = scmp.eq.s32.totalorder %s15, 0
    %p69 = por %p67, %p68
    %p70 = scmp.ne.s32.totalorder %s56, %s57
    %p71 = scmp.eq.s32.totalorder %s16, 1
    %p72 = por %p70, %p71
    %p74 = scmp.ne.s32.totalorder %s57, %s73
    %p75 = scmp.eq.s32.totalorder %s16, 0
    %p76 = por %p74, %p75
    %s77 = ssub.s32 %s17, %s29
    %s78 = ssub.s32 %s18, %s25
    %s79 = sor.u32 %s77, %s78
    %p80 = scmp.eq.s32.totalorder %s79, 0
    %s82 = sadd.s32 %s81, 1
    %s83 = scalar_select %p80, %s81, %s82
    %p86 = pneg %p80
    %p87 = scmp.eq.s32.totalorder %s10, 1
    %p88 = por %p86, %p87
    %p89 = scmp.ne.s32.totalorder %s81, %s84
    %p90 = scmp.eq.s32.totalorder %s10, 0
    %p91 = por %p89, %p90
    %p92 = scmp.ne.s32.totalorder %s81, %s84
    %p93 = scmp.eq.s32.totalorder %s15, 1
    %p94 = por %p92, %p93
    %p95 = scmp.ne.s32.totalorder %s84, %s85
    %p96 = scmp.eq.s32.totalorder %s15, 0
    %p97 = por %p95, %p96
    %p98 = scmp.ne.s32.totalorder %s84, %s85
    %p99 = scmp.eq.s32.totalorder %s16, 1
    %p100 = por %p98, %p99
    %p102 = scmp.ne.s32.totalorder %s85, %s101
    %p103 = scmp.eq.s32.totalorder %s16, 0
    %p104 = por %p102, %p103
    %s105 = ssub.s32 %s17, %s29
    %s106 = ssub.s32 %s18, %s25
    %s107 = sor.u32 %s105, %s106
    %p108 = scmp.eq.s32.totalorder %s107, 0
    %s110 = sadd.s32 %s109, 1
    %s111 = scalar_select %p108, %s109, %s110
    %p114 = pneg %p108
    %p115 = scmp.eq.s32.totalorder %s10, 1
    %p116 = por %p114, %p115
    %p117 = scmp.ne.s32.totalorder %s109, %s112
    %p118 = scmp.eq.s32.totalorder %s10, 0
    %p119 = por %p117, %p118
    %p120 = scmp.ne.s32.totalorder %s109, %s112
    %p121 = scmp.eq.s32.totalorder %s15, 1
    %p122 = por %p120, %p121
    %p123 = scmp.ne.s32.totalorder %s112, %s113
    %p124 = scmp.eq.s32.totalorder %s15, 0
    %p125 = por %p123, %p124
    %p126 = scmp.ne.s32.totalorder %s112, %s113
    %p127 = scmp.eq.s32.totalorder %s16, 1
    %p128 = por %p126, %p127
    %p130 = scmp.ne.s32.totalorder %s113, %s129
    %p131 = scmp.eq.s32.totalorder %s16, 0
    %p132 = por %p130, %p131
    %p133 = scmp.le.s32.totalorder 1, %s10
    %p134 = scmp.lt.s32.totalorder %s10, 3
    %p135 = pnand %p133, %p134
    %p136 = pneg %p135
    // Predicated region
    $region9: #{dap_block.13} parent=5 // pred_check
      _
    $region10: #{dap_block.13} parent=5 // pred_check_branch
      %138 = sbr.rel (%p135) target = $region12
    $region11: #{dap_block.13} parent=5 // pred_region
      %s139 = ssub.s32 %s10, 1
      // Predicated region
      $region13: #{dap_block.13} parent=11 // pred_check
        %p140 = pneg %p43
      $region14: #{dap_block.13} parent=11 // pred_check_branch
        %142 = sbr.rel (%p140) target = $region16
      $region15: #{dap_block.13} parent=11 // pred_region
        _
      $region16: #{dap_block.13} parent=11 // pred_fallthru
        _
    $region12: #{dap_block.13} parent=5 // pred_fallthru
      _
    %p143 = scmp.lt.s32.totalorder %s10, 2
    // Predicated region
    $region17: #{dap_block.13} parent=5 // pred_check
      %p144 = pneg %p143
    $region18: #{dap_block.13} parent=5 // pred_check_branch
      %146 = sbr.rel (%p144) target = $region20
    $region19: #{dap_block.13} parent=5 // pred_region
      // Predicated region
      $region21: #{dap_block.13} parent=19 // pred_check
        %p147 = pneg %p63
      $region22: #{dap_block.13} parent=19 // pred_check_branch
        %149 = sbr.rel (%p147) target = $region24
      $region23: #{dap_block.13} parent=19 // pred_region
        %p150 = scmp.lt.s32.totalorder %s17, 1
        %s151 = scalar_select %p150, %s17, 1
        %s152 = smul.addr %s151, 2
        %s153 = smul.addr %s152, 8
        %s154 = scalar_lea.vmem %s1, %s153
      $region24: #{dap_block.13} parent=19 // pred_fallthru
        _
      // Predicated region
      $region25: #{dap_block.13} parent=19 // pred_check
        %p155 = pneg %p91
      $region26: #{dap_block.13} parent=19 // pred_check_branch
        %157 = sbr.rel (%p155) target = $region28
      $region27: #{dap_block.13} parent=19 // pred_region
        %s158 = smul.u32 8, %s18
        %p159 = scmp.lt.s32.totalorder %s17, 1
        %s160 = scalar_select %p159, %s17, 1
        %p161 = scmp.lt.s32.totalorder %s158, 7
        %s162 = scalar_select %p161, %s158, 7
        %s163 = smul.addr %s160, 8
        %s164 = sadd.s32 %s162, %s163
        %s165 = smul.addr %s164, 4
        %s166 = scalar_lea.vmem %s2, %s165
        %s167 = smul.u32 8, %s18
      $region28: #{dap_block.13} parent=19 // pred_fallthru
        _
    $region20: #{dap_block.13} parent=5 // pred_fallthru
      _
    %p168 = scmp.le.s32.totalorder 1, %s10
    %p169 = scmp.lt.s32.totalorder %s10, 3
    %p170 = pnand %p168, %p169
    %p171 = pneg %p170
    // Predicated region
    $region29: #{dap_block.13} parent=5 // pred_check
      _
    $region30: #{dap_block.13} parent=5 // pred_check_branch
      %173 = sbr.rel (%p170) target = $region32
    $region31: #{dap_block.13} parent=5 // pred_region
      %s174 = ssub.s32 %s10, 1
      %p175 = pneg %p43
      %p176 = pneg %p40
      %p177 = scmp.lt.s32.totalorder %s19, 1
      %s178 = scalar_select %p177, %s19, 1
      %s179 = smul.addr %s178, 2
      %s180 = smul.addr %s179, 8
      %s181 = scalar_lea.vmem %s1, %s180
      %p182 = pneg %p69
      %p183 = pneg %p66
      %s184 = smul.u32 8, %s20
      %p185 = scmp.lt.s32.totalorder %s19, 1
      %s186 = scalar_select %p185, %s19, 1
      %p187 = scmp.lt.s32.totalorder %s184, 7
      %s188 = scalar_select %p187, %s184, 7
      %s189 = smul.addr %s186, 8
      %s190 = sadd.s32 %s188, %s189
      %s191 = smul.addr %s190, 4
      %s192 = scalar_lea.vmem %s2, %s191
      %p193 = pneg %p97
      %p194 = pneg %p94
      %p195 = pneg %p125
      %p196 = pneg %p122
      %s197 = smul.u32 8, %s20
      %p198 = scmp.lt.s32.totalorder %s19, 1
      %s199 = scalar_select %p198, %s19, 1
      %p200 = scmp.lt.s32.totalorder %s197, 7
      %s201 = scalar_select %p200, %s197, 7
      %s202 = smul.addr %s199, 8
      %s203 = sadd.s32 %s201, %s202
      %s204 = smul.addr %s203, 4
      %s205 = scalar_lea.vmem %s3, %s204
      %p206 = scmp.lt.s32.totalorder %s19, 1
      %s207 = scalar_select %p206, %s19, 1
      %s208 = smul.addr %s207, 2
      %s209 = smul.addr %s208, 8
      %s210 = scalar_lea.vmem %s1, %s209
      %s211 = smul.u32 8, %s20
      %p212 = scmp.lt.s32.totalorder %s19, 1
      %s213 = scalar_select %p212, %s19, 1
      %p214 = scmp.lt.s32.totalorder %s211, 7
      %s215 = scalar_select %p214, %s211, 7
      %s216 = smul.addr %s213, 8
      %s217 = sadd.s32 %s215, %s216
      %s218 = smul.addr %s217, 4
      %s219 = scalar_lea.vmem %s2, %s218
      %s220 = smul.u32 8, %s20
      %s221 = smul.u32 8, %s20
      %p222 = scmp.lt.s32.totalorder %s19, 1
      %s223 = scalar_select %p222, %s19, 1
      %p224 = scmp.lt.s32.totalorder %s221, 7
      %s225 = scalar_select %p224, %s221, 7
      %s226 = smul.addr %s223, 8
      %s227 = sadd.s32 %s225, %s226
      %s228 = smul.addr %s227, 4
      %s229 = scalar_lea.vmem %s3, %s228
      %s230 = smul.u32 8, %s20
      %p232 = scmp.eq.s32.totalorder %s20, 0
      // Predicated region
      $region33: #{dap_block.13} parent=31 // pred_check
        %p233 = pneg %p232
      $region34: #{dap_block.13} parent=31 // pred_check_branch
        %235 = sbr.rel (%p233) target = $region36
      $region35: #{dap_block.13} parent=31 // pred_region
        %v236 = vld [vmem:[%s210] sm:$0xff]
        %v237 = vld [vmem:[%s210 + $0x8] sm:$0xff]
        %v238 = vsub.f32 0.0, %v236
        %v239 = vsub.f32 0.0, %v237
        %vm240 = vcmask 130048
        %v241 = vsel %vm240, %v238, -inf
        %242 = vmax.xlane.f32.xlu0 %v241
        %v243 = vpop.xlane.xlu0 %242
        %v244 = vsel %vm240, %v239, -inf
        %245 = vmax.xlane.f32.xlu0 %v244
        %v246 = vpop.xlane.xlu0 %245
        %v247 = vsub.f32 %v238, %v243
        %v248 = vsub.f32 %v239, %v246
        %v249 = vmul.f32 %v247, 1.442695
        %v250 = vpow.pop %v249
        %v251 = vmul.f32 %v248, 1.442695
        %v252 = vpow.pop %v251
        %v253 = vsel %vm240, %v250, 0.0
        %254 = vadd.xlane.f32.xlu0 %v253
        %v255 = vpop.xlane.xlu0 %254
        %v256 = vsel %vm240, %v252, 0.0
        %257 = vadd.xlane.f32.xlu0 %v256
        %v258 = vpop.xlane.xlu0 %257
        %v259 = vrcp.pop %v255
        %v260 = vmul.f32 %v250, %v259
        %v261 = vrcp.pop %v258
        %v262 = vmul.f32 %v252, %v261
        %v263 = vpack.c.bf16 %v262, %v260
        %v265 = vunpack.c.l.b16 %v263
        %v266 = vunpack.c.h.b16 %v263
        %v267 = vpack.c.b16 %v265, %v265
        %v268 = vpack.c.b16 %v266, %v266
        %vm271 = vcmask 125952
        %272 = vst.msk [vmem:[#allocation2] sm:$0xf] %vm271, %v267
        %273 = vst.msk [vmem:[#allocation2 + $0x4] sm:$0xf] %vm271, %v268
      $region36: #{dap_block.13} parent=31 // pred_fallthru
        _
      %v274 = vld [vmem:[%s219] sm:$0xf]
      %v275 = vld [vmem:[%s219 + $0x4] sm:$0xf]
      %v276 = vld [vmem:[%s219 + $0x8] sm:$0xf]
      %v277 = vld [vmem:[%s219 + $0xc] sm:$0xf]
      %v278 = vld [vmem:[%s219 + $0x10] sm:$0xf]
      %v279 = vld [vmem:[%s219 + $0x14] sm:$0xf]
      %v280 = vld [vmem:[%s219 + $0x18] sm:$0xf]
      %v281 = vld [vmem:[%s219 + $0x1c] sm:$0xf]
      %v282 = vld [vmem:[#allocation2] sm:$0xf]
      %v283 = vld [vmem:[#allocation2 + $0x4] sm:$0xf]
      %v292 = vunpack.c.l.b16 %v274
      %v293 = vunpack.c.l.b16 %v275
      %v294 = vunpack.c.l.b16 %v276
      %v295 = vunpack.c.l.b16 %v277
      %v296 = vunpack.c.l.b16 %v278
      %v297 = vunpack.c.l.b16 %v279
      %v298 = vunpack.c.l.b16 %v280
      %v299 = vunpack.c.l.b16 %v281
      %v300 = vpack.c.b16 %v293, %v292
      %v301 = vpack.c.b16 %v295, %v294
      %v302 = vpack.c.b16 %v297, %v296
      %v303 = vpack.c.b16 %v299, %v298
      %v306 = vunpack.c.l.b16 %v282
      %v307 = vunpack.c.l.b16 %v283
      %v308 = vpack.c.b16 %v307, %v306
      %vm309 = vcmask 130048
      %v311 = vsel %vm309, %v300, 0
      %v314 = vsel %vm309, %v301, 0
      %v317 = vsel %vm309, %v302, 0
      %v320 = vsel %vm309, %v303, 0
      %v323 = vsel %vm309, %v308, 0
      %325 = vmatprep.subr.bf16.mxu0 0
      %326 = vmatpush1.bf16.xpose.msra.mxu0 0
      %327 = vmatprep.subr.bf16.mxu0 0
      %328 = vmatpush1.bf16.xpose.msra.mxu0 0
      %329 = vmatprep.subr.bf16.mxu0 0
      %330 = vmatpush1.bf16.xpose.msra.mxu0 0
      %331 = vmatprep.subr.bf16.mxu0 0
      %332 = vmatpush1.bf16.xpose.msra.mxu0 0
      %333 = vmatprep.subr.bf16.mxu0 0
      %334 = vmatpush1.bf16.xpose.msra.mxu0 0
      %335 = vmatprep.subr.bf16.mxu0 0
      %336 = vmatpush1.bf16.xpose.msra.mxu0 0
      %337 = vmatprep.subr.bf16.mxu0 0
      %338 = vmatpush1.bf16.xpose.msra.mxu0 0
      %339 = vmatprep.subr.bf16.mxu0 0
      %340 = vmatpush1.bf16.xpose.msra.mxu0 %v323
      %341 = vmatprep.subr.bf16.mxu0 0
      %342 = vmatpush2.bf16.xpose.msra.mxu0 0
      %343 = vmatprep.subr.bf16.mxu0 0
      %344 = vmatpush2.bf16.xpose.msra.mxu0 0
      %345 = vmatprep.subr.bf16.mxu0 0
      %346 = vmatpush2.bf16.xpose.msra.mxu0 0
      %347 = vmatprep.subr.bf16.mxu0 0
      %348 = vmatpush2.bf16.xpose.msra.mxu0 0
      %349 = vmatprep.subr.bf16.mxu0 0
      %350 = vmatpush2.bf16.xpose.msra.mxu0 0
      %351 = vmatprep.subr.bf16.mxu0 0
      %352 = vmatpush2.bf16.xpose.msra.mxu0 0
      %353 = vmatprep.subr.bf16.mxu0 0
      %354 = vmatpush2.bf16.xpose.msra.mxu0 0
      %355 = vmatprep.subr.bf16.mxu0 0
      %356 = vmatpush2.bf16.xpose.msra.mxu0 0
      %357 = vmatprep.mubr.bf16.mxu0 0
      %358 = vmatmul.mubr.bf16.gmra.mxu0 %v311
      %v359 = vpop.f32.mrf.mxu0
      %v360 = vadd.f32 0.0, %v359
      %v361 = vpop.f32.mrf.mxu0
      %v362 = vpop.f32.mrf.mxu0
      %v363 = vadd.f32 0.0, %v362
      %v364 = vpop.f32.mrf.mxu0
      %365 = vmatprep.mubr.bf16.mxu0 0
      %366 = vmatmul.mubr.bf16.gmra.mxu0 %v314
      %v367 = vpop.f32.mrf.mxu0
      %v368 = vadd.f32 0.0, %v367
      %v369 = vpop.f32.mrf.mxu0
      %v370 = vpop.f32.mrf.mxu0
      %v371 = vadd.f32 0.0, %v370
      %v372 = vpop.f32.mrf.mxu0
      %373 = vmatprep.mubr.bf16.mxu0 0
      %374 = vmatmul.mubr.bf16.gmra.mxu0 %v317
      %v375 = vpop.f32.mrf.mxu0
      %v376 = vadd.f32 0.0, %v375
      %v377 = vpop.f32.mrf.mxu0
      %v378 = vpop.f32.mrf.mxu0
      %v379 = vadd.f32 0.0, %v378
      %v380 = vpop.f32.mrf.mxu0
      %381 = vmatprep.mubr.bf16.mxu0 0
      %382 = vmatmul.mubr.bf16.gmra.mxu0 %v320
      %v383 = vpop.f32.mrf.mxu0
      %v384 = vadd.f32 0.0, %v383
      %v385 = vpop.f32.mrf.mxu0
      %v386 = vpop.f32.mrf.mxu0
      %v387 = vadd.f32 0.0, %v386
      %v388 = vpop.f32.mrf.mxu0
      %389 = vdwg.mxu0
      %s390 = sld [smem:[#allocation3]]
      %v391 = vstv %s390
      %v392 = vmul.f32 %v391, %v360
      %v393 = vmul.f32 %v391, %v363
      %v394 = vmul.f32 %v391, %v368
      %v395 = vmul.f32 %v391, %v371
      %v396 = vmul.f32 %v391, %v376
      %v397 = vmul.f32 %v391, %v379
      %v398 = vmul.f32 %v391, %v384
      %v399 = vmul.f32 %v391, %v387
      %v400 = vunpack.c.l.bf16 %v274
      %v401 = vunpack.c.l.bf16 %v275
      %v402 = vunpack.c.l.bf16 %v276
      %v403 = vunpack.c.l.bf16 %v277
      %v404 = vunpack.c.l.bf16 %v278
      %v405 = vunpack.c.l.bf16 %v279
      %v406 = vunpack.c.l.bf16 %v280
      %v407 = vunpack.c.l.bf16 %v281
      %v408 = vadd.f32 %v392, %v400
      %v409 = vadd.f32 %v393, %v401
      %v410 = vadd.f32 %v394, %v402
      %v411 = vadd.f32 %v395, %v403
      %v412 = vadd.f32 %v396, %v404
      %v413 = vadd.f32 %v397, %v405
      %v414 = vadd.f32 %v398, %v406
      %v415 = vadd.f32 %v399, %v407
      %v416 = vpack.c.bf16 %v409, %v408
      %v417 = vpack.c.bf16 %v411, %v410
      %v418 = vpack.c.bf16 %v413, %v412
      %v419 = vpack.c.bf16 %v415, %v414
      %v424 = vunpack.c.l.b16 %v416
      %v425 = vunpack.c.h.b16 %v416
      %v426 = vunpack.c.l.b16 %v417
      %v427 = vunpack.c.h.b16 %v417
      %v428 = vunpack.c.l.b16 %v418
      %v429 = vunpack.c.h.b16 %v418
      %v430 = vunpack.c.l.b16 %v419
      %v431 = vunpack.c.h.b16 %v419
      %v432 = vpack.c.b16 %v424, %v424
      %v433 = vpack.c.b16 %v425, %v425
      %v434 = vpack.c.b16 %v426, %v426
      %v435 = vpack.c.b16 %v427, %v427
      %v436 = vpack.c.b16 %v428, %v428
      %v437 = vpack.c.b16 %v429, %v429
      %v438 = vpack.c.b16 %v430, %v430
      %v439 = vpack.c.b16 %v431, %v431
      %vm448 = vcmask 125952
      %449 = vst.msk [vmem:[%s229] sm:$0xf] %vm448, %v432
      %450 = vst.msk [vmem:[%s229 + $0x4] sm:$0xf] %vm448, %v433
      %451 = vst.msk [vmem:[%s229 + $0x8] sm:$0xf] %vm448, %v434
      %452 = vst.msk [vmem:[%s229 + $0xc] sm:$0xf] %vm448, %v435
      %453 = vst.msk [vmem:[%s229 + $0x10] sm:$0xf] %vm448, %v436
      %454 = vst.msk [vmem:[%s229 + $0x14] sm:$0xf] %vm448, %v437
      %455 = vst.msk [vmem:[%s229 + $0x18] sm:$0xf] %vm448, %v438
      %456 = vst.msk [vmem:[%s229 + $0x1c] sm:$0xf] %vm448, %v439
      %s457 = smul.u32 8, %s20
      %p458 = scmp.lt.s32.totalorder %s19, 1
      %s459 = scalar_select %p458, %s19, 1
      %p460 = scmp.lt.s32.totalorder %s457, 7
      %s461 = scalar_select %p460, %s457, 7
      %s462 = smul.addr %s459, 8
      %s463 = sadd.s32 %s461, %s462
      %s464 = smul.addr %s463, 4
      %s465 = scalar_lea.vmem %s3, %s464
      // Predicated region
      $region37: #{dap_block.13} parent=31 // pred_check
        %p466 = pneg %p122
      $region38: #{dap_block.13} parent=31 // pred_check_branch
        %468 = sbr.rel (%p466) target = $region40
      $region39: #{dap_block.13} parent=31 // pred_region
        %s469 = smul.u32 8, %s20
      $region40: #{dap_block.13} parent=31 // pred_fallthru
        _
    $region32: #{dap_block.13} parent=5 // pred_fallthru
      _
    %p470 = scmp.le.s32.totalorder 2, %s10
    // Predicated region
    $region41: #{dap_block.13} parent=5 // pred_check
      %p471 = pneg %p470
    $region42: #{dap_block.13} parent=5 // pred_check_branch
      %473 = sbr.rel (%p471) target = $region44
    $region43: #{dap_block.13} parent=5 // pred_region
      %s474 = ssub.s32 %s10, 2
      // Predicated region
      $region45: #{dap_block.13} parent=43 // pred_check
        %p475 = pneg %p128
      $region46: #{dap_block.13} parent=43 // pred_check_branch
        %477 = sbr.rel (%p475) target = $region48
      $region47: #{dap_block.13} parent=43 // pred_region
        %s478 = smul.u32 8, %s22
        %p479 = scmp.lt.s32.totalorder %s21, 1
        %s480 = scalar_select %p479, %s21, 1
        %p481 = scmp.lt.s32.totalorder %s478, 7
        %s482 = scalar_select %p481, %s478, 7
        %s483 = smul.addr %s480, 8
        %s484 = sadd.s32 %s482, %s483
        %s485 = smul.addr %s484, 4
        %s486 = scalar_lea.vmem %s3, %s485
      $region48: #{dap_block.13} parent=43 // pred_fallthru
        _
    $region44: #{dap_block.13} parent=5 // pred_fallthru
      _
  $region6: #{dap_block.13} parent=0 // loop_footer
    %s14 = sadd.s32 1, %s10
  $region7: #{dap_block.13} parent=0 // loop_footer_branch
    %9 = sbr.rel target = $region3
  $region8: #{dap_block.13} parent=0 // loop_exit
    _

// kernel: dap_block.9
$region0: #{dap_block.9}
  #allocation0 [shape = 'u32[]', space=smem, size = 0x4, offset = 0x4, fixed_abs, tag = 'smem constant byte address 0x4 - core index']
  #allocation1 [shape = 'u32[144,128]{1,0:T(1,128)}', space=vmem, size = 0x12000, scoped, tag = 'internal scratch']
  #allocation2 [shape = 'f32[128,128]{1,0:T(8,128)}', space=vmem, size = 0x10000, scoped, tag = 'scratch operand']
  %s0 = inlined_call_operand.vmem [shape: bf16[128,128], index: 0, kind: input, shape index: {}]
  %s1 = inlined_call_operand.vmem [shape: bf16[128,128], index: 1, kind: input, shape index: {}]
  %s2 = inlined_call_operand.vmem [shape: f32[1,128], index: 2, kind: input, shape index: {}]
  %s3 = inlined_call_operand.vmem [shape: f32[1,128], index: 3, kind: input, shape index: {}]
  %s4 = inlined_call_operand.vmem [shape: bf16[128,128], index: 4, kind: output, shape index: {}]
  %s5 = sld [smem:[#allocation0]]
  $region34: #{dap_block.9} parent=0
    _
  %s7 = ssub.s32 1, %s5
  %s8 = scalar_select 0, %s7, %s5
  // Predicated region
  $region2: #{dap_block.9} parent=0 // pred_check
    _
  $region3: #{dap_block.9} parent=0 // pred_check_branch
    %10 = sbr.rel (0) target = $region5
  $region4: #{dap_block.9} parent=0 // pred_region
    _
  $region5: #{dap_block.9} parent=0 // pred_fallthru
    _
  // Predicated region
  $region6: #{dap_block.9} parent=0 // pred_check
    _
  $region7: #{dap_block.9} parent=0 // pred_check_branch
    %12 = sbr.rel (0) target = $region9
  $region8: #{dap_block.9} parent=0 // pred_region
    _
  $region9: #{dap_block.9} parent=0 // pred_fallthru
    _
  // Predicated region
  $region10: #{dap_block.9} parent=0 // pred_check
    _
  $region11: #{dap_block.9} parent=0 // pred_check_branch
    %14 = sbr.rel (0) target = $region13
  $region12: #{dap_block.9} parent=0 // pred_region
    _
  $region13: #{dap_block.9} parent=0 // pred_fallthru
    _
  // Predicated region
  $region14: #{dap_block.9} parent=0 // pred_check
    _
  $region15: #{dap_block.9} parent=0 // pred_check_branch
    %16 = sbr.rel (0) target = $region17
  $region16: #{dap_block.9} parent=0 // pred_region
    _
  $region17: #{dap_block.9} parent=0 // pred_fallthru
    _
  %p18 = scmp.eq.s32.totalorder 0, 0
  // Predicated region
  $region18: #{dap_block.9} parent=0 // pred_check
    %p19 = pneg %p18
  $region19: #{dap_block.9} parent=0 // pred_check_branch
    %21 = sbr.rel (%p19) target = $region21
  $region20: #{dap_block.9} parent=0 // pred_region
    %22 = vst [vmem:[#allocation2] sm:$0xff] 0.0
    %23 = vst [vmem:[#allocation2 + $0x8] sm:$0xff] 0.0
    %24 = vst [vmem:[#allocation2 + $0x10] sm:$0xff] 0.0
    %25 = vst [vmem:[#allocation2 + $0x18] sm:$0xff] 0.0
    %26 = vst [vmem:[#allocation2 + $0x20] sm:$0xff] 0.0
    %27 = vst [vmem:[#allocation2 + $0x28] sm:$0xff] 0.0
    %28 = vst [vmem:[#allocation2 + $0x30] sm:$0xff] 0.0
    %29 = vst [vmem:[#allocation2 + $0x38] sm:$0xff] 0.0
    %30 = vst [vmem:[#allocation2 + $0x40] sm:$0xff] 0.0
    %31 = vst [vmem:[#allocation2 + $0x48] sm:$0xff] 0.0
    %32 = vst [vmem:[#allocation2 + $0x50] sm:$0xff] 0.0
    %33 = vst [vmem:[#allocation2 + $0x58] sm:$0xff] 0.0
    %34 = vst [vmem:[#allocation2 + $0x60] sm:$0xff] 0.0
    %35 = vst [vmem:[#allocation2 + $0x68] sm:$0xff] 0.0
    %36 = vst [vmem:[#allocation2 + $0x70] sm:$0xff] 0.0
    %37 = vst [vmem:[#allocation2 + $0x78] sm:$0xff] 0.0
  $region21: #{dap_block.9} parent=0 // pred_fallthru
    _
  %v38 = vld [vmem:[%s0] sm:$0xf]
  %v39 = vld [vmem:[%s0 + $0x4] sm:$0xf]
  %v40 = vld [vmem:[%s0 + $0x8] sm:$0xf]
  %v41 = vld [vmem:[%s0 + $0xc] sm:$0xf]
  %v42 = vld [vmem:[%s0 + $0x10] sm:$0xf]
  %v43 = vld [vmem:[%s0 + $0x14] sm:$0xf]
  %v44 = vld [vmem:[%s0 + $0x18] sm:$0xf]
  %v45 = vld [vmem:[%s0 + $0x1c] sm:$0xf]
  %v46 = vld [vmem:[%s0 + $0x20] sm:$0xf]
  %v47 = vld [vmem:[%s0 + $0x24] sm:$0xf]
  %v48 = vld [vmem:[%s0 + $0x28] sm:$0xf]
  %v49 = vld [vmem:[%s0 + $0x2c] sm:$0xf]
  %v50 = vld [vmem:[%s0 + $0x30] sm:$0xf]
  %v51 = vld [vmem:[%s0 + $0x34] sm:$0xf]
  %v52 = vld [vmem:[%s0 + $0x38] sm:$0xf]
  %v53 = vld [vmem:[%s0 + $0x3c] sm:$0xf]
  %v54 = vld [vmem:[#allocation2] sm:$0xff]
  %v55 = vld [vmem:[#allocation2 + $0x8] sm:$0xff]
  %v56 = vld [vmem:[#allocation2 + $0x10] sm:$0xff]
  %v57 = vld [vmem:[#allocation2 + $0x18] sm:$0xff]
  %v58 = vld [vmem:[#allocation2 + $0x20] sm:$0xff]
  %v59 = vld [vmem:[#allocation2 + $0x28] sm:$0xff]
  %v60 = vld [vmem:[#allocation2 + $0x30] sm:$0xff]
  %v61 = vld [vmem:[#allocation2 + $0x38] sm:$0xff]
  %v62 = vld [vmem:[#allocation2 + $0x40] sm:$0xff]
  %v63 = vld [vmem:[#allocation2 + $0x48] sm:$0xff]
  %v64 = vld [vmem:[#allocation2 + $0x50] sm:$0xff]
  %v65 = vld [vmem:[#allocation2 + $0x58] sm:$0xff]
  %v66 = vld [vmem:[#allocation2 + $0x60] sm:$0xff]
  %v67 = vld [vmem:[#allocation2 + $0x68] sm:$0xff]
  %v68 = vld [vmem:[#allocation2 + $0x70] sm:$0xff]
  %v69 = vld [vmem:[#allocation2 + $0x78] sm:$0xff]
  %v70 = vld [vmem:[%s1] sm:$0xf]
  %v71 = vld [vmem:[%s1 + $0x4] sm:$0xf]
  %v72 = vld [vmem:[%s1 + $0x8] sm:$0xf]
  %v73 = vld [vmem:[%s1 + $0xc] sm:$0xf]
  %v74 = vld [vmem:[%s1 + $0x10] sm:$0xf]
  %v75 = vld [vmem:[%s1 + $0x14] sm:$0xf]
  %v76 = vld [vmem:[%s1 + $0x18] sm:$0xf]
  %v77 = vld [vmem:[%s1 + $0x1c] sm:$0xf]
  %v78 = vld [vmem:[%s1 + $0x20] sm:$0xf]
  %v79 = vld [vmem:[%s1 + $0x24] sm:$0xf]
  %v80 = vld [vmem:[%s1 + $0x28] sm:$0xf]
  %v81 = vld [vmem:[%s1 + $0x2c] sm:$0xf]
  %v82 = vld [vmem:[%s1 + $0x30] sm:$0xf]
  %v83 = vld [vmem:[%s1 + $0x34] sm:$0xf]
  %v84 = vld [vmem:[%s1 + $0x38] sm:$0xf]
  %v85 = vld [vmem:[%s1 + $0x3c] sm:$0xf]
  %v102 = vunpack.c.l.b16 %v38
  %v103 = vunpack.c.l.b16 %v39
  %v104 = vunpack.c.l.b16 %v40
  %v105 = vunpack.c.l.b16 %v41
  %v106 = vunpack.c.l.b16 %v42
  %v107 = vunpack.c.l.b16 %v43
  %v108 = vunpack.c.l.b16 %v44
  %v109 = vunpack.c.l.b16 %v45
  %v110 = vunpack.c.l.b16 %v46
  %v111 = vunpack.c.l.b16 %v47
  %v112 = vunpack.c.l.b16 %v48
  %v113 = vunpack.c.l.b16 %v49
  %v114 = vunpack.c.l.b16 %v50
  %v115 = vunpack.c.l.b16 %v51
  %v116 = vunpack.c.l.b16 %v52
  %v117 = vunpack.c.l.b16 %v53
  %v118 = vpack.c.b16 %v103, %v102
  %v119 = vpack.c.b16 %v105, %v104
  %v120 = vpack.c.b16 %v107, %v106
  %v121 = vpack.c.b16 %v109, %v108
  %v122 = vpack.c.b16 %v111, %v110
  %v123 = vpack.c.b16 %v113, %v112
  %v124 = vpack.c.b16 %v115, %v114
  %v125 = vpack.c.b16 %v117, %v116
  %v150 = vunpack.c.l.b16 %v70
  %v151 = vunpack.c.l.b16 %v71
  %v152 = vunpack.c.l.b16 %v72
  %v153 = vunpack.c.l.b16 %v73
  %v154 = vunpack.c.l.b16 %v74
  %v155 = vunpack.c.l.b16 %v75
  %v156 = vunpack.c.l.b16 %v76
  %v157 = vunpack.c.l.b16 %v77
  %v158 = vunpack.c.l.b16 %v78
  %v159 = vunpack.c.l.b16 %v79
  %v160 = vunpack.c.l.b16 %v80
  %v161 = vunpack.c.l.b16 %v81
  %v162 = vunpack.c.l.b16 %v82
  %v163 = vunpack.c.l.b16 %v83
  %v164 = vunpack.c.l.b16 %v84
  %v165 = vunpack.c.l.b16 %v85
  %v166 = vpack.c.b16 %v151, %v150
  %v167 = vpack.c.b16 %v153, %v152
  %v168 = vpack.c.b16 %v155, %v154
  %v169 = vpack.c.b16 %v157, %v156
  %v170 = vpack.c.b16 %v159, %v158
  %v171 = vpack.c.b16 %v161, %v160
  %v172 = vpack.c.b16 %v163, %v162
  %v173 = vpack.c.b16 %v165, %v164
  %182 = vmatprep.subr.bf16.mxu0 0
  %183 = vmatpush1.bf16.msra.mxu0 %v173
  %184 = vmatprep.subr.bf16.mxu0 0
  %185 = vmatpush1.bf16.msra.mxu0 %v172
  %186 = vmatprep.subr.bf16.mxu0 0
  %187 = vmatpush1.bf16.msra.mxu0 %v171
  %188 = vmatprep.subr.bf16.mxu0 0
  %189 = vmatpush1.bf16.msra.mxu0 %v170
  %190 = vmatprep.subr.bf16.mxu0 0
  %191 = vmatpush1.bf16.msra.mxu0 %v169
  %192 = vmatprep.subr.bf16.mxu0 0
  %193 = vmatpush1.bf16.msra.mxu0 %v168
  %194 = vmatprep.subr.bf16.mxu0 0
  %195 = vmatpush1.bf16.msra.mxu0 %v167
  %196 = vmatprep.subr.bf16.mxu0 0
  %197 = vmatpush1.bf16.msra.mxu0 %v166
  %198 = vmatprep.subr.bf16.mxu0 0
  %199 = vmatpush2.bf16.msra.mxu0 0
  %200 = vmatprep.subr.bf16.mxu0 0
  %201 = vmatpush2.bf16.msra.mxu0 0
  %202 = vmatprep.subr.bf16.mxu0 0
  %203 = vmatpush2.bf16.msra.mxu0 0
  %204 = vmatprep.subr.bf16.mxu0 0
  %205 = vmatpush2.bf16.msra.mxu0 0
  %206 = vmatprep.subr.bf16.mxu0 0
  %207 = vmatpush2.bf16.msra.mxu0 0
  %208 = vmatprep.subr.bf16.mxu0 0
  %209 = vmatpush2.bf16.msra.mxu0 0
  %210 = vmatprep.subr.bf16.mxu0 0
  %211 = vmatpush2.bf16.msra.mxu0 0
  %212 = vmatprep.subr.bf16.mxu0 0
  %213 = vmatpush2.bf16.msra.mxu0 0
  %214 = vmatprep.mubr.bf16.mxu0 0
  %215 = vmatmul.mubr.bf16.gmra.mxu0 %v118
  %v216 = vpop.f32.mrf.mxu0
  %v217 = vadd.f32 0.0, %v216
  %v218 = vpop.f32.mrf.mxu0
  %v219 = vpop.f32.mrf.mxu0
  %v220 = vadd.f32 0.0, %v219
  %v221 = vpop.f32.mrf.mxu0
  %222 = vmatprep.mubr.bf16.mxu0 0
  %223 = vmatmul.mubr.bf16.gmra.mxu0 %v119
  %v224 = vpop.f32.mrf.mxu0
  %v225 = vadd.f32 0.0, %v224
  %v226 = vpop.f32.mrf.mxu0
  %v227 = vpop.f32.mrf.mxu0
  %v228 = vadd.f32 0.0, %v227
  %v229 = vpop.f32.mrf.mxu0
  %230 = vmatprep.mubr.bf16.mxu0 0
  %231 = vmatmul.mubr.bf16.gmra.mxu0 %v120
  %v232 = vpop.f32.mrf.mxu0
  %v233 = vadd.f32 0.0, %v232
  %v234 = vpop.f32.mrf.mxu0
  %v235 = vpop.f32.mrf.mxu0
  %v236 = vadd.f32 0.0, %v235
  %v237 = vpop.f32.mrf.mxu0
  %238 = vmatprep.mubr.bf16.mxu0 0
  %239 = vmatmul.mubr.bf16.gmra.mxu0 %v121
  %v240 = vpop.f32.mrf.mxu0
  %v241 = vadd.f32 0.0, %v240
  %v242 = vpop.f32.mrf.mxu0
  %v243 = vpop.f32.mrf.mxu0
  %v244 = vadd.f32 0.0, %v243
  %v245 = vpop.f32.mrf.mxu0
  %246 = vmatprep.mubr.bf16.mxu0 0
  %247 = vmatmul.mubr.bf16.gmra.mxu0 %v122
  %v248 = vpop.f32.mrf.mxu0
  %v249 = vadd.f32 0.0, %v248
  %v250 = vpop.f32.mrf.mxu0
  %v251 = vpop.f32.mrf.mxu0
  %v252 = vadd.f32 0.0, %v251
  %v253 = vpop.f32.mrf.mxu0
  %254 = vmatprep.mubr.bf16.mxu0 0
  %255 = vmatmul.mubr.bf16.gmra.mxu0 %v123
  %v256 = vpop.f32.mrf.mxu0
  %v257 = vadd.f32 0.0, %v256
  %v258 = vpop.f32.mrf.mxu0
  %v259 = vpop.f32.mrf.mxu0
  %v260 = vadd.f32 0.0, %v259
  %v261 = vpop.f32.mrf.mxu0
  %262 = vmatprep.mubr.bf16.mxu0 0
  %263 = vmatmul.mubr.bf16.gmra.mxu0 %v124
  %v264 = vpop.f32.mrf.mxu0
  %v265 = vadd.f32 0.0, %v264
  %v266 = vpop.f32.mrf.mxu0
  %v267 = vpop.f32.mrf.mxu0
  %v268 = vadd.f32 0.0, %v267
  %v269 = vpop.f32.mrf.mxu0
  %270 = vmatprep.mubr.bf16.mxu0 0
  %271 = vmatmul.mubr.bf16.gmra.mxu0 %v125
  %v272 = vpop.f32.mrf.mxu0
  %v273 = vadd.f32 0.0, %v272
  %v274 = vpop.f32.mrf.mxu0
  %v275 = vpop.f32.mrf.mxu0
  %v276 = vadd.f32 0.0, %v275
  %v277 = vpop.f32.mrf.mxu0
  %278 = vdwg.mxu0
  %v279 = vadd.f32 %v54, %v217
  %v280 = vadd.f32 %v55, %v220
  %v281 = vadd.f32 %v56, %v225
  %v282 = vadd.f32 %v57, %v228
  %v283 = vadd.f32 %v58, %v233
  %v284 = vadd.f32 %v59, %v236
  %v285 = vadd.f32 %v60, %v241
  %v286 = vadd.f32 %v61, %v244
  %v287 = vadd.f32 %v62, %v249
  %v288 = vadd.f32 %v63, %v252
  %v289 = vadd.f32 %v64, %v257
  %v290 = vadd.f32 %v65, %v260
  %v291 = vadd.f32 %v66, %v265
  %v292 = vadd.f32 %v67, %v268
  %v293 = vadd.f32 %v68, %v273
  %v294 = vadd.f32 %v69, %v276
  %295 = vst [vmem:[#allocation2] sm:$0xff] %v279
  %296 = vst [vmem:[#allocation2 + $0x8] sm:$0xff] %v280
  %297 = vst [vmem:[#allocation2 + $0x10] sm:$0xff] %v281
  %298 = vst [vmem:[#allocation2 + $0x18] sm:$0xff] %v282
  %299 = vst [vmem:[#allocation2 + $0x20] sm:$0xff] %v283
  %300 = vst [vmem:[#allocation2 + $0x28] sm:$0xff] %v284
  %301 = vst [vmem:[#allocation2 + $0x30] sm:$0xff] %v285
  %302 = vst [vmem:[#allocation2 + $0x38] sm:$0xff] %v286
  %303 = vst [vmem:[#allocation2 + $0x40] sm:$0xff] %v287
  %304 = vst [vmem:[#allocation2 + $0x48] sm:$0xff] %v288
  %305 = vst [vmem:[#allocation2 + $0x50] sm:$0xff] %v289
  %306 = vst [vmem:[#allocation2 + $0x58] sm:$0xff] %v290
  %307 = vst [vmem:[#allocation2 + $0x60] sm:$0xff] %v291
  %308 = vst [vmem:[#allocation2 + $0x68] sm:$0xff] %v292
  %309 = vst [vmem:[#allocation2 + $0x70] sm:$0xff] %v293
  %310 = vst [vmem:[#allocation2 + $0x78] sm:$0xff] %v294
  // Predicated region
  $region22: #{dap_block.9} parent=0 // pred_check
    %p311 = pneg %p18
  $region23: #{dap_block.9} parent=0 // pred_check_branch
    %313 = sbr.rel (%p311) target = $region25
  $region24: #{dap_block.9} parent=0 // pred_region
    %v314 = vld [vmem:[#allocation2] sm:$0xff]
    %v315 = vld [vmem:[#allocation2 + $0x8] sm:$0xff]
    %v316 = vld [vmem:[#allocation2 + $0x10] sm:$0xff]
    %v317 = vld [vmem:[#allocation2 + $0x18] sm:$0xff]
    %v318 = vld [vmem:[#allocation2 + $0x20] sm:$0xff]
    %v319 = vld [vmem:[#allocation2 + $0x28] sm:$0xff]
    %v320 = vld [vmem:[#allocation2 + $0x30] sm:$0xff]
    %v321 = vld [vmem:[#allocation2 + $0x38] sm:$0xff]
    %v322 = vld [vmem:[#allocation2 + $0x40] sm:$0xff]
    %v323 = vld [vmem:[#allocation2 + $0x48] sm:$0xff]
    %v324 = vld [vmem:[#allocation2 + $0x50] sm:$0xff]
    %v325 = vld [vmem:[#allocation2 + $0x58] sm:$0xff]
    %v326 = vld [vmem:[#allocation2 + $0x60] sm:$0xff]
    %v327 = vld [vmem:[#allocation2 + $0x68] sm:$0xff]
    %v328 = vld [vmem:[#allocation2 + $0x70] sm:$0xff]
    %v329 = vld [vmem:[#allocation2 + $0x78] sm:$0xff]
    %v330 = vld [vmem:[%s2] sm:$0x1]
    %v332 = vlaneseq
    %v333 = vshrl.u32 %v332, 7
    %v334 = vsub.s32 0, %v333
    %v335 = vrot.slane %v330, %v334
    %v337 = vmul.f32 %v314, %v335
    %v338 = vmul.f32 %v315, %v335
    %v339 = vmul.f32 %v316, %v335
    %v340 = vmul.f32 %v317, %v335
    %v341 = vmul.f32 %v318, %v335
    %v342 = vmul.f32 %v319, %v335
    %v343 = vmul.f32 %v320, %v335
    %v344 = vmul.f32 %v321, %v335
    %v345 = vmul.f32 %v322, %v335
    %v346 = vmul.f32 %v323, %v335
    %v347 = vmul.f32 %v324, %v335
    %v348 = vmul.f32 %v325, %v335
    %v349 = vmul.f32 %v326, %v335
    %v350 = vmul.f32 %v327, %v335
    %v351 = vmul.f32 %v328, %v335
    %v352 = vmul.f32 %v329, %v335
    %v353 = vld [vmem:[%s3] sm:$0x1]
    %v355 = vlaneseq
    %v356 = vshrl.u32 %v355, 7
    %v357 = vsub.s32 0, %v356
    %v358 = vrot.slane %v353, %v357
    %v360 = vadd.f32 %v337, %v358
    %v361 = vadd.f32 %v338, %v358
    %v362 = vadd.f32 %v339, %v358
    %v363 = vadd.f32 %v340, %v358
    %v364 = vadd.f32 %v341, %v358
    %v365 = vadd.f32 %v342, %v358
    %v366 = vadd.f32 %v343, %v358
    %v367 = vadd.f32 %v344, %v358
    %v368 = vadd.f32 %v345, %v358
    %v369 = vadd.f32 %v346, %v358
    %v370 = vadd.f32 %v347, %v358
    %v371 = vadd.f32 %v348, %v358
    %v372 = vadd.f32 %v349, %v358
    %v373 = vadd.f32 %v350, %v358
    %v374 = vadd.f32 %v351, %v358
    %v375 = vadd.f32 %v352, %v358
    %v376 = vpack.c.bf16 %v361, %v360
    %v377 = vpack.c.bf16 %v363, %v362
    %v378 = vpack.c.bf16 %v365, %v364
    %v379 = vpack.c.bf16 %v367, %v366
    %v380 = vpack.c.bf16 %v369, %v368
    %v381 = vpack.c.bf16 %v371, %v370
    %v382 = vpack.c.bf16 %v373, %v372
    %v383 = vpack.c.bf16 %v375, %v374
    %v392 = vunpack.c.l.b16 %v376
    %v393 = vunpack.c.h.b16 %v376
    %v394 = vunpack.c.l.b16 %v377
    %v395 = vunpack.c.h.b16 %v377
    %v396 = vunpack.c.l.b16 %v378
    %v397 = vunpack.c.h.b16 %v378
    %v398 = vunpack.c.l.b16 %v379
    %v399 = vunpack.c.h.b16 %v379
    %v400 = vunpack.c.l.b16 %v380
    %v401 = vunpack.c.h.b16 %v380
    %v402 = vunpack.c.l.b16 %v381
    %v403 = vunpack.c.h.b16 %v381
    %v404 = vunpack.c.l.b16 %v382
    %v405 = vunpack.c.h.b16 %v382
    %v406 = vunpack.c.l.b16 %v383
    %v407 = vunpack.c.h.b16 %v383
    %v408 = vpack.c.b16 %v392, %v392
    %v409 = vpack.c.b16 %v393, %v393
    %v410 = vpack.c.b16 %v394, %v394
    %v411 = vpack.c.b16 %v395, %v395
    %v412 = vpack.c.b16 %v396, %v396
    %v413 = vpack.c.b16 %v397, %v397
    %v414 = vpack.c.b16 %v398, %v398
    %v415 = vpack.c.b16 %v399, %v399
    %v416 = vpack.c.b16 %v400, %v400
    %v417 = vpack.c.b16 %v401, %v401
    %v418 = vpack.c.b16 %v402, %v402
    %v419 = vpack.c.b16 %v403, %v403
    %v420 = vpack.c.b16 %v404, %v404
    %v421 = vpack.c.b16 %v405, %v405
    %v422 = vpack.c.b16 %v406, %v406
    %v423 = vpack.c.b16 %v407, %v407
    %440 = vst [vmem:[%s4] sm:$0xf] %v408
    %441 = vst [vmem:[%s4 + $0x4] sm:$0xf] %v409
    %442 = vst [vmem:[%s4 + $0x8] sm:$0xf] %v410
    %443 = vst [vmem:[%s4 + $0xc] sm:$0xf] %v411
    %444 = vst [vmem:[%s4 + $0x10] sm:$0xf] %v412
    %445 = vst [vmem:[%s4 + $0x14] sm:$0xf] %v413
    %446 = vst [vmem:[%s4 + $0x18] sm:$0xf] %v414
    %447 = vst [vmem:[%s4 + $0x1c] sm:$0xf] %v415
    %448 = vst [vmem:[%s4 + $0x20] sm:$0xf] %v416
    %449 = vst [vmem:[%s4 + $0x24] sm:$0xf] %v417
    %450 = vst [vmem:[%s4 + $0x28] sm:$0xf] %v418
    %451 = vst [vmem:[%s4 + $0x2c] sm:$0xf] %v419
    %452 = vst [vmem:[%s4 + $0x30] sm:$0xf] %v420
    %453 = vst [vmem:[%s4 + $0x34] sm:$0xf] %v421
    %454 = vst [vmem:[%s4 + $0x38] sm:$0xf] %v422
    %455 = vst [vmem:[%s4 + $0x3c] sm:$0xf] %v423
  $region25: #{dap_block.9} parent=0 // pred_fallthru
    _
  // Predicated region
  $region26: #{dap_block.9} parent=0 // pred_check
    _
  $region27: #{dap_block.9} parent=0 // pred_check_branch
    %457 = sbr.rel (0) target = $region29
  $region28: #{dap_block.9} parent=0 // pred_region
    _
  $region29: #{dap_block.9} parent=0 // pred_fallthru
    _
  // Predicated region
  $region30: #{dap_block.9} parent=0 // pred_check
    _
  $region31: #{dap_block.9} parent=0 // pred_check_branch
    %459 = sbr.rel (0) target = $region33
  $region32: #{dap_block.9} parent=0 // pred_region
    _
  $region33: #{dap_block.9} parent=0 // pred_fallthru
    _

// kernel: dap_block.10
$region0: #{dap_block.10}
  #allocation0 [shape = 'u32[]', space=smem, size = 0x4, offset = 0x4, fixed_abs, tag = 'smem constant byte address 0x4 - core index']
  #allocation1 [shape = 'u32[144,128]{1,0:T(1,128)}', space=vmem, size = 0x12000, scoped, tag = 'internal scratch']
  #allocation2 [shape = 'f32[64,1]{1,0:T(8,128)}', space=vmem, size = 0x8000, scoped, tag = 'scratch operand']
  #allocation3 [shape = 'f32[64,1]{1,0:T(8,128)}', space=vmem, size = 0x8000, scoped, tag = 'scratch operand']
  #allocation4 [shape = 'f32[64,16]{1,0:T(8,128)}', space=vmem, size = 0x8000, scoped, tag = 'scratch operand']
  #allocation5 [shape = 'f32[1,1]{1,0:T(1,128)S(6)}', space=smem, size = 0x200, scoped, tag = 'scoped memory for dap_block.10']
  %s0 = inlined_call_operand.<no memory space> [shape: f32[1,1], index: 0, kind: input, shape index: {}]
  %s1 = inlined_call_operand.vmem [shape: bf16[2,64,2], index: 1, kind: input, shape index: {}]
  %s2 = inlined_call_operand.vmem [shape: bf16[2,2,64], index: 2, kind: input, shape index: {}]
  %s3 = inlined_call_operand.vmem [shape: bf16[2,64,16], index: 3, kind: input, shape index: {}]
  %s4 = inlined_call_operand.vmem [shape: bf16[2,64,16], index: 4, kind: input, shape index: {}]
  %s5 = inlined_call_operand.vmem [shape: bf16[2,64,16], index: 5, kind: output, shape index: {}]
  %s6 = sld [smem:[#allocation0]]
  $region61: #{dap_block.10} parent=0
    _
  %s8 = ssub.s32 1, %s6
  %s9 = scalar_select 0, %s8, %s6
  %10 = sst [smem:[#allocation5]] %s0
  loop: start=0, step=1, limit=4
  $region2: #{dap_block.10} parent=0 // loop_pre_header
    _
  $region3: #{dap_block.10} parent=0 // loop_header
    %s12 = sphi 0, %s16
    %p13 = scmp.ge.s32.totalorder %s12, 4
    %s19 = sphi 0, %s38
    %s20 = sphi 0, %s34
    %s21 = sphi 0, %s30
    %s22 = sphi 0, %s19
    %s23 = sphi 0, %s20
    %s24 = sphi 0, %s21
    %s25 = sphi 0, %s22
    %s26 = sphi 0, %s23
    %s27 = sphi 0, %s24
    %s39 = sphi 0, %s39
    %s41 = sphi 0, %s39
    %s42 = sphi 0, %s41
    %s56 = sphi 0, %s42
    %s64 = sphi 0, %s66
    %s67 = sphi 0, %s64
    %s68 = sphi 0, %s67
    %s84 = sphi 0, %s68
    %s92 = sphi 0, %s94
    %s95 = sphi 0, %s92
    %s96 = sphi 0, %s95
    %s112 = sphi 0, %s96
    %s120 = sphi 0, %s122
    %s123 = sphi 0, %s120
    %s124 = sphi 0, %s123
    %s140 = sphi 0, %s124
    %s148 = sphi 0, %s150
    %s151 = sphi 0, %s148
    %s152 = sphi 0, %s151
    %s168 = sphi 0, %s152
    %s176 = sphi 0, %s178
    %s179 = sphi 0, %s176
    %s180 = sphi 0, %s179
    %s196 = sphi 0, %s180
  $region4: #{dap_block.10} parent=0 // loop_header_branch
    %15 = sbr.rel (%p13) target = $region8
  $region5: #{dap_block.10} parent=0 // loop_body
    %s17 = ssub.s32 %s12, 1
    %s18 = ssub.s32 %s12, 2
    %s28 = sadd.s32 1, %s21
    %p29 = scmp.ge.s32.totalorder %s28, 1
    %s30 = scalar_select %p29, 0, %s28
    %s31 = sadd.s32 1, %s20
    %s32 = scalar_select %p29, %s31, %s20
    %p33 = scmp.ge.s32.totalorder %s32, 1
    %s34 = scalar_select %p33, 0, %s32
    %s35 = sadd.s32 1, %s19
    %s36 = scalar_select %p33, %s35, %s19
    %p37 = scmp.ge.s32.totalorder %s36, 2
    %s38 = scalar_select %p37, 0, %s36
    %s40 = sadd.s32 %s39, 1
    %p43 = scmp.eq.s32.totalorder %s12, 1
    %p44 = scmp.ne.s32.totalorder %s39, %s41
    %p45 = scmp.eq.s32.totalorder %s12, 0
    %p46 = por %p44, %p45
    %p47 = scmp.ne.s32.totalorder %s39, %s41
    %p48 = scmp.eq.s32.totalorder %s17, 1
    %p49 = por %p47, %p48
    %p50 = scmp.ne.s32.totalorder %s41, %s42
    %p51 = scmp.eq.s32.totalorder %s17, 0
    %p52 = por %p50, %p51
    %p53 = scmp.ne.s32.totalorder %s41, %s42
    %p54 = scmp.eq.s32.totalorder %s18, 1
    %p55 = por %p53, %p54
    %p57 = scmp.ne.s32.totalorder %s42, %s56
    %p58 = scmp.eq.s32.totalorder %s18, 0
    %p59 = por %p57, %p58
    %s60 = ssub.s32 %s19, %s38
    %s61 = ssub.s32 %s20, %s34
    %s62 = sor.u32 %s60, %s61
    %p63 = scmp.eq.s32.totalorder %s62, 0
    %s65 = sadd.s32 %s64, 1
    %s66 = scalar_select %p63, %s64, %s65
    %p69 = pneg %p63
    %p70 = scmp.eq.s32.totalorder %s12, 1
    %p71 = por %p69, %p70
    %p72 = scmp.ne.s32.totalorder %s64, %s67
    %p73 = scmp.eq.s32.totalorder %s12, 0
    %p74 = por %p72, %p73
    %p75 = scmp.ne.s32.totalorder %s64, %s67
    %p76 = scmp.eq.s32.totalorder %s17, 1
    %p77 = por %p75, %p76
    %p78 = scmp.ne.s32.totalorder %s67, %s68
    %p79 = scmp.eq.s32.totalorder %s17, 0
    %p80 = por %p78, %p79
    %p81 = scmp.ne.s32.totalorder %s67, %s68
    %p82 = scmp.eq.s32.totalorder %s18, 1
    %p83 = por %p81, %p82
    %p85 = scmp.ne.s32.totalorder %s68, %s84
    %p86 = scmp.eq.s32.totalorder %s18, 0
    %p87 = por %p85, %p86
    %s88 = ssub.s32 %s19, %s38
    %s89 = ssub.s32 %s21, %s30
    %s90 = sor.u32 %s88, %s89
    %p91 = scmp.eq.s32.totalorder %s90, 0
    %s93 = sadd.s32 %s92, 1
    %s94 = scalar_select %p91, %s92, %s93
    %p97 = pneg %p91
    %p98 = scmp.eq.s32.totalorder %s12, 1
    %p99 = por %p97, %p98
    %p100 = scmp.ne.s32.totalorder %s92, %s95
    %p101 = scmp.eq.s32.totalorder %s12, 0
    %p102 = por %p100, %p101
    %p103 = scmp.ne.s32.totalorder %s92, %s95
    %p104 = scmp.eq.s32.totalorder %s17, 1
    %p105 = por %p103, %p104
    %p106 = scmp.ne.s32.totalorder %s95, %s96
    %p107 = scmp.eq.s32.totalorder %s17, 0
    %p108 = por %p106, %p107
    %p109 = scmp.ne.s32.totalorder %s95, %s96
    %p110 = scmp.eq.s32.totalorder %s18, 1
    %p111 = por %p109, %p110
    %p113 = scmp.ne.s32.totalorder %s96, %s112
    %p114 = scmp.eq.s32.totalorder %s18, 0
    %p115 = por %p113, %p114
    %s116 = ssub.s32 %s19, %s38
    %s117 = ssub.s32 %s21, %s30
    %s118 = sor.u32 %s116, %s117
    %p119 = scmp.eq.s32.totalorder %s118, 0
    %s121 = sadd.s32 %s120, 1
    %s122 = scalar_select %p119, %s120, %s121
    %p125 = pneg %p119
    %p126 = scmp.eq.s32.totalorder %s12, 1
    %p127 = por %p125, %p126
    %p128 = scmp.ne.s32.totalorder %s120, %s123
    %p129 = scmp.eq.s32.totalorder %s12, 0
    %p130 = por %p128, %p129
    %p131 = scmp.ne.s32.totalorder %s120, %s123
    %p132 = scmp.eq.s32.totalorder %s17, 1
    %p133 = por %p131, %p132
    %p134 = scmp.ne.s32.totalorder %s123, %s124
    %p135 = scmp.eq.s32.totalorder %s17, 0
    %p136 = por %p134, %p135
    %p137 = scmp.ne.s32.totalorder %s123, %s124
    %p138 = scmp.eq.s32.totalorder %s18, 1
    %p139 = por %p137, %p138
    %p141 = scmp.ne.s32.totalorder %s124, %s140
    %p142 = scmp.eq.s32.totalorder %s18, 0
    %p143 = por %p141, %p142
    %s144 = ssub.s32 %s19, %s38
    %s145 = ssub.s32 %s20, %s34
    %s146 = sor.u32 %s144, %s145
    %p147 = scmp.eq.s32.totalorder %s146, 0
    %s149 = sadd.s32 %s148, 1
    %s150 = scalar_select %p147, %s148, %s149
    %p153 = pneg %p147
    %p154 = scmp.eq.s32.totalorder %s12, 1
    %p155 = por %p153, %p154
    %p156 = scmp.ne.s32.totalorder %s148, %s151
    %p157 = scmp.eq.s32.totalorder %s12, 0
    %p158 = por %p156, %p157
    %p159 = scmp.ne.s32.totalorder %s148, %s151
    %p160 = scmp.eq.s32.totalorder %s17, 1
    %p161 = por %p159, %p160
    %p162 = scmp.ne.s32.totalorder %s151, %s152
    %p163 = scmp.eq.s32.totalorder %s17, 0
    %p164 = por %p162, %p163
    %p165 = scmp.ne.s32.totalorder %s151, %s152
    %p166 = scmp.eq.s32.totalorder %s18, 1
    %p167 = por %p165, %p166
    %p169 = scmp.ne.s32.totalorder %s152, %s168
    %p170 = scmp.eq.s32.totalorder %s18, 0
    %p171 = por %p169, %p170
    %s172 = ssub.s32 %s19, %s38
    %s173 = ssub.s32 %s20, %s34
    %s174 = sor.u32 %s172, %s173
    %p175 = scmp.eq.s32.totalorder %s174, 0
    %s177 = sadd.s32 %s176, 1
    %s178 = scalar_select %p175, %s176, %s177
    %p181 = pneg %p175
    %p182 = scmp.eq.s32.totalorder %s12, 1
    %p183 = por %p181, %p182
    %p184 = scmp.ne.s32.totalorder %s176, %s179
    %p185 = scmp.eq.s32.totalorder %s12, 0
    %p186 = por %p184, %p185
    %p187 = scmp.ne.s32.totalorder %s176, %s179
    %p188 = scmp.eq.s32.totalorder %s17, 1
    %p189 = por %p187, %p188
    %p190 = scmp.ne.s32.totalorder %s179, %s180
    %p191 = scmp.eq.s32.totalorder %s17, 0
    %p192 = por %p190, %p191
    %p193 = scmp.ne.s32.totalorder %s179, %s180
    %p194 = scmp.eq.s32.totalorder %s18, 1
    %p195 = por %p193, %p194
    %p197 = scmp.ne.s32.totalorder %s180, %s196
    %p198 = scmp.eq.s32.totalorder %s18, 0
    %p199 = por %p197, %p198
    %p200 = scmp.le.s32.totalorder 1, %s12
    %p201 = scmp.lt.s32.totalorder %s12, 3
    %p202 = pnand %p200, %p201
    %p203 = pneg %p202
    // Predicated region
    $region9: #{dap_block.10} parent=5 // pred_check
      _
    $region10: #{dap_block.10} parent=5 // pred_check_branch
      %205 = sbr.rel (%p202) target = $region12
    $region11: #{dap_block.10} parent=5 // pred_region
      %s206 = ssub.s32 %s12, 1
      // Predicated region
      $region13: #{dap_block.10} parent=11 // pred_check
        %p207 = pneg %p52
      $region14: #{dap_block.10} parent=11 // pred_check_branch
        %209 = sbr.rel (%p207) target = $region16
      $region15: #{dap_block.10} parent=11 // pred_region
        _
      $region16: #{dap_block.10} parent=11 // pred_fallthru
        _
    $region12: #{dap_block.10} parent=5 // pred_fallthru
      _
    %p210 = scmp.lt.s32.totalorder %s12, 2
    // Predicated region
    $region17: #{dap_block.10} parent=5 // pred_check
      %p211 = pneg %p210
    $region18: #{dap_block.10} parent=5 // pred_check_branch
      %213 = sbr.rel (%p211) target = $region20
    $region19: #{dap_block.10} parent=5 // pred_region
      // Predicated region
      $region21: #{dap_block.10} parent=19 // pred_check
        %p214 = pneg %p74
      $region22: #{dap_block.10} parent=19 // pred_check_branch
        %216 = sbr.rel (%p214) target = $region24
      $region23: #{dap_block.10} parent=19 // pred_region
        %s217 = smul.u32 8, %s20
        %p218 = scmp.lt.s32.totalorder %s19, 1
        %s219 = scalar_select %p218, %s19, 1
        %p220 = scmp.lt.s32.totalorder %s217, 7
        %s221 = scalar_select %p220, %s217, 7
        %s222 = smul.addr %s219, 8
        %s223 = sadd.s32 %s221, %s222
        %s224 = smul.addr %s223, 4
        %s225 = scalar_lea.vmem %s1, %s224
        %s226 = smul.u32 8, %s20
      $region24: #{dap_block.10} parent=19 // pred_fallthru
        _
      // Predicated region
      $region25: #{dap_block.10} parent=19 // pred_check
        %p227 = pneg %p102
      $region26: #{dap_block.10} parent=19 // pred_check_branch
        %229 = sbr.rel (%p227) target = $region28
      $region27: #{dap_block.10} parent=19 // pred_region
        %p230 = scmp.lt.s32.totalorder %s19, 1
        %s231 = scalar_select %p230, %s19, 1
        %p232 = scmp.lt.s32.totalorder %s21, 0
        %s233 = scalar_select %p232, %s21, 0
        %s234 = sadd.s32 %s233, %s231
        %s235 = scalar_lea.vmem %s2, %s234
      $region28: #{dap_block.10} parent=19 // pred_fallthru
        _
      // Predicated region
      $region29: #{dap_block.10} parent=19 // pred_check
        %p236 = pneg %p130
      $region30: #{dap_block.10} parent=19 // pred_check_branch
        %238 = sbr.rel (%p236) target = $region32
      $region31: #{dap_block.10} parent=19 // pred_region
        %s239 = smul.u32 8, %s21
        %p240 = scmp.lt.s32.totalorder %s19, 1
        %s241 = scalar_select %p240, %s19, 1
        %p242 = scmp.lt.s32.totalorder %s239, 7
        %s243 = scalar_select %p242, %s239, 7
        %s244 = smul.addr %s241, 8
        %s245 = sadd.s32 %s243, %s244
        %s246 = smul.addr %s245, 4
        %s247 = scalar_lea.vmem %s3, %s246
        %s248 = smul.u32 8, %s21
      $region32: #{dap_block.10} parent=19 // pred_fallthru
        _
      // Predicated region
      $region33: #{dap_block.10} parent=19 // pred_check
        %p249 = pneg %p158
      $region34: #{dap_block.10} parent=19 // pred_check_branch
        %251 = sbr.rel (%p249) target = $region36
      $region35: #{dap_block.10} parent=19 // pred_region
        %s252 = smul.u32 8, %s20
        %p253 = scmp.lt.s32.totalorder %s19, 1
        %s254 = scalar_select %p253, %s19, 1
        %p255 = scmp.lt.s32.totalorder %s252, 7
        %s256 = scalar_select %p255, %s252, 7
        %s257 = smul.addr %s254, 8
        %s258 = sadd.s32 %s256, %s257
        %s259 = smul.addr %s258, 4
        %s260 = scalar_lea.vmem %s4, %s259
        %s261 = smul.u32 8, %s20
      $region36: #{dap_block.10} parent=19 // pred_fallthru
        _
    $region20: #{dap_block.10} parent=5 // pred_fallthru
      _
    %p262 = scmp.le.s32.totalorder 1, %s12
    %p263 = scmp.lt.s32.totalorder %s12, 3
    %p264 = pnand %p262, %p263
    %p265 = pneg %p264
    // Predicated region
    $region37: #{dap_block.10} parent=5 // pred_check
      _
    $region38: #{dap_block.10} parent=5 // pred_check_branch
      %267 = sbr.rel (%p264) target = $region40
    $region39: #{dap_block.10} parent=5 // pred_region
      %s268 = ssub.s32 %s12, 1
      %p269 = pneg %p52
      %p270 = pneg %p49
      %s271 = smul.u32 8, %s23
      %p272 = scmp.lt.s32.totalorder %s22, 1
      %s273 = scalar_select %p272, %s22, 1
      %p274 = scmp.lt.s32.totalorder %s271, 7
      %s275 = scalar_select %p274, %s271, 7
      %s276 = smul.addr %s273, 8
      %s277 = sadd.s32 %s275, %s276
      %s278 = smul.addr %s277, 4
      %s279 = scalar_lea.vmem %s1, %s278
      %p280 = pneg %p80
      %p281 = pneg %p77
      %p282 = scmp.lt.s32.totalorder %s22, 1
      %s283 = scalar_select %p282, %s22, 1
      %p284 = scmp.lt.s32.totalorder %s24, 0
      %s285 = scalar_select %p284, %s24, 0
      %s286 = sadd.s32 %s285, %s283
      %s287 = scalar_lea.vmem %s2, %s286
      %p288 = pneg %p108
      %p289 = pneg %p105
      %s290 = smul.u32 8, %s24
      %p291 = scmp.lt.s32.totalorder %s22, 1
      %s292 = scalar_select %p291, %s22, 1
      %p293 = scmp.lt.s32.totalorder %s290, 7
      %s294 = scalar_select %p293, %s290, 7
      %s295 = smul.addr %s292, 8
      %s296 = sadd.s32 %s294, %s295
      %s297 = smul.addr %s296, 4
      %s298 = scalar_lea.vmem %s3, %s297
      %p299 = pneg %p136
      %p300 = pneg %p133
      %s301 = smul.u32 8, %s23
      %p302 = scmp.lt.s32.totalorder %s22, 1
      %s303 = scalar_select %p302, %s22, 1
      %p304 = scmp.lt.s32.totalorder %s301, 7
      %s305 = scalar_select %p304, %s301, 7
      %s306 = smul.addr %s303, 8
      %s307 = sadd.s32 %s305, %s306
      %s308 = smul.addr %s307, 4
      %s309 = scalar_lea.vmem %s4, %s308
      %p310 = pneg %p164
      %p311 = pneg %p161
      %p312 = pneg %p192
      %p313 = pneg %p189
      %s314 = smul.u32 8, %s23
      %p315 = scmp.lt.s32.totalorder %s22, 1
      %s316 = scalar_select %p315, %s22, 1
      %p317 = scmp.lt.s32.totalorder %s314, 7
      %s318 = scalar_select %p317, %s314, 7
      %s319 = smul.addr %s316, 8
      %s320 = sadd.s32 %s318, %s319
      %s321 = smul.addr %s320, 4
      %s322 = scalar_lea.vmem %s5, %s321
      %s323 = smul.u32 8, %s23
      %p324 = scmp.lt.s32.totalorder %s22, 1
      %s325 = scalar_select %p324, %s22, 1
      %p326 = scmp.lt.s32.totalorder %s323, 7
      %s327 = scalar_select %p326, %s323, 7
      %s328 = smul.addr %s325, 8
      %s329 = sadd.s32 %s327, %s328
      %s330 = smul.addr %s329, 4
      %s331 = scalar_lea.vmem %s1, %s330
      %s332 = smul.u32 8, %s23
      %p333 = scmp.lt.s32.totalorder %s22, 1
      %s334 = scalar_select %p333, %s22, 1
      %p335 = scmp.lt.s32.totalorder %s24, 0
      %s336 = scalar_select %p335, %s24, 0
      %s337 = sadd.s32 %s336, %s334
      %s338 = scalar_lea.vmem %s2, %s337
      %s339 = smul.u32 8, %s24
      %p340 = scmp.lt.s32.totalorder %s22, 1
      %s341 = scalar_select %p340, %s22, 1
      %p342 = scmp.lt.s32.totalorder %s339, 7
      %s343 = scalar_select %p342, %s339, 7
      %s344 = smul.addr %s341, 8
      %s345 = sadd.s32 %s343, %s344
      %s346 = smul.addr %s345, 4
      %s347 = scalar_lea.vmem %s3, %s346
      %s348 = smul.u32 8, %s24
      %s349 = smul.u32 8, %s23
      %p350 = scmp.lt.s32.totalorder %s22, 1
      %s351 = scalar_select %p350, %s22, 1
      %p352 = scmp.lt.s32.totalorder %s349, 7
      %s353 = scalar_select %p352, %s349, 7
      %s354 = smul.addr %s351, 8
      %s355 = sadd.s32 %s353, %s354
      %s356 = smul.addr %s355, 4
      %s357 = scalar_lea.vmem %s4, %s356
      %s358 = smul.u32 8, %s23
      %s359 = smul.u32 8, %s23
      %p360 = scmp.lt.s32.totalorder %s22, 1
      %s361 = scalar_select %p360, %s22, 1
      %p362 = scmp.lt.s32.totalorder %s359, 7
      %s363 = scalar_select %p362, %s359, 7
      %s364 = smul.addr %s361, 8
      %s365 = sadd.s32 %s363, %s364
      %s366 = smul.addr %s365, 4
      %s367 = scalar_lea.vmem %s5, %s366
      %s368 = smul.u32 8, %s23
      %p370 = scmp.eq.s32.totalorder %s24, 0
      // Predicated region
      $region41: #{dap_block.10} parent=39 // pred_check
        %p371 = pneg %p370
      $region42: #{dap_block.10} parent=39 // pred_check_branch
        %373 = sbr.rel (%p371) target = $region44
      $region43: #{dap_block.10} parent=39 // pred_region
        %vm374 = vcmask 7168
        %375 = vst.msk [vmem:[#allocation2] sm:$0xff] %vm374, -inf
        %376 = vst.msk [vmem:[#allocation2 + $0x8] sm:$0xff] %vm374, -inf
        %377 = vst.msk [vmem:[#allocation2 + $0x10] sm:$0xff] %vm374, -inf
        %378 = vst.msk [vmem:[#allocation2 + $0x18] sm:$0xff] %vm374, -inf
        %379 = vst.msk [vmem:[#allocation2 + $0x20] sm:$0xff] %vm374, -inf
        %380 = vst.msk [vmem:[#allocation2 + $0x28] sm:$0xff] %vm374, -inf
        %381 = vst.msk [vmem:[#allocation2 + $0x30] sm:$0xff] %vm374, -inf
        %382 = vst.msk [vmem:[#allocation2 + $0x38] sm:$0xff] %vm374, -inf
        %383 = vst.msk [vmem:[#allocation3] sm:$0xff] %vm374, 0.0
        %384 = vst.msk [vmem:[#allocation3 + $0x8] sm:$0xff] %vm374, 0.0
        %385 = vst.msk [vmem:[#allocation3 + $0x10] sm:$0xff] %vm374, 0.0
        %386 = vst.msk [vmem:[#allocation3 + $0x18] sm:$0xff] %vm374, 0.0
        %387 = vst.msk [vmem:[#allocation3 + $0x20] sm:$0xff] %vm374, 0.0
        %388 = vst.msk [vmem:[#allocation3 + $0x28] sm:$0xff] %vm374, 0.0
        %389 = vst.msk [vmem:[#allocation3 + $0x30] sm:$0xff] %vm374, 0.0
        %390 = vst.msk [vmem:[#allocation3 + $0x38] sm:$0xff] %vm374, 0.0
        %vm391 = vcmask 130048
        %392 = vst.msk [vmem:[#allocation4] sm:$0xff] %vm391, 0.0
        %393 = vst.msk [vmem:[#allocation4 + $0x8] sm:$0xff] %vm391, 0.0
        %394 = vst.msk [vmem:[#allocation4 + $0x10] sm:$0xff] %vm391, 0.0
        %395 = vst.msk [vmem:[#allocation4 + $0x18] sm:$0xff] %vm391, 0.0
        %396 = vst.msk [vmem:[#allocation4 + $0x20] sm:$0xff] %vm391, 0.0
        %397 = vst.msk [vmem:[#allocation4 + $0x28] sm:$0xff] %vm391, 0.0
        %398 = vst.msk [vmem:[#allocation4 + $0x30] sm:$0xff] %vm391, 0.0
        %399 = vst.msk [vmem:[#allocation4 + $0x38] sm:$0xff] %vm391, 0.0
      $region44: #{dap_block.10} parent=39 // pred_fallthru
        _
      %v400 = vld [vmem:[%s331] sm:$0xf]
      %v401 = vld [vmem:[%s331 + $0x4] sm:$0xf]
      %v402 = vld [vmem:[%s331 + $0x8] sm:$0xf]
      %v403 = vld [vmem:[%s331 + $0xc] sm:$0xf]
      %v404 = vld [vmem:[%s331 + $0x10] sm:$0xf]
      %v405 = vld [vmem:[%s331 + $0x14] sm:$0xf]
      %v406 = vld [vmem:[%s331 + $0x18] sm:$0xf]
      %v407 = vld [vmem:[%s331 + $0x1c] sm:$0xf]
      %v408 = vld [vmem:[%s338] sm:$0x1]
      %v417 = vunpack.c.l.b16 %v400
      %v418 = vunpack.c.l.b16 %v401
      %v419 = vunpack.c.l.b16 %v402
      %v420 = vunpack.c.l.b16 %v403
      %v421 = vunpack.c.l.b16 %v404
      %v422 = vunpack.c.l.b16 %v405
      %v423 = vunpack.c.l.b16 %v406
      %v424 = vunpack.c.l.b16 %v407
      %v425 = vpack.c.b16 %v418, %v417
      %v426 = vpack.c.b16 %v420, %v419
      %v427 = vpack.c.b16 %v422, %v421
      %v428 = vpack.c.b16 %v424, %v423
      %vm429 = vcmask 15360
      %v431 = vsel %vm429, %v425, 0
      %v434 = vsel %vm429, %v426, 0
      %v437 = vsel %vm429, %v427, 0
      %v440 = vsel %vm429, %v428, 0
      %vm442 = vcmask 1040384
      %v444 = vsel %vm442, %v408, 0
      %446 = vmatprep.subr.bf16.mxu0 0
      %447 = vmatpush1.bf16.msra.mxu0 0
      %448 = vmatprep.subr.bf16.mxu0 0
      %449 = vmatpush1.bf16.msra.mxu0 0
      %450 = vmatprep.subr.bf16.mxu0 0
      %451 = vmatpush1.bf16.msra.mxu0 0
      %452 = vmatprep.subr.bf16.mxu0 0
      %453 = vmatpush1.bf16.msra.mxu0 0
      %454 = vmatprep.subr.bf16.mxu0 0
      %455 = vmatpush1.bf16.msra.mxu0 0
      %456 = vmatprep.subr.bf16.mxu0 0
      %457 = vmatpush1.bf16.msra.mxu0 0
      %458 = vmatprep.subr.bf16.mxu0 0
      %459 = vmatpush1.bf16.msra.mxu0 0
      %460 = vmatprep.subr.bf16.mxu0 0
      %461 = vmatpush1.bf16.msra.mxu0 %v444
      %462 = vmatprep.subr.bf16.mxu0 0
      %463 = vmatpush2.bf16.msra.mxu0 0
      %464 = vmatprep.subr.bf16.mxu0 0
      %465 = vmatpush2.bf16.msra.mxu0 0
      %466 = vmatprep.subr.bf16.mxu0 0
      %467 = vmatpush2.bf16.msra.mxu0 0
      %468 = vmatprep.subr.bf16.mxu0 0
      %469 = vmatpush2.bf16.msra.mxu0 0
      %470 = vmatprep.subr.bf16.mxu0 0
      %471 = vmatpush2.bf16.msra.mxu0 0
      %472 = vmatprep.subr.bf16.mxu0 0
      %473 = vmatpush2.bf16.msra.mxu0 0
      %474 = vmatprep.subr.bf16.mxu0 0
      %475 = vmatpush2.bf16.msra.mxu0 0
      %476 = vmatprep.subr.bf16.mxu0 0
      %477 = vmatpush2.bf16.msra.mxu0 0
      %478 = vmatprep.mubr.bf16.mxu0 0
      %479 = vmatmul.mubr.bf16.gmra.mxu0 %v431
      %v480 = vpop.f32.mrf.mxu0
      %v481 = vadd.f32 0.0, %v480
      %v482 = vpop.f32.mrf.mxu0
      %v483 = vpop.f32.mrf.mxu0
      %v484 = vadd.f32 0.0, %v483
      %v485 = vpop.f32.mrf.mxu0
      %486 = vmatprep.mubr.bf16.mxu0 0
      %487 = vmatmul.mubr.bf16.gmra.mxu0 %v434
      %v488 = vpop.f32.mrf.mxu0
      %v489 = vadd.f32 0.0, %v488
      %v490 = vpop.f32.mrf.mxu0
      %v491 = vpop.f32.mrf.mxu0
      %v492 = vadd.f32 0.0, %v491
      %v493 = vpop.f32.mrf.mxu0
      %494 = vmatprep.mubr.bf16.mxu0 0
      %495 = vmatmul.mubr.bf16.gmra.mxu0 %v437
      %v496 = vpop.f32.mrf.mxu0
      %v497 = vadd.f32 0.0, %v496
      %v498 = vpop.f32.mrf.mxu0
      %v499 = vpop.f32.mrf.mxu0
      %v500 = vadd.f32 0.0, %v499
      %v501 = vpop.f32.mrf.mxu0
      %502 = vmatprep.mubr.bf16.mxu0 0
      %503 = vmatmul.mubr.bf16.gmra.mxu0 %v440
      %v504 = vpop.f32.mrf.mxu0
      %v505 = vadd.f32 0.0, %v504
      %v506 = vpop.f32.mrf.mxu0
      %v507 = vpop.f32.mrf.mxu0
      %v508 = vadd.f32 0.0, %v507
      %v509 = vpop.f32.mrf.mxu0
      %510 = vdwg.mxu0
      %v511 = vld [vmem:[#allocation2] sm:$0xff]
      %v512 = vld [vmem:[#allocation2 + $0x8] sm:$0xff]
      %v513 = vld [vmem:[#allocation2 + $0x10] sm:$0xff]
      %v514 = vld [vmem:[#allocation2 + $0x18] sm:$0xff]
      %v515 = vld [vmem:[#allocation2 + $0x20] sm:$0xff]
      %v516 = vld [vmem:[#allocation2 + $0x28] sm:$0xff]
      %v517 = vld [vmem:[#allocation2 + $0x30] sm:$0xff]
      %v518 = vld [vmem:[#allocation2 + $0x38] sm:$0xff]
      %vm519 = vcmask 523264
      %v520 = vsel %vm519, %v481, -inf
      %521 = vmax.xlane.f32.xlu0 %v520
      %v522 = vpop.xlane.xlu0 %521
      %v523 = vsel %vm519, %v484, -inf
      %524 = vmax.xlane.f32.xlu0 %v523
      %v525 = vpop.xlane.xlu0 %524
      %v526 = vsel %vm519, %v489, -inf
      %527 = vmax.xlane.f32.xlu0 %v526
      %v528 = vpop.xlane.xlu0 %527
      %v529 = vsel %vm519, %v492, -inf
      %530 = vmax.xlane.f32.xlu0 %v529
      %v531 = vpop.xlane.xlu0 %530
      %v532 = vsel %vm519, %v497, -inf
      %533 = vmax.xlane.f32.xlu0 %v532
      %v534 = vpop.xlane.xlu0 %533
      %v535 = vsel %vm519, %v500, -inf
      %536 = vmax.xlane.f32.xlu0 %v535
      %v537 = vpop.xlane.xlu0 %536
      %v538 = vsel %vm519, %v505, -inf
      %539 = vmax.xlane.f32.xlu0 %v538
      %v540 = vpop.xlane.xlu0 %539
      %v541 = vsel %vm519, %v508, -inf
      %542 = vmax.xlane.f32.xlu0 %v541
      %v543 = vpop.xlane.xlu0 %542
      %v544 = vmax.f32 %v511, %v522
      %v545 = vmax.f32 %v512, %v525
      %v546 = vmax.f32 %v513, %v528
      %v547 = vmax.f32 %v514, %v531
      %v548 = vmax.f32 %v515, %v534
      %v549 = vmax.f32 %v516, %v537
      %v550 = vmax.f32 %v517, %v540
      %v551 = vmax.f32 %v518, %v543
      %v552 = vsub.f32 %v511, %v544
      %v553 = vsub.f32 %v512, %v545
      %v554 = vsub.f32 %v513, %v546
      %v555 = vsub.f32 %v514, %v547
      %v556 = vsub.f32 %v515, %v548
      %v557 = vsub.f32 %v516, %v549
      %v558 = vsub.f32 %v517, %v550
      %v559 = vsub.f32 %v518, %v551
      %v560 = vmul.f32 %v552, 1.442695
      %v561 = vpow.pop %v560
      %v562 = vmul.f32 %v553, 1.442695
      %v563 = vpow.pop %v562
      %v564 = vmul.f32 %v554, 1.442695
      %v565 = vpow.pop %v564
      %v566 = vmul.f32 %v555, 1.442695
      %v567 = vpow.pop %v566
      %v568 = vmul.f32 %v556, 1.442695
      %v569 = vpow.pop %v568
      %v570 = vmul.f32 %v557, 1.442695
      %v571 = vpow.pop %v570
      %v572 = vmul.f32 %v558, 1.442695
      %v573 = vpow.pop %v572
      %v574 = vmul.f32 %v559, 1.442695
      %v575 = vpow.pop %v574
      %577 = vset.pattern.permute.xlu0 0
      %578 = vperm.xlu0 %577, %v544
      %v579 = vpop.permute.xlu0 %578
      %582 = vset.pattern.permute.xlu0 0
      %583 = vperm.xlu0 %582, %v545
      %v584 = vpop.permute.xlu0 %583
      %587 = vset.pattern.permute.xlu0 0
      %588 = vperm.xlu0 %587, %v546
      %v589 = vpop.permute.xlu0 %588
      %592 = vset.pattern.permute.xlu0 0
      %593 = vperm.xlu0 %592, %v547
      %v594 = vpop.permute.xlu0 %593
      %597 = vset.pattern.permute.xlu0 0
      %598 = vperm.xlu0 %597, %v548
      %v599 = vpop.permute.xlu0 %598
      %602 = vset.pattern.permute.xlu0 0
      %603 = vperm.xlu0 %602, %v549
      %v604 = vpop.permute.xlu0 %603
      %607 = vset.pattern.permute.xlu0 0
      %608 = vperm.xlu0 %607, %v550
      %v609 = vpop.permute.xlu0 %608
      %612 = vset.pattern.permute.xlu0 0
      %613 = vperm.xlu0 %612, %v551
      %v614 = vpop.permute.xlu0 %613
      %v616 = vsub.f32 %v481, %v579
      %v617 = vsub.f32 %v484, %v584
      %v618 = vsub.f32 %v489, %v589
      %v619 = vsub.f32 %v492, %v594
      %v620 = vsub.f32 %v497, %v599
      %v621 = vsub.f32 %v500, %v604
      %v622 = vsub.f32 %v505, %v609
      %v623 = vsub.f32 %v508, %v614
      %v624 = vmul.f32 %v616, 1.442695
      %v625 = vpow.pop %v624
      %v626 = vmul.f32 %v617, 1.442695
      %v627 = vpow.pop %v626
      %v628 = vmul.f32 %v618, 1.442695
      %v629 = vpow.pop %v628
      %v630 = vmul.f32 %v619, 1.442695
      %v631 = vpow.pop %v630
      %v632 = vmul.f32 %v620, 1.442695
      %v633 = vpow.pop %v632
      %v634 = vmul.f32 %v621, 1.442695
      %v635 = vpow.pop %v634
      %v636 = vmul.f32 %v622, 1.442695
      %v637 = vpow.pop %v636
      %v638 = vmul.f32 %v623, 1.442695
      %v639 = vpow.pop %v638
      %v640 = vld [vmem:[#allocation3] sm:$0xff]
      %v641 = vld [vmem:[#allocation3 + $0x8] sm:$0xff]
      %v642 = vld [vmem:[#allocation3 + $0x10] sm:$0xff]
      %v643 = vld [vmem:[#allocation3 + $0x18] sm:$0xff]
      %v644 = vld [vmem:[#allocation3 + $0x20] sm:$0xff]
      %v645 = vld [vmem:[#allocation3 + $0x28] sm:$0xff]
      %v646 = vld [vmem:[#allocation3 + $0x30] sm:$0xff]
      %v647 = vld [vmem:[#allocation3 + $0x38] sm:$0xff]
      %v648 = vmul.f32 %v561, %v640
      %v649 = vmul.f32 %v563, %v641
      %v650 = vmul.f32 %v565, %v642
      %v651 = vmul.f32 %v567, %v643
      %v652 = vmul.f32 %v569, %v644
      %v653 = vmul.f32 %v571, %v645
      %v654 = vmul.f32 %v573, %v646
      %v655 = vmul.f32 %v575, %v647
      %v656 = vsel %vm519, %v625, 0.0
      %657 = vadd.xlane.f32.xlu0 %v656
      %v658 = vpop.xlane.xlu0 %657
      %v659 = vsel %vm519, %v627, 0.0
      %660 = vadd.xlane.f32.xlu0 %v659
      %v661 = vpop.xlane.xlu0 %660
      %v662 = vsel %vm519, %v629, 0.0
      %663 = vadd.xlane.f32.xlu0 %v662
      %v664 = vpop.xlane.xlu0 %663
      %v665 = vsel %vm519, %v631, 0.0
      %666 = vadd.xlane.f32.xlu0 %v665
      %v667 = vpop.xlane.xlu0 %666
      %v668 = vsel %vm519, %v633, 0.0
      %669 = vadd.xlane.f32.xlu0 %v668
      %v670 = vpop.xlane.xlu0 %669
      %v671 = vsel %vm519, %v635, 0.0
      %672 = vadd.xlane.f32.xlu0 %v671
      %v673 = vpop.xlane.xlu0 %672
      %v674 = vsel %vm519, %v637, 0.0
      %675 = vadd.xlane.f32.xlu0 %v674
      %v676 = vpop.xlane.xlu0 %675
      %v677 = vsel %vm519, %v639, 0.0
      %678 = vadd.xlane.f32.xlu0 %v677
      %v679 = vpop.xlane.xlu0 %678
      %v680 = vadd.f32 %v648, %v658
      %v681 = vadd.f32 %v649, %v661
      %v682 = vadd.f32 %v650, %v664
      %v683 = vadd.f32 %v651, %v667
      %v684 = vadd.f32 %v652, %v670
      %v685 = vadd.f32 %v653, %v673
      %v686 = vadd.f32 %v654, %v676
      %v687 = vadd.f32 %v655, %v679
      %vm688 = vcmask 7168
      %689 = vst.msk [vmem:[#allocation3] sm:$0xff] %vm688, %v680
      %690 = vst.msk [vmem:[#allocation3 + $0x8] sm:$0xff] %vm688, %v681
      %691 = vst.msk [vmem:[#allocation3 + $0x10] sm:$0xff] %vm688, %v682
      %692 = vst.msk [vmem:[#allocation3 + $0x18] sm:$0xff] %vm688, %v683
      %693 = vst.msk [vmem:[#allocation3 + $0x20] sm:$0xff] %vm688, %v684
      %694 = vst.msk [vmem:[#allocation3 + $0x28] sm:$0xff] %vm688, %v685
      %695 = vst.msk [vmem:[#allocation3 + $0x30] sm:$0xff] %vm688, %v686
      %696 = vst.msk [vmem:[#allocation3 + $0x38] sm:$0xff] %vm688, %v687
      %v697 = vld [vmem:[#allocation4] sm:$0xff]
      %v698 = vld [vmem:[#allocation4 + $0x8] sm:$0xff]
      %v699 = vld [vmem:[#allocation4 + $0x10] sm:$0xff]
      %v700 = vld [vmem:[#allocation4 + $0x18] sm:$0xff]
      %v701 = vld [vmem:[#allocation4 + $0x20] sm:$0xff]
      %v702 = vld [vmem:[#allocation4 + $0x28] sm:$0xff]
      %v703 = vld [vmem:[#allocation4 + $0x30] sm:$0xff]
      %v704 = vld [vmem:[#allocation4 + $0x38] sm:$0xff]
      %706 = vset.pattern.permute.xlu0 0
      %707 = vperm.xlu0 %706, %v561
      %v708 = vpop.permute.xlu0 %707
      %711 = vset.pattern.permute.xlu0 0
      %712 = vperm.xlu0 %711, %v563
      %v713 = vpop.permute.xlu0 %712
      %716 = vset.pattern.permute.xlu0 0
      %717 = vperm.xlu0 %716, %v565
      %v718 = vpop.permute.xlu0 %717
      %721 = vset.pattern.permute.xlu0 0
      %722 = vperm.xlu0 %721, %v567
      %v723 = vpop.permute.xlu0 %722
      %726 = vset.pattern.permute.xlu0 0
      %727 = vperm.xlu0 %726, %v569
      %v728 = vpop.permute.xlu0 %727
      %731 = vset.pattern.permute.xlu0 0
      %732 = vperm.xlu0 %731, %v571
      %v733 = vpop.permute.xlu0 %732
      %736 = vset.pattern.permute.xlu0 0
      %737 = vperm.xlu0 %736, %v573
      %v738 = vpop.permute.xlu0 %737
      %741 = vset.pattern.permute.xlu0 0
      %742 = vperm.xlu0 %741, %v575
      %v743 = vpop.permute.xlu0 %742
      %v745 = vmul.f32 %v708, %v697
      %v746 = vmul.f32 %v713, %v698
      %v747 = vmul.f32 %v718, %v699
      %v748 = vmul.f32 %v723, %v700
      %v749 = vmul.f32 %v728, %v701
      %v750 = vmul.f32 %v733, %v702
      %v751 = vmul.f32 %v738, %v703
      %v752 = vmul.f32 %v743, %v704
      %v753 = vpack.c.bf16 %v627, %v625
      %v754 = vpack.c.bf16 %v631, %v629
      %v755 = vpack.c.bf16 %v635, %v633
      %v756 = vpack.c.bf16 %v639, %v637
      %v757 = vld [vmem:[%s347] sm:$0xf]
      %v758 = vld [vmem:[%s347 + $0x4] sm:$0xf]
      %v759 = vld [vmem:[%s347 + $0x8] sm:$0xf]
      %v760 = vld [vmem:[%s347 + $0xc] sm:$0xf]
      %v761 = vld [vmem:[%s347 + $0x10] sm:$0xf]
      %v762 = vld [vmem:[%s347 + $0x14] sm:$0xf]
      %v763 = vld [vmem:[%s347 + $0x18] sm:$0xf]
      %v764 = vld [vmem:[%s347 + $0x1c] sm:$0xf]
      %v773 = vunpack.c.l.b16 %v757
      %v774 = vunpack.c.l.b16 %v758
      %v775 = vunpack.c.l.b16 %v759
      %v776 = vunpack.c.l.b16 %v760
      %v777 = vunpack.c.l.b16 %v761
      %v778 = vunpack.c.l.b16 %v762
      %v779 = vunpack.c.l.b16 %v763
      %v780 = vunpack.c.l.b16 %v764
      %v781 = vpack.c.b16 %v774, %v773
      %v782 = vpack.c.b16 %v776, %v775
      %v783 = vpack.c.b16 %v778, %v777
      %v784 = vpack.c.b16 %v780, %v779
      %v790 = vsel %vm519, %v753, 0
      %v793 = vsel %vm519, %v754, 0
      %v796 = vsel %vm519, %v755, 0
      %v799 = vsel %vm519, %v756, 0
      %801 = vmatprep.subr.bf16.mxu0 0
      %802 = vmatpush1.bf16.msra.mxu0 0
      %803 = vmatprep.subr.bf16.mxu0 0
      %804 = vmatpush1.bf16.msra.mxu0 0
      %805 = vmatprep.subr.bf16.mxu0 0
      %806 = vmatpush1.bf16.msra.mxu0 0
      %807 = vmatprep.subr.bf16.mxu0 0
      %808 = vmatpush1.bf16.msra.mxu0 0
      %809 = vmatprep.subr.bf16.mxu0 0
      %810 = vmatpush1.bf16.msra.mxu0 %v784
      %811 = vmatprep.subr.bf16.mxu0 0
      %812 = vmatpush1.bf16.msra.mxu0 %v783
      %813 = vmatprep.subr.bf16.mxu0 0
      %814 = vmatpush1.bf16.msra.mxu0 %v782
      %815 = vmatprep.subr.bf16.mxu0 0
      %816 = vmatpush1.bf16.msra.mxu0 %v781
      %817 = vmatprep.subr.bf16.mxu0 0
      %818 = vmatpush2.bf16.msra.mxu0 0
      %819 = vmatprep.subr.bf16.mxu0 0
      %820 = vmatpush2.bf16.msra.mxu0 0
      %821 = vmatprep.subr.bf16.mxu0 0
      %822 = vmatpush2.bf16.msra.mxu0 0
      %823 = vmatprep.subr.bf16.mxu0 0
      %824 = vmatpush2.bf16.msra.mxu0 0
      %825 = vmatprep.subr.bf16.mxu0 0
      %826 = vmatpush2.bf16.msra.mxu0 0
      %827 = vmatprep.subr.bf16.mxu0 0
      %828 = vmatpush2.bf16.msra.mxu0 0
      %829 = vmatprep.subr.bf16.mxu0 0
      %830 = vmatpush2.bf16.msra.mxu0 0
      %831 = vmatprep.subr.bf16.mxu0 0
      %832 = vmatpush2.bf16.msra.mxu0 0
      %833 = vmatprep.mubr.bf16.mxu0 0
      %834 = vmatmul.mubr.bf16.gmra.mxu0 %v790
      %v835 = vpop.f32.mrf.mxu0
      %v836 = vadd.f32 0.0, %v835
      %v837 = vpop.f32.mrf.mxu0
      %v838 = vpop.f32.mrf.mxu0
      %v839 = vadd.f32 0.0, %v838
      %v840 = vpop.f32.mrf.mxu0
      %841 = vmatprep.mubr.bf16.mxu0 0
      %842 = vmatmul.mubr.bf16.gmra.mxu0 %v793
      %v843 = vpop.f32.mrf.mxu0
      %v844 = vadd.f32 0.0, %v843
      %v845 = vpop.f32.mrf.mxu0
      %v846 = vpop.f32.mrf.mxu0
      %v847 = vadd.f32 0.0, %v846
      %v848 = vpop.f32.mrf.mxu0
      %849 = vmatprep.mubr.bf16.mxu0 0
      %850 = vmatmul.mubr.bf16.gmra.mxu0 %v796
      %v851 = vpop.f32.mrf.mxu0
      %v852 = vadd.f32 0.0, %v851
      %v853 = vpop.f32.mrf.mxu0
      %v854 = vpop.f32.mrf.mxu0
      %v855 = vadd.f32 0.0, %v854
      %v856 = vpop.f32.mrf.mxu0
      %857 = vmatprep.mubr.bf16.mxu0 0
      %858 = vmatmul.mubr.bf16.gmra.mxu0 %v799
      %v859 = vpop.f32.mrf.mxu0
      %v860 = vadd.f32 0.0, %v859
      %v861 = vpop.f32.mrf.mxu0
      %v862 = vpop.f32.mrf.mxu0
      %v863 = vadd.f32 0.0, %v862
      %v864 = vpop.f32.mrf.mxu0
      %865 = vdwg.mxu0
      %v866 = vadd.f32 %v745, %v836
      %v867 = vadd.f32 %v746, %v839
      %v868 = vadd.f32 %v747, %v844
      %v869 = vadd.f32 %v748, %v847
      %v870 = vadd.f32 %v749, %v852
      %v871 = vadd.f32 %v750, %v855
      %v872 = vadd.f32 %v751, %v860
      %v873 = vadd.f32 %v752, %v863
      %vm874 = vcmask 130048
      %875 = vst.msk [vmem:[#allocation4] sm:$0xff] %vm874, %v866
      %876 = vst.msk [vmem:[#allocation4 + $0x8] sm:$0xff] %vm874, %v867
      %877 = vst.msk [vmem:[#allocation4 + $0x10] sm:$0xff] %vm874, %v868
      %878 = vst.msk [vmem:[#allocation4 + $0x18] sm:$0xff] %vm874, %v869
      %879 = vst.msk [vmem:[#allocation4 + $0x20] sm:$0xff] %vm874, %v870
      %880 = vst.msk [vmem:[#allocation4 + $0x28] sm:$0xff] %vm874, %v871
      %881 = vst.msk [vmem:[#allocation4 + $0x30] sm:$0xff] %vm874, %v872
      %882 = vst.msk [vmem:[#allocation4 + $0x38] sm:$0xff] %vm874, %v873
      %883 = vst.msk [vmem:[#allocation2] sm:$0xff] %vm688, %v544
      %884 = vst.msk [vmem:[#allocation2 + $0x8] sm:$0xff] %vm688, %v545
      %885 = vst.msk [vmem:[#allocation2 + $0x10] sm:$0xff] %vm688, %v546
      %886 = vst.msk [vmem:[#allocation2 + $0x18] sm:$0xff] %vm688, %v547
      %887 = vst.msk [vmem:[#allocation2 + $0x20] sm:$0xff] %vm688, %v548
      %888 = vst.msk [vmem:[#allocation2 + $0x28] sm:$0xff] %vm688, %v549
      %889 = vst.msk [vmem:[#allocation2 + $0x30] sm:$0xff] %vm688, %v550
      %890 = vst.msk [vmem:[#allocation2 + $0x38] sm:$0xff] %vm688, %v551
      // Predicated region
      $region45: #{dap_block.10} parent=39 // pred_check
        %p891 = pneg %p370
      $region46: #{dap_block.10} parent=39 // pred_check_branch
        %893 = sbr.rel (%p891) target = $region48
      $region47: #{dap_block.10} parent=39 // pred_region
        %v894 = vld [vmem:[#allocation3] sm:$0xff]
        %v895 = vld [vmem:[#allocation3 + $0x8] sm:$0xff]
        %v896 = vld [vmem:[#allocation3 + $0x10] sm:$0xff]
        %v897 = vld [vmem:[#allocation3 + $0x18] sm:$0xff]
        %v898 = vld [vmem:[#allocation3 + $0x20] sm:$0xff]
        %v899 = vld [vmem:[#allocation3 + $0x28] sm:$0xff]
        %v900 = vld [vmem:[#allocation3 + $0x30] sm:$0xff]
        %v901 = vld [vmem:[#allocation3 + $0x38] sm:$0xff]
        %v902 = vrcp.pop %v894
        %v903 = vrcp.pop %v895
        %v904 = vrcp.pop %v896
        %v905 = vrcp.pop %v897
        %v906 = vrcp.pop %v898
        %v907 = vrcp.pop %v899
        %v908 = vrcp.pop %v900
        %v909 = vrcp.pop %v901
        %s910 = sld [smem:[#allocation5]]
        %v911 = vld [vmem:[#allocation4] sm:$0xff]
        %v912 = vld [vmem:[#allocation4 + $0x8] sm:$0xff]
        %v913 = vld [vmem:[#allocation4 + $0x10] sm:$0xff]
        %v914 = vld [vmem:[#allocation4 + $0x18] sm:$0xff]
        %v915 = vld [vmem:[#allocation4 + $0x20] sm:$0xff]
        %v916 = vld [vmem:[#allocation4 + $0x28] sm:$0xff]
        %v917 = vld [vmem:[#allocation4 + $0x30] sm:$0xff]
        %v918 = vld [vmem:[#allocation4 + $0x38] sm:$0xff]
        %v919 = vstv %s910
        %v920 = vmul.f32 %v919, %v911
        %v921 = vmul.f32 %v919, %v912
        %v922 = vmul.f32 %v919, %v913
        %v923 = vmul.f32 %v919, %v914
        %v924 = vmul.f32 %v919, %v915
        %v925 = vmul.f32 %v919, %v916
        %v926 = vmul.f32 %v919, %v917
        %v927 = vmul.f32 %v919, %v918
        %929 = vset.pattern.permute.xlu0 0
        %930 = vperm.xlu0 %929, %v902
        %v931 = vpop.permute.xlu0 %930
        %934 = vset.pattern.permute.xlu0 0
        %935 = vperm.xlu0 %934, %v903
        %v936 = vpop.permute.xlu0 %935
        %939 = vset.pattern.permute.xlu0 0
        %940 = vperm.xlu0 %939, %v904
        %v941 = vpop.permute.xlu0 %940
        %944 = vset.pattern.permute.xlu0 0
        %945 = vperm.xlu0 %944, %v905
        %v946 = vpop.permute.xlu0 %945
        %949 = vset.pattern.permute.xlu0 0
        %950 = vperm.xlu0 %949, %v906
        %v951 = vpop.permute.xlu0 %950
        %954 = vset.pattern.permute.xlu0 0
        %955 = vperm.xlu0 %954, %v907
        %v956 = vpop.permute.xlu0 %955
        %959 = vset.pattern.permute.xlu0 0
        %960 = vperm.xlu0 %959, %v908
        %v961 = vpop.permute.xlu0 %960
        %964 = vset.pattern.permute.xlu0 0
        %965 = vperm.xlu0 %964, %v909
        %v966 = vpop.permute.xlu0 %965
        %v968 = vmul.f32 %v920, %v931
        %v969 = vmul.f32 %v921, %v936
        %v970 = vmul.f32 %v922, %v941
        %v971 = vmul.f32 %v923, %v946
        %v972 = vmul.f32 %v924, %v951
        %v973 = vmul.f32 %v925, %v956
        %v974 = vmul.f32 %v926, %v961
        %v975 = vmul.f32 %v927, %v966
        %v976 = vld [vmem:[%s357] sm:$0xf]
        %v977 = vld [vmem:[%s357 + $0x4] sm:$0xf]
        %v978 = vld [vmem:[%s357 + $0x8] sm:$0xf]
        %v979 = vld [vmem:[%s357 + $0xc] sm:$0xf]
        %v980 = vld [vmem:[%s357 + $0x10] sm:$0xf]
        %v981 = vld [vmem:[%s357 + $0x14] sm:$0xf]
        %v982 = vld [vmem:[%s357 + $0x18] sm:$0xf]
        %v983 = vld [vmem:[%s357 + $0x1c] sm:$0xf]
        %v984 = vunpack.c.l.bf16 %v976
        %v985 = vunpack.c.l.bf16 %v977
        %v986 = vunpack.c.l.bf16 %v978
        %v987 = vunpack.c.l.bf16 %v979
        %v988 = vunpack.c.l.bf16 %v980
        %v989 = vunpack.c.l.bf16 %v981
        %v990 = vunpack.c.l.bf16 %v982
        %v991 = vunpack.c.l.bf16 %v983
        %v992 = vadd.f32 %v968, %v984
        %v993 = vadd.f32 %v969, %v985
        %v994 = vadd.f32 %v970, %v986
        %v995 = vadd.f32 %v971, %v987
        %v996 = vadd.f32 %v972, %v988
        %v997 = vadd.f32 %v973, %v989
        %v998 = vadd.f32 %v974, %v990
        %v999 = vadd.f32 %v975, %v991
        %v1000 = vpack.c.bf16 %v993, %v992
        %v1001 = vpack.c.bf16 %v995, %v994
        %v1002 = vpack.c.bf16 %v997, %v996
        %v1003 = vpack.c.bf16 %v999, %v998
        %v1008 = vunpack.c.l.b16 %v1000
        %v1009 = vunpack.c.h.b16 %v1000
        %v1010 = vunpack.c.l.b16 %v1001
        %v1011 = vunpack.c.h.b16 %v1001
        %v1012 = vunpack.c.l.b16 %v1002
        %v1013 = vunpack.c.h.b16 %v1002
        %v1014 = vunpack.c.l.b16 %v1003
        %v1015 = vunpack.c.h.b16 %v1003
        %v1016 = vpack.c.b16 %v1008, %v1008
        %v1017 = vpack.c.b16 %v1009, %v1009
        %v1018 = vpack.c.b16 %v1010, %v1010
        %v1019 = vpack.c.b16 %v1011, %v1011
        %v1020 = vpack.c.b16 %v1012, %v1012
        %v1021 = vpack.c.b16 %v1013, %v1013
        %v1022 = vpack.c.b16 %v1014, %v1014
        %v1023 = vpack.c.b16 %v1015, %v1015
        %vm1032 = vcmask 125952
        %1033 = vst.msk [vmem:[%s367] sm:$0xf] %vm1032, %v1016
        %1034 = vst.msk [vmem:[%s367 + $0x4] sm:$0xf] %vm1032, %v1017
        %1035 = vst.msk [vmem:[%s367 + $0x8] sm:$0xf] %vm1032, %v1018
        %1036 = vst.msk [vmem:[%s367 + $0xc] sm:$0xf] %vm1032, %v1019
        %1037 = vst.msk [vmem:[%s367 + $0x10] sm:$0xf] %vm1032, %v1020
        %1038 = vst.msk [vmem:[%s367 + $0x14] sm:$0xf] %vm1032, %v1021
        %1039 = vst.msk [vmem:[%s367 + $0x18] sm:$0xf] %vm1032, %v1022
        %1040 = vst.msk [vmem:[%s367 + $0x1c] sm:$0xf] %vm1032, %v1023
      $region48: #{dap_block.10} parent=39 // pred_fallthru
        _
      %s1041 = smul.u32 8, %s23
      %p1042 = scmp.lt.s32.totalorder %s22, 1
      %s1043 = scalar_select %p1042, %s22, 1
      %p1044 = scmp.lt.s32.totalorder %s1041, 7
      %s1045 = scalar_select %p1044, %s1041, 7
      %s1046 = smul.addr %s1043, 8
      %s1047 = sadd.s32 %s1045, %s1046
      %s1048 = smul.addr %s1047, 4
      %s1049 = scalar_lea.vmem %s5, %s1048
      // Predicated region
      $region49: #{dap_block.10} parent=39 // pred_check
        %p1050 = pneg %p189
      $region50: #{dap_block.10} parent=39 // pred_check_branch
        %1052 = sbr.rel (%p1050) target = $region52
      $region51: #{dap_block.10} parent=39 // pred_region
        %s1053 = smul.u32 8, %s23
      $region52: #{dap_block.10} parent=39 // pred_fallthru
        _
    $region40: #{dap_block.10} parent=5 // pred_fallthru
      _
    %p1054 = scmp.le.s32.totalorder 2, %s12
    // Predicated region
    $region53: #{dap_block.10} parent=5 // pred_check
      %p1055 = pneg %p1054
    $region54: #{dap_block.10} parent=5 // pred_check_branch
      %1057 = sbr.rel (%p1055) target = $region56
    $region55: #{dap_block.10} parent=5 // pred_region
      %s1058 = ssub.s32 %s12, 2
      // Predicated region
      $region57: #{dap_block.10} parent=55 // pred_check
        %p1059 = pneg %p195
      $region58: #{dap_block.10} parent=55 // pred_check_branch
        %1061 = sbr.rel (%p1059) target = $region60
      $region59: #{dap_block.10} parent=55 // pred_region
        %s1062 = smul.u32 8, %s26
        %p1063 = scmp.lt.s32.totalorder %s25, 1
        %s1064 = scalar_select %p1063, %s25, 1
        %p1065 = scmp.lt.s32.totalorder %s1062, 7
        %s1066 = scalar_select %p1065, %s1062, 7
        %s1067 = smul.addr %s1064, 8
        %s1068 = sadd.s32 %s1066, %s1067
        %s1069 = smul.addr %s1068, 4
        %s1070 = scalar_lea.vmem %s5, %s1069
      $region60: #{dap_block.10} parent=55 // pred_fallthru
        _
    $region56: #{dap_block.10} parent=5 // pred_fallthru
      _
  $region6: #{dap_block.10} parent=0 // loop_footer
    %s16 = sadd.s32 1, %s12
  $region7: #{dap_block.10} parent=0 // loop_footer_branch
    %11 = sbr.rel target = $region3
  $region8: #{dap_block.10} parent=0 // loop_exit
    _

// kernel: dap_block.15
$region0: #{dap_block.15}
  #allocation0 [shape = 'u32[]', space=smem, size = 0x4, offset = 0x4, fixed_abs, tag = 'smem constant byte address 0x4 - core index']
  #allocation1 [shape = 'u32[144,128]{1,0:T(1,128)}', space=vmem, size = 0x12000, scoped, tag = 'internal scratch']
  #allocation2 [shape = 'f32[128,128]{1,0:T(8,128)}', space=vmem, size = 0x10000, scoped, tag = 'scratch operand']
  %s0 = inlined_call_operand.vmem [shape: bf16[128,128], index: 0, kind: input, shape index: {}]
  %s1 = inlined_call_operand.vmem [shape: bf16[128,128], index: 1, kind: input, shape index: {}]
  %s2 = inlined_call_operand.vmem [shape: bf16[128,128], index: 2, kind: input, shape index: {}]
  %s3 = inlined_call_operand.vmem [shape: f32[1,128], index: 3, kind: input, shape index: {}]
  %s4 = inlined_call_operand.vmem [shape: f32[1,128], index: 4, kind: input, shape index: {}]
  %s5 = inlined_call_operand.hbm [shape: f32[128,128], index: 5, kind: output, shape index: {}]
  %s6 = sld [smem:[#allocation0]]
  $region38: #{dap_block.15} parent=0
    _
  %s8 = ssub.s32 1, %s6
  %s9 = scalar_select 0, %s8, %s6
  $region1: #{dap_block.15} parent=0
    #allocation3 [shape = 'u8[65536]{0}', space=vmem, size = 0x10000, scoped, tag = 'output window, operand 0, single buffered']
    #allocation4 [shape = 's32[1]{0}', space=sflag, size = 0x4, scoped, tag = 'scoped memory for dap_block.15']
    %10 = vsyncpa [#allocation4], 0
    // Predicated region
    $region2: #{dap_block.15} parent=1 // pred_check
      _
    $region3: #{dap_block.15} parent=1 // pred_check_branch
      %12 = sbr.rel (0) target = $region5
    $region4: #{dap_block.15} parent=1 // pred_region
      _
    $region5: #{dap_block.15} parent=1 // pred_fallthru
      _
    // Predicated region
    $region6: #{dap_block.15} parent=1 // pred_check
      _
    $region7: #{dap_block.15} parent=1 // pred_check_branch
      %14 = sbr.rel (0) target = $region9
    $region8: #{dap_block.15} parent=1 // pred_region
      _
    $region9: #{dap_block.15} parent=1 // pred_fallthru
      _
    // Predicated region
    $region10: #{dap_block.15} parent=1 // pred_check
      _
    $region11: #{dap_block.15} parent=1 // pred_check_branch
      %16 = sbr.rel (0) target = $region13
    $region12: #{dap_block.15} parent=1 // pred_region
      _
    $region13: #{dap_block.15} parent=1 // pred_fallthru
      _
    // Predicated region
    $region14: #{dap_block.15} parent=1 // pred_check
      _
    $region15: #{dap_block.15} parent=1 // pred_check_branch
      %18 = sbr.rel (0) target = $region17
    $region16: #{dap_block.15} parent=1 // pred_region
      _
    $region17: #{dap_block.15} parent=1 // pred_fallthru
      _
    // Predicated region
    $region18: #{dap_block.15} parent=1 // pred_check
      _
    $region19: #{dap_block.15} parent=1 // pred_check_branch
      %20 = sbr.rel (0) target = $region21
    $region20: #{dap_block.15} parent=1 // pred_region
      _
    $region21: #{dap_block.15} parent=1 // pred_fallthru
      _
    %p22 = scmp.eq.s32.totalorder 0, 0
    // Predicated region
    $region22: #{dap_block.15} parent=1 // pred_check
      %p23 = pneg %p22
    $region23: #{dap_block.15} parent=1 // pred_check_branch
      %25 = sbr.rel (%p23) target = $region25
    $region24: #{dap_block.15} parent=1 // pred_region
      %26 = vst [vmem:[#allocation2] sm:$0xff] 0.0
      %27 = vst [vmem:[#allocation2 + $0x8] sm:$0xff] 0.0
      %28 = vst [vmem:[#allocation2 + $0x10] sm:$0xff] 0.0
      %29 = vst [vmem:[#allocation2 + $0x18] sm:$0xff] 0.0
      %30 = vst [vmem:[#allocation2 + $0x20] sm:$0xff] 0.0
      %31 = vst [vmem:[#allocation2 + $0x28] sm:$0xff] 0.0
      %32 = vst [vmem:[#allocation2 + $0x30] sm:$0xff] 0.0
      %33 = vst [vmem:[#allocation2 + $0x38] sm:$0xff] 0.0
      %34 = vst [vmem:[#allocation2 + $0x40] sm:$0xff] 0.0
      %35 = vst [vmem:[#allocation2 + $0x48] sm:$0xff] 0.0
      %36 = vst [vmem:[#allocation2 + $0x50] sm:$0xff] 0.0
      %37 = vst [vmem:[#allocation2 + $0x58] sm:$0xff] 0.0
      %38 = vst [vmem:[#allocation2 + $0x60] sm:$0xff] 0.0
      %39 = vst [vmem:[#allocation2 + $0x68] sm:$0xff] 0.0
      %40 = vst [vmem:[#allocation2 + $0x70] sm:$0xff] 0.0
      %41 = vst [vmem:[#allocation2 + $0x78] sm:$0xff] 0.0
    $region25: #{dap_block.15} parent=1 // pred_fallthru
      _
    %v42 = vld [vmem:[%s0] sm:$0xf]
    %v43 = vld [vmem:[%s0 + $0x4] sm:$0xf]
    %v44 = vld [vmem:[%s0 + $0x8] sm:$0xf]
    %v45 = vld [vmem:[%s0 + $0xc] sm:$0xf]
    %v46 = vld [vmem:[%s0 + $0x10] sm:$0xf]
    %v47 = vld [vmem:[%s0 + $0x14] sm:$0xf]
    %v48 = vld [vmem:[%s0 + $0x18] sm:$0xf]
    %v49 = vld [vmem:[%s0 + $0x1c] sm:$0xf]
    %v50 = vld [vmem:[%s0 + $0x20] sm:$0xf]
    %v51 = vld [vmem:[%s0 + $0x24] sm:$0xf]
    %v52 = vld [vmem:[%s0 + $0x28] sm:$0xf]
    %v53 = vld [vmem:[%s0 + $0x2c] sm:$0xf]
    %v54 = vld [vmem:[%s0 + $0x30] sm:$0xf]
    %v55 = vld [vmem:[%s0 + $0x34] sm:$0xf]
    %v56 = vld [vmem:[%s0 + $0x38] sm:$0xf]
    %v57 = vld [vmem:[%s0 + $0x3c] sm:$0xf]
    %v58 = vld [vmem:[%s1] sm:$0xf]
    %v59 = vld [vmem:[%s1 + $0x4] sm:$0xf]
    %v60 = vld [vmem:[%s1 + $0x8] sm:$0xf]
    %v61 = vld [vmem:[%s1 + $0xc] sm:$0xf]
    %v62 = vld [vmem:[%s1 + $0x10] sm:$0xf]
    %v63 = vld [vmem:[%s1 + $0x14] sm:$0xf]
    %v64 = vld [vmem:[%s1 + $0x18] sm:$0xf]
    %v65 = vld [vmem:[%s1 + $0x1c] sm:$0xf]
    %v66 = vld [vmem:[%s1 + $0x20] sm:$0xf]
    %v67 = vld [vmem:[%s1 + $0x24] sm:$0xf]
    %v68 = vld [vmem:[%s1 + $0x28] sm:$0xf]
    %v69 = vld [vmem:[%s1 + $0x2c] sm:$0xf]
    %v70 = vld [vmem:[%s1 + $0x30] sm:$0xf]
    %v71 = vld [vmem:[%s1 + $0x34] sm:$0xf]
    %v72 = vld [vmem:[%s1 + $0x38] sm:$0xf]
    %v73 = vld [vmem:[%s1 + $0x3c] sm:$0xf]
    %v74 = vadd.bf16 %v42, %v58
    %v75 = vadd.bf16 %v43, %v59
    %v76 = vadd.bf16 %v44, %v60
    %v77 = vadd.bf16 %v45, %v61
    %v78 = vadd.bf16 %v46, %v62
    %v79 = vadd.bf16 %v47, %v63
    %v80 = vadd.bf16 %v48, %v64
    %v81 = vadd.bf16 %v49, %v65
    %v82 = vadd.bf16 %v50, %v66
    %v83 = vadd.bf16 %v51, %v67
    %v84 = vadd.bf16 %v52, %v68
    %v85 = vadd.bf16 %v53, %v69
    %v86 = vadd.bf16 %v54, %v70
    %v87 = vadd.bf16 %v55, %v71
    %v88 = vadd.bf16 %v56, %v72
    %v89 = vadd.bf16 %v57, %v73
    %v90 = vld [vmem:[#allocation2] sm:$0xff]
    %v91 = vld [vmem:[#allocation2 + $0x8] sm:$0xff]
    %v92 = vld [vmem:[#allocation2 + $0x10] sm:$0xff]
    %v93 = vld [vmem:[#allocation2 + $0x18] sm:$0xff]
    %v94 = vld [vmem:[#allocation2 + $0x20] sm:$0xff]
    %v95 = vld [vmem:[#allocation2 + $0x28] sm:$0xff]
    %v96 = vld [vmem:[#allocation2 + $0x30] sm:$0xff]
    %v97 = vld [vmem:[#allocation2 + $0x38] sm:$0xff]
    %v98 = vld [vmem:[#allocation2 + $0x40] sm:$0xff]
    %v99 = vld [vmem:[#allocation2 + $0x48] sm:$0xff]
    %v100 = vld [vmem:[#allocation2 + $0x50] sm:$0xff]
    %v101 = vld [vmem:[#allocation2 + $0x58] sm:$0xff]
    %v102 = vld [vmem:[#allocation2 + $0x60] sm:$0xff]
    %v103 = vld [vmem:[#allocation2 + $0x68] sm:$0xff]
    %v104 = vld [vmem:[#allocation2 + $0x70] sm:$0xff]
    %v105 = vld [vmem:[#allocation2 + $0x78] sm:$0xff]
    %v106 = vld [vmem:[%s2] sm:$0xf]
    %v107 = vld [vmem:[%s2 + $0x4] sm:$0xf]
    %v108 = vld [vmem:[%s2 + $0x8] sm:$0xf]
    %v109 = vld [vmem:[%s2 + $0xc] sm:$0xf]
    %v110 = vld [vmem:[%s2 + $0x10] sm:$0xf]
    %v111 = vld [vmem:[%s2 + $0x14] sm:$0xf]
    %v112 = vld [vmem:[%s2 + $0x18] sm:$0xf]
    %v113 = vld [vmem:[%s2 + $0x1c] sm:$0xf]
    %v114 = vld [vmem:[%s2 + $0x20] sm:$0xf]
    %v115 = vld [vmem:[%s2 + $0x24] sm:$0xf]
    %v116 = vld [vmem:[%s2 + $0x28] sm:$0xf]
    %v117 = vld [vmem:[%s2 + $0x2c] sm:$0xf]
    %v118 = vld [vmem:[%s2 + $0x30] sm:$0xf]
    %v119 = vld [vmem:[%s2 + $0x34] sm:$0xf]
    %v120 = vld [vmem:[%s2 + $0x38] sm:$0xf]
    %v121 = vld [vmem:[%s2 + $0x3c] sm:$0xf]
    %v138 = vunpack.c.l.b16 %v74
    %v139 = vunpack.c.l.b16 %v75
    %v140 = vunpack.c.l.b16 %v76
    %v141 = vunpack.c.l.b16 %v77
    %v142 = vunpack.c.l.b16 %v78
    %v143 = vunpack.c.l.b16 %v79
    %v144 = vunpack.c.l.b16 %v80
    %v145 = vunpack.c.l.b16 %v81
    %v146 = vunpack.c.l.b16 %v82
    %v147 = vunpack.c.l.b16 %v83
    %v148 = vunpack.c.l.b16 %v84
    %v149 = vunpack.c.l.b16 %v85
    %v150 = vunpack.c.l.b16 %v86
    %v151 = vunpack.c.l.b16 %v87
    %v152 = vunpack.c.l.b16 %v88
    %v153 = vunpack.c.l.b16 %v89
    %v154 = vpack.c.b16 %v139, %v138
    %v155 = vpack.c.b16 %v141, %v140
    %v156 = vpack.c.b16 %v143, %v142
    %v157 = vpack.c.b16 %v145, %v144
    %v158 = vpack.c.b16 %v147, %v146
    %v159 = vpack.c.b16 %v149, %v148
    %v160 = vpack.c.b16 %v151, %v150
    %v161 = vpack.c.b16 %v153, %v152
    %v186 = vunpack.c.l.b16 %v106
    %v187 = vunpack.c.l.b16 %v107
    %v188 = vunpack.c.l.b16 %v108
    %v189 = vunpack.c.l.b16 %v109
    %v190 = vunpack.c.l.b16 %v110
    %v191 = vunpack.c.l.b16 %v111
    %v192 = vunpack.c.l.b16 %v112
    %v193 = vunpack.c.l.b16 %v113
    %v194 = vunpack.c.l.b16 %v114
    %v195 = vunpack.c.l.b16 %v115
    %v196 = vunpack.c.l.b16 %v116
    %v197 = vunpack.c.l.b16 %v117
    %v198 = vunpack.c.l.b16 %v118
    %v199 = vunpack.c.l.b16 %v119
    %v200 = vunpack.c.l.b16 %v120
    %v201 = vunpack.c.l.b16 %v121
    %v202 = vpack.c.b16 %v187, %v186
    %v203 = vpack.c.b16 %v189, %v188
    %v204 = vpack.c.b16 %v191, %v190
    %v205 = vpack.c.b16 %v193, %v192
    %v206 = vpack.c.b16 %v195, %v194
    %v207 = vpack.c.b16 %v197, %v196
    %v208 = vpack.c.b16 %v199, %v198
    %v209 = vpack.c.b16 %v201, %v200
    %218 = vmatprep.subr.bf16.mxu0 0
    %219 = vmatpush1.bf16.msra.mxu0 %v209
    %220 = vmatprep.subr.bf16.mxu0 0
    %221 = vmatpush1.bf16.msra.mxu0 %v208
    %222 = vmatprep.subr.bf16.mxu0 0
    %223 = vmatpush1.bf16.msra.mxu0 %v207
    %224 = vmatprep.subr.bf16.mxu0 0
    %225 = vmatpush1.bf16.msra.mxu0 %v206
    %226 = vmatprep.subr.bf16.mxu0 0
    %227 = vmatpush1.bf16.msra.mxu0 %v205
    %228 = vmatprep.subr.bf16.mxu0 0
    %229 = vmatpush1.bf16.msra.mxu0 %v204
    %230 = vmatprep.subr.bf16.mxu0 0
    %231 = vmatpush1.bf16.msra.mxu0 %v203
    %232 = vmatprep.subr.bf16.mxu0 0
    %233 = vmatpush1.bf16.msra.mxu0 %v202
    %234 = vmatprep.subr.bf16.mxu0 0
    %235 = vmatpush2.bf16.msra.mxu0 0
    %236 = vmatprep.subr.bf16.mxu0 0
    %237 = vmatpush2.bf16.msra.mxu0 0
    %238 = vmatprep.subr.bf16.mxu0 0
    %239 = vmatpush2.bf16.msra.mxu0 0
    %240 = vmatprep.subr.bf16.mxu0 0
    %241 = vmatpush2.bf16.msra.mxu0 0
    %242 = vmatprep.subr.bf16.mxu0 0
    %243 = vmatpush2.bf16.msra.mxu0 0
    %244 = vmatprep.subr.bf16.mxu0 0
    %245 = vmatpush2.bf16.msra.mxu0 0
    %246 = vmatprep.subr.bf16.mxu0 0
    %247 = vmatpush2.bf16.msra.mxu0 0
    %248 = vmatprep.subr.bf16.mxu0 0
    %249 = vmatpush2.bf16.msra.mxu0 0
    %250 = vmatprep.mubr.bf16.mxu0 0
    %251 = vmatmul.mubr.bf16.gmra.mxu0 %v154
    %v252 = vpop.f32.mrf.mxu0
    %v253 = vadd.f32 0.0, %v252
    %v254 = vpop.f32.mrf.mxu0
    %v255 = vpop.f32.mrf.mxu0
    %v256 = vadd.f32 0.0, %v255
    %v257 = vpop.f32.mrf.mxu0
    %258 = vmatprep.mubr.bf16.mxu0 0
    %259 = vmatmul.mubr.bf16.gmra.mxu0 %v155
    %v260 = vpop.f32.mrf.mxu0
    %v261 = vadd.f32 0.0, %v260
    %v262 = vpop.f32.mrf.mxu0
    %v263 = vpop.f32.mrf.mxu0
    %v264 = vadd.f32 0.0, %v263
    %v265 = vpop.f32.mrf.mxu0
    %266 = vmatprep.mubr.bf16.mxu0 0
    %267 = vmatmul.mubr.bf16.gmra.mxu0 %v156
    %v268 = vpop.f32.mrf.mxu0
    %v269 = vadd.f32 0.0, %v268
    %v270 = vpop.f32.mrf.mxu0
    %v271 = vpop.f32.mrf.mxu0
    %v272 = vadd.f32 0.0, %v271
    %v273 = vpop.f32.mrf.mxu0
    %274 = vmatprep.mubr.bf16.mxu0 0
    %275 = vmatmul.mubr.bf16.gmra.mxu0 %v157
    %v276 = vpop.f32.mrf.mxu0
    %v277 = vadd.f32 0.0, %v276
    %v278 = vpop.f32.mrf.mxu0
    %v279 = vpop.f32.mrf.mxu0
    %v280 = vadd.f32 0.0, %v279
    %v281 = vpop.f32.mrf.mxu0
    %282 = vmatprep.mubr.bf16.mxu0 0
    %283 = vmatmul.mubr.bf16.gmra.mxu0 %v158
    %v284 = vpop.f32.mrf.mxu0
    %v285 = vadd.f32 0.0, %v284
    %v286 = vpop.f32.mrf.mxu0
    %v287 = vpop.f32.mrf.mxu0
    %v288 = vadd.f32 0.0, %v287
    %v289 = vpop.f32.mrf.mxu0
    %290 = vmatprep.mubr.bf16.mxu0 0
    %291 = vmatmul.mubr.bf16.gmra.mxu0 %v159
    %v292 = vpop.f32.mrf.mxu0
    %v293 = vadd.f32 0.0, %v292
    %v294 = vpop.f32.mrf.mxu0
    %v295 = vpop.f32.mrf.mxu0
    %v296 = vadd.f32 0.0, %v295
    %v297 = vpop.f32.mrf.mxu0
    %298 = vmatprep.mubr.bf16.mxu0 0
    %299 = vmatmul.mubr.bf16.gmra.mxu0 %v160
    %v300 = vpop.f32.mrf.mxu0
    %v301 = vadd.f32 0.0, %v300
    %v302 = vpop.f32.mrf.mxu0
    %v303 = vpop.f32.mrf.mxu0
    %v304 = vadd.f32 0.0, %v303
    %v305 = vpop.f32.mrf.mxu0
    %306 = vmatprep.mubr.bf16.mxu0 0
    %307 = vmatmul.mubr.bf16.gmra.mxu0 %v161
    %v308 = vpop.f32.mrf.mxu0
    %v309 = vadd.f32 0.0, %v308
    %v310 = vpop.f32.mrf.mxu0
    %v311 = vpop.f32.mrf.mxu0
    %v312 = vadd.f32 0.0, %v311
    %v313 = vpop.f32.mrf.mxu0
    %314 = vdwg.mxu0
    %v315 = vadd.f32 %v90, %v253
    %v316 = vadd.f32 %v91, %v256
    %v317 = vadd.f32 %v92, %v261
    %v318 = vadd.f32 %v93, %v264
    %v319 = vadd.f32 %v94, %v269
    %v320 = vadd.f32 %v95, %v272
    %v321 = vadd.f32 %v96, %v277
    %v322 = vadd.f32 %v97, %v280
    %v323 = vadd.f32 %v98, %v285
    %v324 = vadd.f32 %v99, %v288
    %v325 = vadd.f32 %v100, %v293
    %v326 = vadd.f32 %v101, %v296
    %v327 = vadd.f32 %v102, %v301
    %v328 = vadd.f32 %v103, %v304
    %v329 = vadd.f32 %v104, %v309
    %v330 = vadd.f32 %v105, %v312
    %331 = vst [vmem:[#allocation2] sm:$0xff] %v315
    %332 = vst [vmem:[#allocation2 + $0x8] sm:$0xff] %v316
    %333 = vst [vmem:[#allocation2 + $0x10] sm:$0xff] %v317
    %334 = vst [vmem:[#allocation2 + $0x18] sm:$0xff] %v318
    %335 = vst [vmem:[#allocation2 + $0x20] sm:$0xff] %v319
    %336 = vst [vmem:[#allocation2 + $0x28] sm:$0xff] %v320
    %337 = vst [vmem:[#allocation2 + $0x30] sm:$0xff] %v321
    %338 = vst [vmem:[#allocation2 + $0x38] sm:$0xff] %v322
    %339 = vst [vmem:[#allocation2 + $0x40] sm:$0xff] %v323
    %340 = vst [vmem:[#allocation2 + $0x48] sm:$0xff] %v324
    %341 = vst [vmem:[#allocation2 + $0x50] sm:$0xff] %v325
    %342 = vst [vmem:[#allocation2 + $0x58] sm:$0xff] %v326
    %343 = vst [vmem:[#allocation2 + $0x60] sm:$0xff] %v327
    %344 = vst [vmem:[#allocation2 + $0x68] sm:$0xff] %v328
    %345 = vst [vmem:[#allocation2 + $0x70] sm:$0xff] %v329
    %346 = vst [vmem:[#allocation2 + $0x78] sm:$0xff] %v330
    // Predicated region
    $region26: #{dap_block.15} parent=1 // pred_check
      %p347 = pneg %p22
    $region27: #{dap_block.15} parent=1 // pred_check_branch
      %349 = sbr.rel (%p347) target = $region29
    $region28: #{dap_block.15} parent=1 // pred_region
      %v350 = vld [vmem:[#allocation2] sm:$0xff]
      %v351 = vld [vmem:[#allocation2 + $0x8] sm:$0xff]
      %v352 = vld [vmem:[#allocation2 + $0x10] sm:$0xff]
      %v353 = vld [vmem:[#allocation2 + $0x18] sm:$0xff]
      %v354 = vld [vmem:[#allocation2 + $0x20] sm:$0xff]
      %v355 = vld [vmem:[#allocation2 + $0x28] sm:$0xff]
      %v356 = vld [vmem:[#allocation2 + $0x30] sm:$0xff]
      %v357 = vld [vmem:[#allocation2 + $0x38] sm:$0xff]
      %v358 = vld [vmem:[#allocation2 + $0x40] sm:$0xff]
      %v359 = vld [vmem:[#allocation2 + $0x48] sm:$0xff]
      %v360 = vld [vmem:[#allocation2 + $0x50] sm:$0xff]
      %v361 = vld [vmem:[#allocation2 + $0x58] sm:$0xff]
      %v362 = vld [vmem:[#allocation2 + $0x60] sm:$0xff]
      %v363 = vld [vmem:[#allocation2 + $0x68] sm:$0xff]
      %v364 = vld [vmem:[#allocation2 + $0x70] sm:$0xff]
      %v365 = vld [vmem:[#allocation2 + $0x78] sm:$0xff]
      %v366 = vld [vmem:[%s3] sm:$0x1]
      %v368 = vlaneseq
      %v369 = vshrl.u32 %v368, 7
      %v370 = vsub.s32 0, %v369
      %v371 = vrot.slane %v366, %v370
      %v373 = vmul.f32 %v350, %v371
      %v374 = vmul.f32 %v351, %v371
      %v375 = vmul.f32 %v352, %v371
      %v376 = vmul.f32 %v353, %v371
      %v377 = vmul.f32 %v354, %v371
      %v378 = vmul.f32 %v355, %v371
      %v379 = vmul.f32 %v356, %v371
      %v380 = vmul.f32 %v357, %v371
      %v381 = vmul.f32 %v358, %v371
      %v382 = vmul.f32 %v359, %v371
      %v383 = vmul.f32 %v360, %v371
      %v384 = vmul.f32 %v361, %v371
      %v385 = vmul.f32 %v362, %v371
      %v386 = vmul.f32 %v363, %v371
      %v387 = vmul.f32 %v364, %v371
      %v388 = vmul.f32 %v365, %v371
      %v389 = vld [vmem:[%s4] sm:$0x1]
      %v391 = vlaneseq
      %v392 = vshrl.u32 %v391, 7
      %v393 = vsub.s32 0, %v392
      %v394 = vrot.slane %v389, %v393
      %v396 = vadd.f32 %v373, %v394
      %v397 = vadd.f32 %v374, %v394
      %v398 = vadd.f32 %v375, %v394
      %v399 = vadd.f32 %v376, %v394
      %v400 = vadd.f32 %v377, %v394
      %v401 = vadd.f32 %v378, %v394
      %v402 = vadd.f32 %v379, %v394
      %v403 = vadd.f32 %v380, %v394
      %v404 = vadd.f32 %v381, %v394
      %v405 = vadd.f32 %v382, %v394
      %v406 = vadd.f32 %v383, %v394
      %v407 = vadd.f32 %v384, %v394
      %v408 = vadd.f32 %v385, %v394
      %v409 = vadd.f32 %v386, %v394
      %v410 = vadd.f32 %v387, %v394
      %v411 = vadd.f32 %v388, %v394
      %412 = vst [vmem:[#allocation3] sm:$0xff] %v396
      %413 = vst [vmem:[#allocation3 + $0x8] sm:$0xff] %v397
      %414 = vst [vmem:[#allocation3 + $0x10] sm:$0xff] %v398
      %415 = vst [vmem:[#allocation3 + $0x18] sm:$0xff] %v399
      %416 = vst [vmem:[#allocation3 + $0x20] sm:$0xff] %v400
      %417 = vst [vmem:[#allocation3 + $0x28] sm:$0xff] %v401
      %418 = vst [vmem:[#allocation3 + $0x30] sm:$0xff] %v402
      %419 = vst [vmem:[#allocation3 + $0x38] sm:$0xff] %v403
      %420 = vst [vmem:[#allocation3 + $0x40] sm:$0xff] %v404
      %421 = vst [vmem:[#allocation3 + $0x48] sm:$0xff] %v405
      %422 = vst [vmem:[#allocation3 + $0x50] sm:$0xff] %v406
      %423 = vst [vmem:[#allocation3 + $0x58] sm:$0xff] %v407
      %424 = vst [vmem:[#allocation3 + $0x60] sm:$0xff] %v408
      %425 = vst [vmem:[#allocation3 + $0x68] sm:$0xff] %v409
      %426 = vst [vmem:[#allocation3 + $0x70] sm:$0xff] %v410
      %427 = vst [vmem:[#allocation3 + $0x78] sm:$0xff] %v411
    $region29: #{dap_block.15} parent=1 // pred_fallthru
      _
    // Predicated region
    $region30: #{dap_block.15} parent=1 // pred_check
      _
    $region31: #{dap_block.15} parent=1 // pred_check_branch
      %429 = sbr.rel (0) target = $region33
    $region32: #{dap_block.15} parent=1 // pred_region
      %s431 = ssub.s32 2048, 2048
      %432 = vsyncadd [#allocation4], %s431
      %s433 = sshll.u32 [#allocation3], 4
      %s434 = int_to_ptr.vmem [resolvable:$true] %s433
      %439 = dma.vmem_to_hbm [thread:$0]  %s434, 2048, %s5, [#allocation4], 128, 128, 8
    $region33: #{dap_block.15} parent=1 // pred_fallthru
      _
    // Predicated region
    $region34: #{dap_block.15} parent=1 // pred_check
      _
    $region35: #{dap_block.15} parent=1 // pred_check_branch
      %441 = sbr.rel (0) target = $region37
    $region36: #{dap_block.15} parent=1 // pred_region
      %442 = dma.done [#allocation4], 2048
    $region37: #{dap_block.15} parent=1 // pred_fallthru
      _
    %443 = vsyncpa [#allocation4], 1

</llo_original>
